<compile_context>
chip_gen: v5e
topology: v5e:2x2
jax: 0.10.0
libtpu: 0.0.40
codegen_flags: <defaults>
</compile_context>

<pallas_src>
import functools

import numpy as np
import jax
import jax.numpy as jnp
from jax.experimental import pallas as pl
from jax.experimental.pallas import tpu as pltpu

LRELU_SLOPE = 0.1


def _round_up(x, m):
    return ((x + m - 1) // m) * m


# ---------------------------------------------------------------------------
# Pallas kernel: fused tap-accumulating conv GEMM + bias + LeakyReLU.
# Grid = (B, time-tiles, out-channel-tiles, contraction-chunks).
# The contraction axis (last, "arbitrary") accumulates into a VMEM scratch;
# bias + activation are fused into the final contraction step.
# ---------------------------------------------------------------------------
def _conv_tap_kernel(xa_ref, xb_ref, w_ref, bias_ref, o_ref, acc_ref, win_ref,
                     *, n_taps, apply_lrelu, slope):
    c = pl.program_id(3)
    tt = acc_ref.shape[0]
    cc = win_ref.shape[1]

    @pl.when(c == 0)
    def _init():
        acc_ref[...] = jnp.zeros_like(acc_ref)

    # Contiguous (2*tt, cc) time window for this channel chunk: current chunk
    # followed by the next chunk (halo for the conv taps).
    win_ref[0:tt, :] = xa_ref[...]
    win_ref[tt:2 * tt, :] = xb_ref[...]

    # Accumulate all taps of this channel chunk into a local f32 partial.
    partial = jnp.zeros(acc_ref.shape, jnp.float32)
    for q in range(n_taps):
        xq = win_ref[q:q + tt, :]          # (tt, cc), static sublane offset
        wq = w_ref[q]                      # (cc, tn)
        if cc == 1:
            # Degenerate contraction (first layer, Cin=1): use the VPU.
            partial = partial + xq.astype(jnp.float32) * wq.astype(jnp.float32)
        else:
            partial = partial + jnp.dot(xq, wq,
                                        preferred_element_type=jnp.float32)
    acc_ref[...] += partial

    @pl.when(c == pl.num_programs(3) - 1)
    def _finalize():
        y = acc_ref[...] + bias_ref[...]
        if apply_lrelu:
            y = jnp.where(y >= 0, y, y * slope)
        o_ref[...] = y.astype(o_ref.dtype)


# ---------------------------------------------------------------------------
# One Conv1d (possibly strided / grouped-as-block-diagonal) + bias + LeakyReLU.
# x: (B, T, Cin) channels-last.  w_dense: (K, Cin, Cout) f32 (block-diagonal
# for grouped layers).  Returns (B, T_out, Cout) bf16.
# ---------------------------------------------------------------------------
def conv1d_fused(x, w_dense, bias, *, stride, padding, apply_lrelu,
                 tt=256, tn=256, w_block_budget=6 * 1024 * 1024):
    B, T, Cin = x.shape
    K, wcin, Cout = w_dense.shape
    assert wcin == Cin
    s = stride
    T_out = (T + 2 * padding - K) // s + 1
    assert T_out >= 1, "input too short for this conv"

    # Fold the stride into the channel dim ("phase decomposition"):
    # a stride-s, K-tap conv over Cin channels becomes a stride-1,
    # ceil(K/s)-tap conv over s*Cin channels via a free reshape.
    Kq = -(-K // s)
    Cx = s * Cin

    # Output-channel tiling (lane-dense, multiples of 128).
    tn_eff = min(tn, _round_up(Cout, 128))
    Coutp = _round_up(Cout, tn_eff)
    n_n = Coutp // tn_eff

    # Time (M) tiling; keep the window invariant tt >= Kq - 1.
    tt_eff = min(tt, max(_round_up(T_out, 8), _round_up(Kq, 8)))
    n_t = -(-T_out // tt_eff)
    Upad = (n_t + 1) * tt_eff          # +1 chunk so the halo chunk always exists
    Tp = Upad * s

    # Contraction chunk over the phase-folded channel dim (weight block budget).
    if Cx <= 128:
        cc = Cx
    else:
        cc = min(1024, Cx - Cx % 128)
        while cc > 128 and Kq * cc * tn_eff * 2 > w_block_budget:
            cc -= 128
    Cxp = _round_up(Cx, cc)
    n_c = Cxp // cc

    # Activations: zero time-pad (Conv1d), phase-fold, channel-pad, bf16.
    xp = jnp.pad(x, ((0, 0), (padding, Tp - T - padding), (0, 0)))
    x2 = xp.reshape(B, Upad, Cx)
    if Cxp > Cx:
        x2 = jnp.pad(x2, ((0, 0), (0, 0), (0, Cxp - Cx)))
    x2 = x2.astype(jnp.bfloat16)

    # Weights: pad taps to Kq*s, fold phases into the contraction dim, pad.
    w_p = jnp.pad(w_dense, ((0, Kq * s - K), (0, 0), (0, Coutp - Cout)))
    w2 = w_p.reshape(Kq, s, Cin, Coutp).reshape(Kq, Cx, Coutp)
    if Cxp > Cx:
        w2 = jnp.pad(w2, ((0, 0), (0, Cxp - Cx), (0, 0)))
    w2 = w2.astype(jnp.bfloat16)

    bias_p = jnp.pad(bias, (0, Coutp - Cout)).astype(jnp.float32).reshape(1, Coutp)

    grid = (B, n_t, n_n, n_c)

    out = pl.pallas_call(
        functools.partial(_conv_tap_kernel, n_taps=Kq,
                          apply_lrelu=apply_lrelu, slope=LRELU_SLOPE),
        out_shape=jax.ShapeDtypeStruct((B, n_t * tt_eff, Coutp), jnp.bfloat16),
        grid_spec=pltpu.PrefetchScalarGridSpec(
            num_scalar_prefetch=0,
            grid=grid,
            in_specs=[
                # current time chunk of this channel chunk
                pl.BlockSpec((None, tt_eff, cc), lambda b, i, j, c: (b, i, c)),
                # next time chunk (halo rows for the conv taps)
                pl.BlockSpec((None, tt_eff, cc), lambda b, i, j, c: (b, i + 1, c)),
                # phase-folded weight slab for this (channel-chunk, out-tile)
                pl.BlockSpec((Kq, cc, tn_eff), lambda b, i, j, c: (0, c, j)),
                # bias tile
                pl.BlockSpec((1, tn_eff), lambda b, i, j, c: (0, j)),
            ],
            out_specs=pl.BlockSpec((None, tt_eff, tn_eff),
                                   lambda b, i, j, c: (b, i, j)),
            scratch_shapes=[
                pltpu.VMEM((tt_eff, tn_eff), jnp.float32),      # accumulator
                pltpu.VMEM((2 * tt_eff, cc), jnp.bfloat16),     # time window
            ],
        ),
        compiler_params=pltpu.CompilerParams(
            dimension_semantics=("parallel", "parallel", "parallel", "arbitrary"),
            vmem_limit_bytes=32 * 1024 * 1024),
    )(x2, x2, w2, bias_p)

    return out[:, :T_out, :Cout]


# ---------------------------------------------------------------------------
# Parameters (deterministic synthetic init; shapes from DiscriminatorS).
#   (Cin, Cout, K, stride, groups, padding, lrelu)
# ---------------------------------------------------------------------------
_CFG = [
    (1,    128, 15, 1,  1,  7, True),
    (128,  128, 41, 2,  4, 20, True),
    (128,  256, 41, 2, 16, 20, True),
    (256,  512, 41, 4, 16, 20, True),
    (512, 1024, 41, 4, 16, 20, True),
    (1024, 1024, 41, 1, 16, 20, True),
    (1024, 1024,  5, 1,  1,  2, True),
    (1024,    1,  3, 1,  1,  1, False),   # conv_post (no LeakyReLU)
]


def _densify_grouped(w_t, groups):
    """torch-layout grouped weight (Cout, Cin/G, K) -> dense (K, Cin, Cout)
    with zero off-group blocks (numerically identical to the grouped conv)."""
    cout, cin_g, k = w_t.shape
    cout_g = cout // groups
    cin = cin_g * groups
    w_kic = jnp.transpose(w_t, (2, 1, 0))          # (K, Cin_g, Cout)
    if groups == 1:
        return w_kic
    wd = jnp.zeros((k, cin, cout), w_t.dtype)
    for g in range(groups):
        wd = wd.at[:, g * cin_g:(g + 1) * cin_g,
                   g * cout_g:(g + 1) * cout_g].set(
                       w_kic[:, :, g * cout_g:(g + 1) * cout_g])
    return wd


def init_params(key):
    params = []
    for (cin, cout, k, s, g, pad, lrelu) in _CFG:
        key, kw, kb = jax.random.split(key, 3)
        cin_g = cin // g
        scale = 1.0 / np.sqrt(cin_g * k)
        w_t = jax.random.normal(kw, (cout, cin_g, k), jnp.float32) * scale
        b = jax.random.normal(kb, (cout,), jnp.float32) * 0.05
        params.append(dict(
            w_t=w_t,                              # torch layout (reference path)
            w_dense=_densify_grouped(w_t, g),     # (K, Cin, Cout) for the kernel
            b=b, stride=s, pad=pad, groups=g, lrelu=lrelu))
    return params


# ---------------------------------------------------------------------------
# DiscriminatorS.forward (Pallas path, channels-last internally)
# ---------------------------------------------------------------------------
def discriminator_s_forward(x_nct, params, *, fmap_ncw=False):
    # x_nct: (B, 1, T) like the torch module
    B = x_nct.shape[0]
    x = jnp.transpose(x_nct, (0, 2, 1)).astype(jnp.bfloat16)   # (B, T, C)
    fmap = []
    for p in params:
        x = conv1d_fused(x, p["w_dense"], p["b"], stride=p["stride"],
                         padding=p["pad"], apply_lrelu=p["lrelu"])
        # Feature maps stay channels-last by default (elementwise losses are
        # layout-agnostic); set fmap_ncw=True for exact PyTorch (B, C, T).
        fmap.append(jnp.transpose(x, (0, 2, 1)) if fmap_ncw else x)
    out = x.reshape(B, -1)        # conv_post has Cout==1 -> same as torch.flatten
    return out, fmap


# ---------------------------------------------------------------------------
# Pure-JAX reference (grouped lax.conv, same bf16-operand / f32-accumulate
# numerics) for verification.
# ---------------------------------------------------------------------------
def reference_forward(x_nct, params):
    B = x_nct.shape[0]
    x = x_nct[:, :, :, None].astype(jnp.bfloat16)              # (B, C, T, 1)
    fmap = []
    for p in params:
        w4 = p["w_t"].astype(jnp.bfloat16)[..., None]           # (Cout, Cin/G, K, 1)
        y = jax.lax.conv_general_dilated(
            x, w4, window_strides=(p["stride"], 1),
            padding=((p["pad"], p["pad"]), (0, 0)),
            dimension_numbers=("NCHW", "OIHW", "NCHW"),
            feature_group_count=p["groups"],
            preferred_element_type=jnp.float32)
        y = y + p["b"][None, :, None, None]
        if p["lrelu"]:
            y = jnp.where(y >= 0, y, LRELU_SLOPE * y)
        x = y.astype(jnp.bfloat16)
        fmap.append(x[..., 0])                                   # (B, C, T)
    out = fmap[-1].reshape(B, -1)
    return out, fmap


def _np32(a):
    return np.asarray(jnp.asarray(a, jnp.float32))


if __name__ == "__main__":
    key = jax.random.PRNGKey(0)
    kx, kp = jax.random.split(key)

    B, T = 2, 1024
    x = jax.random.normal(kx, (B, 1, T), jnp.float32)   # (B, C=1, T) waveform
    params = init_params(kp)

    out, fmap = discriminator_s_forward(x, params)
    jax.block_until_ready((out, fmap))

    ref_out, ref_fmap = reference_forward(x, params)

    assert out.shape == ref_out.shape, (out.shape, ref_out.shape)
    np.testing.assert_allclose(_np32(out), _np32(ref_out), rtol=1e-2, atol=1e-2)
    for a, r in zip(fmap, ref_fmap):
        r_cl = jnp.transpose(r, (0, 2, 1))   # reference is NCW; kernel is (B,T,C)
        assert a.shape == r_cl.shape, (a.shape, r_cl.shape)
        np.testing.assert_allclose(_np32(a), _np32(r_cl), rtol=1e-2, atol=1e-2)

    print("KERNEL_OK")
</pallas_src>

<mosaic_0001>
module attributes {stable_mosaic.version = 11 : i64} {
  func.func @_conv_tap_kernel(%arg0: i32, %arg1: i32, %arg2: i32, %arg3: i32, %arg4: memref<1x256x1xbf16, #tpu.memory_space<vmem>>, %arg5: memref<1x256x1xbf16, #tpu.memory_space<vmem>>, %arg6: memref<15x1x128xbf16, #tpu.memory_space<vmem>>, %arg7: memref<1x128xf32, #tpu.memory_space<vmem>>, %arg8: memref<1x256x128xbf16, #tpu.memory_space<vmem>>, %arg9: memref<256x128xf32, #tpu.memory_space<vmem>>, %arg10: memref<512x1xbf16, #tpu.memory_space<vmem>>) attributes {dimension_semantics = [#tpu.dimension_semantics<parallel>, #tpu.dimension_semantics<parallel>, #tpu.dimension_semantics<parallel>, #tpu.dimension_semantics<arbitrary>], iteration_bounds = array<i64: 2, 4, 1, 1>, scalar_prefetch = 0 : i64, scratch_operands = 2 : i64, tpu.core_type = #tpu.core_type<tc>, window_params = [{transform_indices = @transform_0, window_bounds = array<i64: 1, 256, 1>}, {transform_indices = @transform_1, window_bounds = array<i64: 1, 256, 1>}, {transform_indices = @transform_2, window_bounds = array<i64: 15, 1, 128>}, {transform_indices = @transform_3, window_bounds = array<i64: 1, 128>}, {transform_indices = @transform_4, window_bounds = array<i64: 1, 256, 128>}]} {
    %c0_i32 = arith.constant 0 : i32
    %0 = arith.cmpi eq, %arg3, %c0_i32 : i32
    %1 = arith.extui %0 : i1 to i32
    %c0_i32_0 = arith.constant 0 : i32
    %2 = arith.cmpi ne, %1, %c0_i32_0 : i32
    scf.if %2 {
      %cst_76 = arith.constant 0.000000e+00 : f32
      %151 = vector.broadcast %cst_76 : f32 to vector<256x128xf32>
      %c0_77 = arith.constant 0 : index
      %c0_78 = arith.constant 0 : index
      %152 = vector.load %arg9[%c0_77, %c0_78] : memref<256x128xf32, #tpu.memory_space<vmem>>, vector<256x128xf32>
      tpu.vector_store %arg9[%c0_77, %c0_78], %151 {strides = array<i32>} : memref<256x128xf32, #tpu.memory_space<vmem>>, vector<256x128xf32>,
    } else {
    }
    %c0 = arith.constant 0 : index
    %c0_1 = arith.constant 0 : index
    %c0_2 = arith.constant 0 : index
    %3 = vector.load %arg4[%c0, %c0_1, %c0_2] : memref<1x256x1xbf16, #tpu.memory_space<vmem>>, vector<1x256x1xbf16>
    %4 = vector.shape_cast %3 : vector<1x256x1xbf16> to vector<256x1xbf16>
    %c0_3 = arith.constant 0 : index
    %c0_4 = arith.constant 0 : index
    %5 = vector.load %arg10[%c0_3, %c0_4] : memref<512x1xbf16, #tpu.memory_space<vmem>>, vector<256x1xbf16>
    tpu.vector_store %arg10[%c0_3, %c0_4], %4 {strides = array<i32>} : memref<512x1xbf16, #tpu.memory_space<vmem>>, vector<256x1xbf16>,
    %c0_5 = arith.constant 0 : index
    %c0_6 = arith.constant 0 : index
    %c0_7 = arith.constant 0 : index
    %6 = vector.load %arg5[%c0_5, %c0_6, %c0_7] : memref<1x256x1xbf16, #tpu.memory_space<vmem>>, vector<1x256x1xbf16>
    %7 = vector.shape_cast %6 : vector<1x256x1xbf16> to vector<256x1xbf16>
    %c256 = arith.constant 256 : index
    %c0_8 = arith.constant 0 : index
    %8 = vector.load %arg10[%c256, %c0_8] : memref<512x1xbf16, #tpu.memory_space<vmem>>, vector<256x1xbf16>
    tpu.vector_store %arg10[%c256, %c0_8], %7 {strides = array<i32>} : memref<512x1xbf16, #tpu.memory_space<vmem>>, vector<256x1xbf16>,
    %cst = arith.constant 0.000000e+00 : f32
    %9 = vector.broadcast %cst : f32 to vector<256x128xf32>
    %c0_9 = arith.constant 0 : index
    %c0_10 = arith.constant 0 : index
    %10 = vector.load %arg10[%c0_9, %c0_10] : memref<512x1xbf16, #tpu.memory_space<vmem>>, vector<256x1xbf16>
    %c0_11 = arith.constant 0 : index
    %c0_12 = arith.constant 0 : index
    %c0_13 = arith.constant 0 : index
    %11 = vector.load %arg6[%c0_11, %c0_12, %c0_13] : memref<15x1x128xbf16, #tpu.memory_space<vmem>>, vector<1x1x128xbf16>
    %12 = vector.shape_cast %11 : vector<1x1x128xbf16> to vector<1x128xbf16>
    %13 = arith.extf %10 : vector<256x1xbf16> to vector<256x1xf32>
    %14 = arith.extf %12 : vector<1x128xbf16> to vector<1x128xf32>
    %15 = vector.broadcast %13 : vector<256x1xf32> to vector<256x128xf32>
    %16 = vector.broadcast %14 : vector<1x128xf32> to vector<256x128xf32>
    %17 = arith.mulf %15, %16 : vector<256x128xf32>
    %18 = arith.addf %9, %17 : vector<256x128xf32>
    %c1 = arith.constant 1 : index
    %c0_14 = arith.constant 0 : index
    %19 = vector.load %arg10[%c1, %c0_14] : memref<512x1xbf16, #tpu.memory_space<vmem>>, vector<256x1xbf16>
    %c1_15 = arith.constant 1 : index
    %c0_16 = arith.constant 0 : index
    %c0_17 = arith.constant 0 : index
    %20 = vector.load %arg6[%c1_15, %c0_16, %c0_17] : memref<15x1x128xbf16, #tpu.memory_space<vmem>>, vector<1x1x128xbf16>
    %21 = vector.shape_cast %20 : vector<1x1x128xbf16> to vector<1x128xbf16>
    %22 = arith.extf %19 : vector<256x1xbf16> to vector<256x1xf32>
    %23 = arith.extf %21 : vector<1x128xbf16> to vector<1x128xf32>
    %24 = vector.broadcast %22 : vector<256x1xf32> to vector<256x128xf32>
    %25 = vector.broadcast %23 : vector<1x128xf32> to vector<256x128xf32>
    %26 = arith.mulf %24, %25 : vector<256x128xf32>
    %27 = arith.addf %18, %26 : vector<256x128xf32>
    %c2 = arith.constant 2 : index
    %c0_18 = arith.constant 0 : index
    %28 = vector.load %arg10[%c2, %c0_18] : memref<512x1xbf16, #tpu.memory_space<vmem>>, vector<256x1xbf16>
    %c2_19 = arith.constant 2 : index
    %c0_20 = arith.constant 0 : index
    %c0_21 = arith.constant 0 : index
    %29 = vector.load %arg6[%c2_19, %c0_20, %c0_21] : memref<15x1x128xbf16, #tpu.memory_space<vmem>>, vector<1x1x128xbf16>
    %30 = vector.shape_cast %29 : vector<1x1x128xbf16> to vector<1x128xbf16>
    %31 = arith.extf %28 : vector<256x1xbf16> to vector<256x1xf32>
    %32 = arith.extf %30 : vector<1x128xbf16> to vector<1x128xf32>
    %33 = vector.broadcast %31 : vector<256x1xf32> to vector<256x128xf32>
    %34 = vector.broadcast %32 : vector<1x128xf32> to vector<256x128xf32>
    %35 = arith.mulf %33, %34 : vector<256x128xf32>
    %36 = arith.addf %27, %35 : vector<256x128xf32>
    %c3 = arith.constant 3 : index
    %c0_22 = arith.constant 0 : index
    %37 = vector.load %arg10[%c3, %c0_22] : memref<512x1xbf16, #tpu.memory_space<vmem>>, vector<256x1xbf16>
    %c3_23 = arith.constant 3 : index
    %c0_24 = arith.constant 0 : index
    %c0_25 = arith.constant 0 : index
    %38 = vector.load %arg6[%c3_23, %c0_24, %c0_25] : memref<15x1x128xbf16, #tpu.memory_space<vmem>>, vector<1x1x128xbf16>
    %39 = vector.shape_cast %38 : vector<1x1x128xbf16> to vector<1x128xbf16>
    %40 = arith.extf %37 : vector<256x1xbf16> to vector<256x1xf32>
    %41 = arith.extf %39 : vector<1x128xbf16> to vector<1x128xf32>
    %42 = vector.broadcast %40 : vector<256x1xf32> to vector<256x128xf32>
    %43 = vector.broadcast %41 : vector<1x128xf32> to vector<256x128xf32>
    %44 = arith.mulf %42, %43 : vector<256x128xf32>
    %45 = arith.addf %36, %44 : vector<256x128xf32>
    %c4 = arith.constant 4 : index
    %c0_26 = arith.constant 0 : index
    %46 = vector.load %arg10[%c4, %c0_26] : memref<512x1xbf16, #tpu.memory_space<vmem>>, vector<256x1xbf16>
    %c4_27 = arith.constant 4 : index
    %c0_28 = arith.constant 0 : index
    %c0_29 = arith.constant 0 : index
    %47 = vector.load %arg6[%c4_27, %c0_28, %c0_29] : memref<15x1x128xbf16, #tpu.memory_space<vmem>>, vector<1x1x128xbf16>
    %48 = vector.shape_cast %47 : vector<1x1x128xbf16> to vector<1x128xbf16>
    %49 = arith.extf %46 : vector<256x1xbf16> to vector<256x1xf32>
    %50 = arith.extf %48 : vector<1x128xbf16> to vector<1x128xf32>
    %51 = vector.broadcast %49 : vector<256x1xf32> to vector<256x128xf32>
    %52 = vector.broadcast %50 : vector<1x128xf32> to vector<256x128xf32>
    %53 = arith.mulf %51, %52 : vector<256x128xf32>
    %54 = arith.addf %45, %53 : vector<256x128xf32>
    %c5 = arith.constant 5 : index
    %c0_30 = arith.constant 0 : index
    %55 = vector.load %arg10[%c5, %c0_30] : memref<512x1xbf16, #tpu.memory_space<vmem>>, vector<256x1xbf16>
    %c5_31 = arith.constant 5 : index
    %c0_32 = arith.constant 0 : index
    %c0_33 = arith.constant 0 : index
    %56 = vector.load %arg6[%c5_31, %c0_32, %c0_33] : memref<15x1x128xbf16, #tpu.memory_space<vmem>>, vector<1x1x128xbf16>
    %57 = vector.shape_cast %56 : vector<1x1x128xbf16> to vector<1x128xbf16>
    %58 = arith.extf %55 : vector<256x1xbf16> to vector<256x1xf32>
    %59 = arith.extf %57 : vector<1x128xbf16> to vector<1x128xf32>
    %60 = vector.broadcast %58 : vector<256x1xf32> to vector<256x128xf32>
    %61 = vector.broadcast %59 : vector<1x128xf32> to vector<256x128xf32>
    %62 = arith.mulf %60, %61 : vector<256x128xf32>
    %63 = arith.addf %54, %62 : vector<256x128xf32>
    %c6 = arith.constant 6 : index
    %c0_34 = arith.constant 0 : index
    %64 = vector.load %arg10[%c6, %c0_34] : memref<512x1xbf16, #tpu.memory_space<vmem>>, vector<256x1xbf16>
    %c6_35 = arith.constant 6 : index
    %c0_36 = arith.constant 0 : index
    %c0_37 = arith.constant 0 : index
    %65 = vector.load %arg6[%c6_35, %c0_36, %c0_37] : memref<15x1x128xbf16, #tpu.memory_space<vmem>>, vector<1x1x128xbf16>
    %66 = vector.shape_cast %65 : vector<1x1x128xbf16> to vector<1x128xbf16>
    %67 = arith.extf %64 : vector<256x1xbf16> to vector<256x1xf32>
    %68 = arith.extf %66 : vector<1x128xbf16> to vector<1x128xf32>
    %69 = vector.broadcast %67 : vector<256x1xf32> to vector<256x128xf32>
    %70 = vector.broadcast %68 : vector<1x128xf32> to vector<256x128xf32>
    %71 = arith.mulf %69, %70 : vector<256x128xf32>
    %72 = arith.addf %63, %71 : vector<256x128xf32>
    %c7 = arith.constant 7 : index
    %c0_38 = arith.constant 0 : index
    %73 = vector.load %arg10[%c7, %c0_38] : memref<512x1xbf16, #tpu.memory_space<vmem>>, vector<256x1xbf16>
    %c7_39 = arith.constant 7 : index
    %c0_40 = arith.constant 0 : index
    %c0_41 = arith.constant 0 : index
    %74 = vector.load %arg6[%c7_39, %c0_40, %c0_41] : memref<15x1x128xbf16, #tpu.memory_space<vmem>>, vector<1x1x128xbf16>
    %75 = vector.shape_cast %74 : vector<1x1x128xbf16> to vector<1x128xbf16>
    %76 = arith.extf %73 : vector<256x1xbf16> to vector<256x1xf32>
    %77 = arith.extf %75 : vector<1x128xbf16> to vector<1x128xf32>
    %78 = vector.broadcast %76 : vector<256x1xf32> to vector<256x128xf32>
    %79 = vector.broadcast %77 : vector<1x128xf32> to vector<256x128xf32>
    %80 = arith.mulf %78, %79 : vector<256x128xf32>
    %81 = arith.addf %72, %80 : vector<256x128xf32>
    %c8 = arith.constant 8 : index
    %c0_42 = arith.constant 0 : index
    %82 = vector.load %arg10[%c8, %c0_42] : memref<512x1xbf16, #tpu.memory_space<vmem>>, vector<256x1xbf16>
    %c8_43 = arith.constant 8 : index
    %c0_44 = arith.constant 0 : index
    %c0_45 = arith.constant 0 : index
    %83 = vector.load %arg6[%c8_43, %c0_44, %c0_45] : memref<15x1x128xbf16, #tpu.memory_space<vmem>>, vector<1x1x128xbf16>
    %84 = vector.shape_cast %83 : vector<1x1x128xbf16> to vector<1x128xbf16>
    %85 = arith.extf %82 : vector<256x1xbf16> to vector<256x1xf32>
    %86 = arith.extf %84 : vector<1x128xbf16> to vector<1x128xf32>
    %87 = vector.broadcast %85 : vector<256x1xf32> to vector<256x128xf32>
    %88 = vector.broadcast %86 : vector<1x128xf32> to vector<256x128xf32>
    %89 = arith.mulf %87, %88 : vector<256x128xf32>
    %90 = arith.addf %81, %89 : vector<256x128xf32>
    %c9 = arith.constant 9 : index
    %c0_46 = arith.constant 0 : index
    %91 = vector.load %arg10[%c9, %c0_46] : memref<512x1xbf16, #tpu.memory_space<vmem>>, vector<256x1xbf16>
    %c9_47 = arith.constant 9 : index
    %c0_48 = arith.constant 0 : index
    %c0_49 = arith.constant 0 : index
    %92 = vector.load %arg6[%c9_47, %c0_48, %c0_49] : memref<15x1x128xbf16, #tpu.memory_space<vmem>>, vector<1x1x128xbf16>
    %93 = vector.shape_cast %92 : vector<1x1x128xbf16> to vector<1x128xbf16>
    %94 = arith.extf %91 : vector<256x1xbf16> to vector<256x1xf32>
    %95 = arith.extf %93 : vector<1x128xbf16> to vector<1x128xf32>
    %96 = vector.broadcast %94 : vector<256x1xf32> to vector<256x128xf32>
    %97 = vector.broadcast %95 : vector<1x128xf32> to vector<256x128xf32>
    %98 = arith.mulf %96, %97 : vector<256x128xf32>
    %99 = arith.addf %90, %98 : vector<256x128xf32>
    %c10 = arith.constant 10 : index
    %c0_50 = arith.constant 0 : index
    %100 = vector.load %arg10[%c10, %c0_50] : memref<512x1xbf16, #tpu.memory_space<vmem>>, vector<256x1xbf16>
    %c10_51 = arith.constant 10 : index
    %c0_52 = arith.constant 0 : index
    %c0_53 = arith.constant 0 : index
    %101 = vector.load %arg6[%c10_51, %c0_52, %c0_53] : memref<15x1x128xbf16, #tpu.memory_space<vmem>>, vector<1x1x128xbf16>
    %102 = vector.shape_cast %101 : vector<1x1x128xbf16> to vector<1x128xbf16>
    %103 = arith.extf %100 : vector<256x1xbf16> to vector<256x1xf32>
    %104 = arith.extf %102 : vector<1x128xbf16> to vector<1x128xf32>
    %105 = vector.broadcast %103 : vector<256x1xf32> to vector<256x128xf32>
    %106 = vector.broadcast %104 : vector<1x128xf32> to vector<256x128xf32>
    %107 = arith.mulf %105, %106 : vector<256x128xf32>
    %108 = arith.addf %99, %107 : vector<256x128xf32>
    %c11 = arith.constant 11 : index
    %c0_54 = arith.constant 0 : index
    %109 = vector.load %arg10[%c11, %c0_54] : memref<512x1xbf16, #tpu.memory_space<vmem>>, vector<256x1xbf16>
    %c11_55 = arith.constant 11 : index
    %c0_56 = arith.constant 0 : index
    %c0_57 = arith.constant 0 : index
    %110 = vector.load %arg6[%c11_55, %c0_56, %c0_57] : memref<15x1x128xbf16, #tpu.memory_space<vmem>>, vector<1x1x128xbf16>
    %111 = vector.shape_cast %110 : vector<1x1x128xbf16> to vector<1x128xbf16>
    %112 = arith.extf %109 : vector<256x1xbf16> to vector<256x1xf32>
    %113 = arith.extf %111 : vector<1x128xbf16> to vector<1x128xf32>
    %114 = vector.broadcast %112 : vector<256x1xf32> to vector<256x128xf32>
    %115 = vector.broadcast %113 : vector<1x128xf32> to vector<256x128xf32>
    %116 = arith.mulf %114, %115 : vector<256x128xf32>
    %117 = arith.addf %108, %116 : vector<256x128xf32>
    %c12 = arith.constant 12 : index
    %c0_58 = arith.constant 0 : index
    %118 = vector.load %arg10[%c12, %c0_58] : memref<512x1xbf16, #tpu.memory_space<vmem>>, vector<256x1xbf16>
    %c12_59 = arith.constant 12 : index
    %c0_60 = arith.constant 0 : index
    %c0_61 = arith.constant 0 : index
    %119 = vector.load %arg6[%c12_59, %c0_60, %c0_61] : memref<15x1x128xbf16, #tpu.memory_space<vmem>>, vector<1x1x128xbf16>
    %120 = vector.shape_cast %119 : vector<1x1x128xbf16> to vector<1x128xbf16>
    %121 = arith.extf %118 : vector<256x1xbf16> to vector<256x1xf32>
    %122 = arith.extf %120 : vector<1x128xbf16> to vector<1x128xf32>
    %123 = vector.broadcast %121 : vector<256x1xf32> to vector<256x128xf32>
    %124 = vector.broadcast %122 : vector<1x128xf32> to vector<256x128xf32>
    %125 = arith.mulf %123, %124 : vector<256x128xf32>
    %126 = arith.addf %117, %125 : vector<256x128xf32>
    %c13 = arith.constant 13 : index
    %c0_62 = arith.constant 0 : index
    %127 = vector.load %arg10[%c13, %c0_62] : memref<512x1xbf16, #tpu.memory_space<vmem>>, vector<256x1xbf16>
    %c13_63 = arith.constant 13 : index
    %c0_64 = arith.constant 0 : index
    %c0_65 = arith.constant 0 : index
    %128 = vector.load %arg6[%c13_63, %c0_64, %c0_65] : memref<15x1x128xbf16, #tpu.memory_space<vmem>>, vector<1x1x128xbf16>
    %129 = vector.shape_cast %128 : vector<1x1x128xbf16> to vector<1x128xbf16>
    %130 = arith.extf %127 : vector<256x1xbf16> to vector<256x1xf32>
    %131 = arith.extf %129 : vector<1x128xbf16> to vector<1x128xf32>
    %132 = vector.broadcast %130 : vector<256x1xf32> to vector<256x128xf32>
    %133 = vector.broadcast %131 : vector<1x128xf32> to vector<256x128xf32>
    %134 = arith.mulf %132, %133 : vector<256x128xf32>
    %135 = arith.addf %126, %134 : vector<256x128xf32>
    %c14 = arith.constant 14 : index
    %c0_66 = arith.constant 0 : index
    %136 = vector.load %arg10[%c14, %c0_66] : memref<512x1xbf16, #tpu.memory_space<vmem>>, vector<256x1xbf16>
    %c14_67 = arith.constant 14 : index
    %c0_68 = arith.constant 0 : index
    %c0_69 = arith.constant 0 : index
    %137 = vector.load %arg6[%c14_67, %c0_68, %c0_69] : memref<15x1x128xbf16, #tpu.memory_space<vmem>>, vector<1x1x128xbf16>
    %138 = vector.shape_cast %137 : vector<1x1x128xbf16> to vector<1x128xbf16>
    %139 = arith.extf %136 : vector<256x1xbf16> to vector<256x1xf32>
    %140 = arith.extf %138 : vector<1x128xbf16> to vector<1x128xf32>
    %141 = vector.broadcast %139 : vector<256x1xf32> to vector<256x128xf32>
    %142 = vector.broadcast %140 : vector<1x128xf32> to vector<256x128xf32>
    %143 = arith.mulf %141, %142 : vector<256x128xf32>
    %144 = arith.addf %135, %143 : vector<256x128xf32>
    %c0_70 = arith.constant 0 : index
    %c0_71 = arith.constant 0 : index
    %145 = vector.load %arg9[%c0_70, %c0_71] : memref<256x128xf32, #tpu.memory_space<vmem>>, vector<256x128xf32>
    %146 = arith.addf %145, %144 : vector<256x128xf32>
    %c0_72 = arith.constant 0 : index
    %c0_73 = arith.constant 0 : index
    %147 = vector.load %arg9[%c0_72, %c0_73] : memref<256x128xf32, #tpu.memory_space<vmem>>, vector<256x128xf32>
    tpu.vector_store %arg9[%c0_72, %c0_73], %146 {strides = array<i32>} : memref<256x128xf32, #tpu.memory_space<vmem>>, vector<256x128xf32>,
    %c0_i32_74 = arith.constant 0 : i32
    %148 = arith.cmpi eq, %arg3, %c0_i32_74 : i32
    %149 = arith.extui %148 : i1 to i32
    %c0_i32_75 = arith.constant 0 : i32
    %150 = arith.cmpi ne, %149, %c0_i32_75 : i32
    scf.if %150 {
      %c0_76 = arith.constant 0 : index
      %c0_77 = arith.constant 0 : index
      %151 = vector.load %arg9[%c0_76, %c0_77] : memref<256x128xf32, #tpu.memory_space<vmem>>, vector<256x128xf32>
      %c0_78 = arith.constant 0 : index
      %c0_79 = arith.constant 0 : index
      %152 = vector.load %arg7[%c0_78, %c0_79] : memref<1x128xf32, #tpu.memory_space<vmem>>, vector<1x128xf32>
      %153 = vector.broadcast %152 : vector<1x128xf32> to vector<256x128xf32>
      %154 = arith.addf %151, %153 : vector<256x128xf32>
      %cst_80 = arith.constant 0.000000e+00 : f32
      %155 = vector.broadcast %cst_80 : f32 to vector<256x128xf32>
      %156 = arith.cmpf oge, %154, %155 : vector<256x128xf32>
      %cst_81 = arith.constant 1.000000e-01 : f32
      %157 = vector.broadcast %cst_81 : f32 to vector<256x128xf32>
      %158 = arith.mulf %154, %157 : vector<256x128xf32>
      %159 = arith.select %156, %154, %158 : vector<256x128xi1>, vector<256x128xf32>
      %160 = arith.truncf %159 : vector<256x128xf32> to vector<256x128xbf16>
      %c0_82 = arith.constant 0 : index
      %c0_83 = arith.constant 0 : index
      %c0_84 = arith.constant 0 : index
      %161 = vector.load %arg8[%c0_82, %c0_83, %c0_84] : memref<1x256x128xbf16, #tpu.memory_space<vmem>>, vector<1x256x128xbf16>
      %162 = vector.shape_cast %161 : vector<1x256x128xbf16> to vector<256x128xbf16>
      %163 = vector.shape_cast %160 : vector<256x128xbf16> to vector<1x256x128xbf16>
      tpu.vector_store %arg8[%c0_82, %c0_83, %c0_84], %163 {strides = array<i32>} : memref<1x256x128xbf16, #tpu.memory_space<vmem>>, vector<1x256x128xbf16>,
    } else {
    }
    return
  }
  func.func @transform_0(%arg0: i32, %arg1: i32, %arg2: i32, %arg3: i32) -> (i32, i32, i32) {
    %c0_i32 = arith.constant 0 : i32
    return %arg0, %arg1, %arg3 : i32, i32, i32
  }
  func.func @transform_1(%arg0: i32, %arg1: i32, %arg2: i32, %arg3: i32) -> (i32, i32, i32) {
    %c1_i32 = arith.constant 1 : i32
    %0 = arith.addi %arg1, %c1_i32 : i32
    %c0_i32 = arith.constant 0 : i32
    return %arg0, %0, %arg3 : i32, i32, i32
  }
  func.func @transform_2(%arg0: i32, %arg1: i32, %arg2: i32, %arg3: i32) -> (i32, i32, i32) {
    %c0_i32 = arith.constant 0 : i32
    %c0_i32_0 = arith.constant 0 : i32
    return %c0_i32, %arg3, %arg2 : i32, i32, i32
  }
  func.func @transform_3(%arg0: i32, %arg1: i32, %arg2: i32, %arg3: i32) -> (i32, i32) {
    %c0_i32 = arith.constant 0 : i32
    %c0_i32_0 = arith.constant 0 : i32
    return %c0_i32, %arg2 : i32, i32
  }
  func.func @transform_4(%arg0: i32, %arg1: i32, %arg2: i32, %arg3: i32) -> (i32, i32, i32) {
    %c0_i32 = arith.constant 0 : i32
    return %arg0, %arg1, %arg2 : i32, i32, i32
  }
}

</mosaic_0001>

<llo_original>
// kernel: tpu_custom_call.1
$region0: #{tpu_custom_call.1}
  #allocation0 [shape = 'u32[]', space=smem, size = 0x4, offset = 0x4, fixed_abs, tag = 'smem constant byte address 0x4 - core index']
  #allocation1 [shape = 'u32[72,128]{1,0:T(1,128)}', space=vmem, size = 0x9000, scoped, tag = 'internal scratch']
  #allocation2 [shape = 'f32[256,128]{1,0:T(8,128)}', space=vmem, size = 0x20000, scoped, tag = 'scratch operand']
  #allocation3 [shape = 'bf16[512,1]{1,0:T(8,128)(2,1)}', space=vmem, size = 0x20000, scoped, tag = 'scratch operand']
  %s0 = inlined_call_operand.vmem [shape: bf16[2,1280,1], index: 0, kind: input, shape index: {}]
  %s1 = inlined_call_operand.vmem [shape: bf16[2,1280,1], index: 1, kind: input, shape index: {}]
  %s2 = inlined_call_operand.vmem [shape: bf16[15,1,128], index: 2, kind: input, shape index: {}]
  %s3 = inlined_call_operand.vmem [shape: f32[1,128], index: 3, kind: input, shape index: {}]
  %s4 = inlined_call_operand.hbm [shape: bf16[2,1024,128], index: 4, kind: output, shape index: {}]
  %s5 = sld [smem:[#allocation0]]
  $region57: #{tpu_custom_call.1} parent=0
    _
  %s7 = ssub.s32 1, %s5
  %s8 = scalar_select 0, %s7, %s5
  $region1: #{tpu_custom_call.1} parent=0
    #allocation4 [shape = 'u8[131072]{0}', space=vmem, size = 0x20000, scoped, tag = 'output window, operand 0']
    #allocation5 [shape = 's32[2]{0}', space=sflag, size = 0x8, scoped, tag = 'scoped memory for tpu_custom_call.1']
    %9 = vsyncpa [#allocation5], 0
    %s10 = scalar_lea.sflag [#allocation5], 1
    %11 = vsyncpa %s10, 0
    loop: start=0, step=1, limit=10
    $region2: #{tpu_custom_call.1} parent=1 // loop_pre_header
      _
    $region3: #{tpu_custom_call.1} parent=1 // loop_header
      %s13 = sphi 0, %s17
      %p14 = scmp.ge.s32.totalorder %s13, 10
      %s20 = sphi 0, %s46
      %s21 = sphi 0, %s42
      %s22 = sphi 0, %s38
      %s23 = sphi 0, %s34
      %s24 = sphi 0, %s20
      %s25 = sphi 0, %s21
      %s26 = sphi 0, %s22
      %s27 = sphi 0, %s23
      %s28 = sphi 0, %s24
      %s29 = sphi 0, %s25
      %s30 = sphi 0, %s26
      %s31 = sphi 0, %s27
      %s53 = sphi 0, %s55
      %s56 = sphi 0, %s53
      %s57 = sphi 0, %s56
      %s73 = sphi 0, %s57
      %s85 = sphi 0, %s87
      %s88 = sphi 0, %s85
      %s89 = sphi 0, %s88
      %s105 = sphi 0, %s89
      %s113 = sphi 0, %s115
      %s116 = sphi 0, %s113
      %s117 = sphi 0, %s116
      %s133 = sphi 0, %s117
      %s139 = sphi 0, %s141
      %s142 = sphi 0, %s139
      %s143 = sphi 0, %s142
      %s159 = sphi 0, %s143
      %s169 = sphi 0, %s171
      %s172 = sphi 0, %s169
      %s173 = sphi 0, %s172
      %s189 = sphi 0, %s173
    $region4: #{tpu_custom_call.1} parent=1 // loop_header_branch
      %16 = sbr.rel (%p14) target = $region8
    $region5: #{tpu_custom_call.1} parent=1 // loop_body
      %s18 = ssub.s32 %s13, 1
      %s19 = ssub.s32 %s13, 2
      %s32 = sadd.s32 1, %s23
      %p33 = scmp.ge.s32.totalorder %s32, 1
      %s34 = scalar_select %p33, 0, %s32
      %s35 = sadd.s32 1, %s22
      %s36 = scalar_select %p33, %s35, %s22
      %p37 = scmp.ge.s32.totalorder %s36, 1
      %s38 = scalar_select %p37, 0, %s36
      %s39 = sadd.s32 1, %s21
      %s40 = scalar_select %p37, %s39, %s21
      %p41 = scmp.ge.s32.totalorder %s40, 4
      %s42 = scalar_select %p41, 0, %s40
      %s43 = sadd.s32 1, %s20
      %s44 = scalar_select %p41, %s43, %s20
      %p45 = scmp.ge.s32.totalorder %s44, 2
      %s46 = scalar_select %p45, 0, %s44
      %s47 = ssub.s32 %s20, %s46
      %s48 = ssub.s32 %s21, %s42
      %s49 = sor.u32 %s47, %s48
      %s50 = ssub.s32 %s23, %s34
      %s51 = sor.u32 %s49, %s50
      %p52 = scmp.eq.s32.totalorder %s51, 0
      %s54 = sadd.s32 %s53, 1
      %s55 = scalar_select %p52, %s53, %s54
      %p58 = pneg %p52
      %p59 = scmp.eq.s32.totalorder %s13, 7
      %p60 = por %p58, %p59
      %p61 = scmp.ne.s32.totalorder %s53, %s56
      %p62 = scmp.eq.s32.totalorder %s13, 0
      %p63 = por %p61, %p62
      %p64 = scmp.ne.s32.totalorder %s53, %s56
      %p65 = scmp.eq.s32.totalorder %s18, 7
      %p66 = por %p64, %p65
      %p67 = scmp.ne.s32.totalorder %s56, %s57
      %p68 = scmp.eq.s32.totalorder %s18, 0
      %p69 = por %p67, %p68
      %p70 = scmp.ne.s32.totalorder %s56, %s57
      %p71 = scmp.eq.s32.totalorder %s19, 7
      %p72 = por %p70, %p71
      %p74 = scmp.ne.s32.totalorder %s57, %s73
      %p75 = scmp.eq.s32.totalorder %s19, 0
      %p76 = por %p74, %p75
      %s77 = sadd.s32 %s21, 1
      %s78 = sadd.s32 %s42, 1
      %s79 = ssub.s32 %s20, %s46
      %s80 = ssub.s32 %s77, %s78
      %s81 = sor.u32 %s79, %s80
      %s82 = ssub.s32 %s23, %s34
      %s83 = sor.u32 %s81, %s82
      %p84 = scmp.eq.s32.totalorder %s83, 0
      %s86 = sadd.s32 %s85, 1
      %s87 = scalar_select %p84, %s85, %s86
      %p90 = pneg %p84
      %p91 = scmp.eq.s32.totalorder %s13, 7
      %p92 = por %p90, %p91
      %p93 = scmp.ne.s32.totalorder %s85, %s88
      %p94 = scmp.eq.s32.totalorder %s13, 0
      %p95 = por %p93, %p94
      %p96 = scmp.ne.s32.totalorder %s85, %s88
      %p97 = scmp.eq.s32.totalorder %s18, 7
      %p98 = por %p96, %p97
      %p99 = scmp.ne.s32.totalorder %s88, %s89
      %p100 = scmp.eq.s32.totalorder %s18, 0
      %p101 = por %p99, %p100
      %p102 = scmp.ne.s32.totalorder %s88, %s89
      %p103 = scmp.eq.s32.totalorder %s19, 7
      %p104 = por %p102, %p103
      %p106 = scmp.ne.s32.totalorder %s89, %s105
      %p107 = scmp.eq.s32.totalorder %s19, 0
      %p108 = por %p106, %p107
      %s109 = ssub.s32 %s23, %s34
      %s110 = ssub.s32 %s22, %s38
      %s111 = sor.u32 %s109, %s110
      %p112 = scmp.eq.s32.totalorder %s111, 0
      %s114 = sadd.s32 %s113, 1
      %s115 = scalar_select %p112, %s113, %s114
      %p118 = pneg %p112
      %p119 = scmp.eq.s32.totalorder %s13, 7
      %p120 = por %p118, %p119
      %p121 = scmp.ne.s32.totalorder %s113, %s116
      %p122 = scmp.eq.s32.totalorder %s13, 0
      %p123 = por %p121, %p122
      %p124 = scmp.ne.s32.totalorder %s113, %s116
      %p125 = scmp.eq.s32.totalorder %s18, 7
      %p126 = por %p124, %p125
      %p127 = scmp.ne.s32.totalorder %s116, %s117
      %p128 = scmp.eq.s32.totalorder %s18, 0
      %p129 = por %p127, %p128
      %p130 = scmp.ne.s32.totalorder %s116, %s117
      %p131 = scmp.eq.s32.totalorder %s19, 7
      %p132 = por %p130, %p131
      %p134 = scmp.ne.s32.totalorder %s117, %s133
      %p135 = scmp.eq.s32.totalorder %s19, 0
      %p136 = por %p134, %p135
      %s137 = ssub.s32 %s22, %s38
      %p138 = scmp.eq.s32.totalorder %s137, 0
      %s140 = sadd.s32 %s139, 1
      %s141 = scalar_select %p138, %s139, %s140
      %p144 = pneg %p138
      %p145 = scmp.eq.s32.totalorder %s13, 7
      %p146 = por %p144, %p145
      %p147 = scmp.ne.s32.totalorder %s139, %s142
      %p148 = scmp.eq.s32.totalorder %s13, 0
      %p149 = por %p147, %p148
      %p150 = scmp.ne.s32.totalorder %s139, %s142
      %p151 = scmp.eq.s32.totalorder %s18, 7
      %p152 = por %p150, %p151
      %p153 = scmp.ne.s32.totalorder %s142, %s143
      %p154 = scmp.eq.s32.totalorder %s18, 0
      %p155 = por %p153, %p154
      %p156 = scmp.ne.s32.totalorder %s142, %s143
      %p157 = scmp.eq.s32.totalorder %s19, 7
      %p158 = por %p156, %p157
      %p160 = scmp.ne.s32.totalorder %s143, %s159
      %p161 = scmp.eq.s32.totalorder %s19, 0
      %p162 = por %p160, %p161
      %s163 = ssub.s32 %s20, %s46
      %s164 = ssub.s32 %s21, %s42
      %s165 = sor.u32 %s163, %s164
      %s166 = ssub.s32 %s22, %s38
      %s167 = sor.u32 %s165, %s166
      %p168 = scmp.eq.s32.totalorder %s167, 0
      %s170 = sadd.s32 %s169, 1
      %s171 = scalar_select %p168, %s169, %s170
      %p174 = pneg %p168
      %p175 = scmp.eq.s32.totalorder %s13, 7
      %p176 = por %p174, %p175
      %p177 = scmp.ne.s32.totalorder %s169, %s172
      %p178 = scmp.eq.s32.totalorder %s13, 0
      %p179 = por %p177, %p178
      %p180 = scmp.ne.s32.totalorder %s169, %s172
      %p181 = scmp.eq.s32.totalorder %s18, 7
      %p182 = por %p180, %p181
      %p183 = scmp.ne.s32.totalorder %s172, %s173
      %p184 = scmp.eq.s32.totalorder %s18, 0
      %p185 = por %p183, %p184
      %p186 = scmp.ne.s32.totalorder %s172, %s173
      %p187 = scmp.eq.s32.totalorder %s19, 7
      %p188 = por %p186, %p187
      %p190 = scmp.ne.s32.totalorder %s173, %s189
      %p191 = scmp.eq.s32.totalorder %s19, 0
      %p192 = por %p190, %p191
      %p193 = scmp.le.s32.totalorder 1, %s13
      %p194 = scmp.lt.s32.totalorder %s13, 9
      %p195 = pnand %p193, %p194
      %p196 = pneg %p195
      // Predicated region
      $region9: #{tpu_custom_call.1} parent=5 // pred_check
        _
      $region10: #{tpu_custom_call.1} parent=5 // pred_check_branch
        %198 = sbr.rel (%p195) target = $region12
      $region11: #{tpu_custom_call.1} parent=5 // pred_region
        %s199 = ssub.s32 %s13, 1
        // Predicated region
        $region13: #{tpu_custom_call.1} parent=11 // pred_check
          %p200 = pneg %p129
        $region14: #{tpu_custom_call.1} parent=11 // pred_check_branch
          %202 = sbr.rel (%p200) target = $region16
        $region15: #{tpu_custom_call.1} parent=11 // pred_region
          %p203 = scmp.lt.s32.totalorder %s27, 0
          %s204 = scalar_select %p203, %s27, 0
          %p205 = scmp.lt.s32.totalorder %s26, 0
          %s206 = scalar_select %p205, %s26, 0
          %s207 = sadd.s32 %s206, %s204
          %s208 = scalar_lea.vmem %s2, %s207
        $region16: #{tpu_custom_call.1} parent=11 // pred_fallthru
          _
        // Predicated region
        $region17: #{tpu_custom_call.1} parent=11 // pred_check
          %p209 = pneg %p155
        $region18: #{tpu_custom_call.1} parent=11 // pred_check_branch
          %211 = sbr.rel (%p209) target = $region20
        $region19: #{tpu_custom_call.1} parent=11 // pred_region
          %p212 = scmp.lt.s32.totalorder %s26, 0
          %s213 = scalar_select %p212, %s26, 0
          %s214 = scalar_lea.vmem %s3, %s213
        $region20: #{tpu_custom_call.1} parent=11 // pred_fallthru
          _
      $region12: #{tpu_custom_call.1} parent=5 // pred_fallthru
        _
      %p215 = scmp.lt.s32.totalorder %s13, 8
      // Predicated region
      $region21: #{tpu_custom_call.1} parent=5 // pred_check
        %p216 = pneg %p215
      $region22: #{tpu_custom_call.1} parent=5 // pred_check_branch
        %218 = sbr.rel (%p216) target = $region24
      $region23: #{tpu_custom_call.1} parent=5 // pred_region
        // Predicated region
        $region25: #{tpu_custom_call.1} parent=23 // pred_check
          %p219 = pneg %p63
        $region26: #{tpu_custom_call.1} parent=23 // pred_check_branch
          %221 = sbr.rel (%p219) target = $region28
        $region27: #{tpu_custom_call.1} parent=23 // pred_region
          %s222 = smul.u32 32, %s21
          %p223 = scmp.lt.s32.totalorder %s20, 1
          %s224 = scalar_select %p223, %s20, 1
          %p225 = scmp.lt.s32.totalorder %s222, 159
          %s226 = scalar_select %p225, %s222, 159
          %p227 = scmp.lt.s32.totalorder %s23, 0
          %s228 = scalar_select %p227, %s23, 0
          %s229 = sadd.s32 %s228, %s226
          %s230 = smul.addr %s224, 160
          %s231 = sadd.s32 %s229, %s230
          %s232 = smul.addr %s231, 4
          %s233 = scalar_lea.vmem %s0, %s232
          %s234 = smul.u32 32, %s21
        $region28: #{tpu_custom_call.1} parent=23 // pred_fallthru
          _
        // Predicated region
        $region29: #{tpu_custom_call.1} parent=23 // pred_check
          %p235 = pneg %p95
        $region30: #{tpu_custom_call.1} parent=23 // pred_check_branch
          %237 = sbr.rel (%p235) target = $region32
        $region31: #{tpu_custom_call.1} parent=23 // pred_region
          %s238 = sadd.s32 %s21, 1
          %s239 = smul.u32 32, %s238
          %p240 = scmp.lt.s32.totalorder %s20, 1
          %s241 = scalar_select %p240, %s20, 1
          %p242 = scmp.lt.s32.totalorder %s239, 159
          %s243 = scalar_select %p242, %s239, 159
          %p244 = scmp.lt.s32.totalorder %s23, 0
          %s245 = scalar_select %p244, %s23, 0
          %s246 = sadd.s32 %s245, %s243
          %s247 = smul.addr %s241, 160
          %s248 = sadd.s32 %s246, %s247
          %s249 = smul.addr %s248, 4
          %s250 = scalar_lea.vmem %s1, %s249
          %s251 = sadd.s32 %s21, 1
          %s252 = smul.u32 32, %s251
        $region32: #{tpu_custom_call.1} parent=23 // pred_fallthru
          _
      $region24: #{tpu_custom_call.1} parent=5 // pred_fallthru
        _
      %p253 = scmp.le.s32.totalorder 1, %s13
      %p254 = scmp.lt.s32.totalorder %s13, 9
      %p255 = pnand %p253, %p254
      %p256 = pneg %p255
      // Predicated region
      $region33: #{tpu_custom_call.1} parent=5 // pred_check
        _
      $region34: #{tpu_custom_call.1} parent=5 // pred_check_branch
        %258 = sbr.rel (%p255) target = $region36
      $region35: #{tpu_custom_call.1} parent=5 // pred_region
        %s259 = ssub.s32 %s13, 1
        %s260 = smul.u32 32, %s25
        %p261 = scmp.lt.s32.totalorder %s24, 1
        %s262 = scalar_select %p261, %s24, 1
        %p263 = scmp.lt.s32.totalorder %s260, 159
        %s264 = scalar_select %p263, %s260, 159
        %p265 = scmp.lt.s32.totalorder %s27, 0
        %s266 = scalar_select %p265, %s27, 0
        %s267 = sadd.s32 %s266, %s264
        %s268 = smul.addr %s262, 160
        %s269 = sadd.s32 %s267, %s268
        %s270 = smul.addr %s269, 4
        %s271 = scalar_lea.vmem %s0, %s270
        %p272 = pneg %p69
        %p273 = pneg %p66
        %s274 = sadd.s32 %s25, 1
        %s275 = smul.u32 32, %s274
        %p276 = scmp.lt.s32.totalorder %s24, 1
        %s277 = scalar_select %p276, %s24, 1
        %p278 = scmp.lt.s32.totalorder %s275, 159
        %s279 = scalar_select %p278, %s275, 159
        %p280 = scmp.lt.s32.totalorder %s27, 0
        %s281 = scalar_select %p280, %s27, 0
        %s282 = sadd.s32 %s281, %s279
        %s283 = smul.addr %s277, 160
        %s284 = sadd.s32 %s282, %s283
        %s285 = smul.addr %s284, 4
        %s286 = scalar_lea.vmem %s1, %s285
        %p287 = pneg %p101
        %p288 = pneg %p98
        %p289 = scmp.lt.s32.totalorder %s27, 0
        %s290 = scalar_select %p289, %s27, 0
        %p291 = scmp.lt.s32.totalorder %s26, 0
        %s292 = scalar_select %p291, %s26, 0
        %s293 = sadd.s32 %s292, %s290
        %s294 = scalar_lea.vmem %s2, %s293
        %p295 = pneg %p129
        %p296 = pneg %p126
        %p297 = scmp.lt.s32.totalorder %s26, 0
        %s298 = scalar_select %p297, %s26, 0
        %s299 = scalar_lea.vmem %s3, %s298
        %p300 = pneg %p155
        %p301 = pneg %p152
        %p302 = pneg %p185
        %p303 = pneg %p182
        %s304 = sand.u32 %s172, 1
        %s305 = scalar_lea.sflag [#allocation5], %s304
        %s306 = sand.u32 %s172, 1
        %s307 = smul.addr %s306, 128
        %s308 = scalar_lea.vmem [#allocation4], %s307
        %s309 = smul.u32 32, %s25
        %p310 = scmp.lt.s32.totalorder %s24, 1
        %s311 = scalar_select %p310, %s24, 1
        %p312 = scmp.lt.s32.totalorder %s309, 159
        %s313 = scalar_select %p312, %s309, 159
        %p314 = scmp.lt.s32.totalorder %s27, 0
        %s315 = scalar_select %p314, %s27, 0
        %s316 = sadd.s32 %s315, %s313
        %s317 = smul.addr %s311, 160
        %s318 = sadd.s32 %s316, %s317
        %s319 = smul.addr %s318, 4
        %s320 = scalar_lea.vmem %s0, %s319
        %s321 = smul.u32 32, %s25
        %s322 = sadd.s32 %s25, 1
        %s323 = smul.u32 32, %s322
        %p324 = scmp.lt.s32.totalorder %s24, 1
        %s325 = scalar_select %p324, %s24, 1
        %p326 = scmp.lt.s32.totalorder %s323, 159
        %s327 = scalar_select %p326, %s323, 159
        %p328 = scmp.lt.s32.totalorder %s27, 0
        %s329 = scalar_select %p328, %s27, 0
        %s330 = sadd.s32 %s329, %s327
        %s331 = smul.addr %s325, 160
        %s332 = sadd.s32 %s330, %s331
        %s333 = smul.addr %s332, 4
        %s334 = scalar_lea.vmem %s1, %s333
        %s335 = sadd.s32 %s25, 1
        %s336 = smul.u32 32, %s335
        %p337 = scmp.lt.s32.totalorder %s27, 0
        %s338 = scalar_select %p337, %s27, 0
        %p339 = scmp.lt.s32.totalorder %s26, 0
        %s340 = scalar_select %p339, %s26, 0
        %s341 = sadd.s32 %s340, %s338
        %s342 = scalar_lea.vmem %s2, %s341
        %p343 = scmp.lt.s32.totalorder %s26, 0
        %s344 = scalar_select %p343, %s26, 0
        %s345 = scalar_lea.vmem %s3, %s344
        %s346 = smul.u32 32, %s25
        %p347 = scmp.eq.s32.totalorder %s27, 0
        // Predicated region
        $region37: #{tpu_custom_call.1} parent=35 // pred_check
          %p348 = pneg %p347
        $region38: #{tpu_custom_call.1} parent=35 // pred_check_branch
          %350 = sbr.rel (%p348) target = $region40
        $region39: #{tpu_custom_call.1} parent=35 // pred_region
          %351 = vst [vmem:[#allocation2] sm:$0xff] 0.0
          %352 = vst [vmem:[#allocation2 + $0x8] sm:$0xff] 0.0
          %353 = vst [vmem:[#allocation2 + $0x10] sm:$0xff] 0.0
          %354 = vst [vmem:[#allocation2 + $0x18] sm:$0xff] 0.0
          %355 = vst [vmem:[#allocation2 + $0x20] sm:$0xff] 0.0
          %356 = vst [vmem:[#allocation2 + $0x28] sm:$0xff] 0.0
          %357 = vst [vmem:[#allocation2 + $0x30] sm:$0xff] 0.0
          %358 = vst [vmem:[#allocation2 + $0x38] sm:$0xff] 0.0
          %359 = vst [vmem:[#allocation2 + $0x40] sm:$0xff] 0.0
          %360 = vst [vmem:[#allocation2 + $0x48] sm:$0xff] 0.0
          %361 = vst [vmem:[#allocation2 + $0x50] sm:$0xff] 0.0
          %362 = vst [vmem:[#allocation2 + $0x58] sm:$0xff] 0.0
          %363 = vst [vmem:[#allocation2 + $0x60] sm:$0xff] 0.0
          %364 = vst [vmem:[#allocation2 + $0x68] sm:$0xff] 0.0
          %365 = vst [vmem:[#allocation2 + $0x70] sm:$0xff] 0.0
          %366 = vst [vmem:[#allocation2 + $0x78] sm:$0xff] 0.0
          %367 = vst [vmem:[#allocation2 + $0x80] sm:$0xff] 0.0
          %368 = vst [vmem:[#allocation2 + $0x88] sm:$0xff] 0.0
          %369 = vst [vmem:[#allocation2 + $0x90] sm:$0xff] 0.0
          %370 = vst [vmem:[#allocation2 + $0x98] sm:$0xff] 0.0
          %371 = vst [vmem:[#allocation2 + $0xa0] sm:$0xff] 0.0
          %372 = vst [vmem:[#allocation2 + $0xa8] sm:$0xff] 0.0
          %373 = vst [vmem:[#allocation2 + $0xb0] sm:$0xff] 0.0
          %374 = vst [vmem:[#allocation2 + $0xb8] sm:$0xff] 0.0
          %375 = vst [vmem:[#allocation2 + $0xc0] sm:$0xff] 0.0
          %376 = vst [vmem:[#allocation2 + $0xc8] sm:$0xff] 0.0
          %377 = vst [vmem:[#allocation2 + $0xd0] sm:$0xff] 0.0
          %378 = vst [vmem:[#allocation2 + $0xd8] sm:$0xff] 0.0
          %379 = vst [vmem:[#allocation2 + $0xe0] sm:$0xff] 0.0
          %380 = vst [vmem:[#allocation2 + $0xe8] sm:$0xff] 0.0
          %381 = vst [vmem:[#allocation2 + $0xf0] sm:$0xff] 0.0
          %382 = vst [vmem:[#allocation2 + $0xf8] sm:$0xff] 0.0
        $region40: #{tpu_custom_call.1} parent=35 // pred_fallthru
          _
        %v383 = vld [vmem:[%s320] sm:$0xf]
        %v384 = vld [vmem:[%s320 + $0x4] sm:$0xf]
        %v385 = vld [vmem:[%s320 + $0x8] sm:$0xf]
        %v386 = vld [vmem:[%s320 + $0xc] sm:$0xf]
        %v387 = vld [vmem:[%s320 + $0x10] sm:$0xf]
        %v388 = vld [vmem:[%s320 + $0x14] sm:$0xf]
        %v389 = vld [vmem:[%s320 + $0x18] sm:$0xf]
        %v390 = vld [vmem:[%s320 + $0x1c] sm:$0xf]
        %v391 = vld [vmem:[%s320 + $0x20] sm:$0xf]
        %v392 = vld [vmem:[%s320 + $0x24] sm:$0xf]
        %v393 = vld [vmem:[%s320 + $0x28] sm:$0xf]
        %v394 = vld [vmem:[%s320 + $0x2c] sm:$0xf]
        %v395 = vld [vmem:[%s320 + $0x30] sm:$0xf]
        %v396 = vld [vmem:[%s320 + $0x34] sm:$0xf]
        %v397 = vld [vmem:[%s320 + $0x38] sm:$0xf]
        %v398 = vld [vmem:[%s320 + $0x3c] sm:$0xf]
        %v399 = vld [vmem:[%s320 + $0x40] sm:$0xf]
        %v400 = vld [vmem:[%s320 + $0x44] sm:$0xf]
        %v401 = vld [vmem:[%s320 + $0x48] sm:$0xf]
        %v402 = vld [vmem:[%s320 + $0x4c] sm:$0xf]
        %v403 = vld [vmem:[%s320 + $0x50] sm:$0xf]
        %v404 = vld [vmem:[%s320 + $0x54] sm:$0xf]
        %v405 = vld [vmem:[%s320 + $0x58] sm:$0xf]
        %v406 = vld [vmem:[%s320 + $0x5c] sm:$0xf]
        %v407 = vld [vmem:[%s320 + $0x60] sm:$0xf]
        %v408 = vld [vmem:[%s320 + $0x64] sm:$0xf]
        %v409 = vld [vmem:[%s320 + $0x68] sm:$0xf]
        %v410 = vld [vmem:[%s320 + $0x6c] sm:$0xf]
        %v411 = vld [vmem:[%s320 + $0x70] sm:$0xf]
        %v412 = vld [vmem:[%s320 + $0x74] sm:$0xf]
        %v413 = vld [vmem:[%s320 + $0x78] sm:$0xf]
        %v414 = vld [vmem:[%s320 + $0x7c] sm:$0xf]
        %vm415 = vcmask 3072
        %416 = vst.msk [vmem:[#allocation3] sm:$0xf] %vm415, %v383
        %417 = vst.msk [vmem:[#allocation3 + $0x4] sm:$0xf] %vm415, %v384
        %418 = vst.msk [vmem:[#allocation3 + $0x8] sm:$0xf] %vm415, %v385
        %419 = vst.msk [vmem:[#allocation3 + $0xc] sm:$0xf] %vm415, %v386
        %420 = vst.msk [vmem:[#allocation3 + $0x10] sm:$0xf] %vm415, %v387
        %421 = vst.msk [vmem:[#allocation3 + $0x14] sm:$0xf] %vm415, %v388
        %422 = vst.msk [vmem:[#allocation3 + $0x18] sm:$0xf] %vm415, %v389
        %423 = vst.msk [vmem:[#allocation3 + $0x1c] sm:$0xf] %vm415, %v390
        %424 = vst.msk [vmem:[#allocation3 + $0x20] sm:$0xf] %vm415, %v391
        %425 = vst.msk [vmem:[#allocation3 + $0x24] sm:$0xf] %vm415, %v392
        %426 = vst.msk [vmem:[#allocation3 + $0x28] sm:$0xf] %vm415, %v393
        %427 = vst.msk [vmem:[#allocation3 + $0x2c] sm:$0xf] %vm415, %v394
        %428 = vst.msk [vmem:[#allocation3 + $0x30] sm:$0xf] %vm415, %v395
        %429 = vst.msk [vmem:[#allocation3 + $0x34] sm:$0xf] %vm415, %v396
        %430 = vst.msk [vmem:[#allocation3 + $0x38] sm:$0xf] %vm415, %v397
        %431 = vst.msk [vmem:[#allocation3 + $0x3c] sm:$0xf] %vm415, %v398
        %432 = vst.msk [vmem:[#allocation3 + $0x40] sm:$0xf] %vm415, %v399
        %433 = vst.msk [vmem:[#allocation3 + $0x44] sm:$0xf] %vm415, %v400
        %434 = vst.msk [vmem:[#allocation3 + $0x48] sm:$0xf] %vm415, %v401
        %435 = vst.msk [vmem:[#allocation3 + $0x4c] sm:$0xf] %vm415, %v402
        %436 = vst.msk [vmem:[#allocation3 + $0x50] sm:$0xf] %vm415, %v403
        %437 = vst.msk [vmem:[#allocation3 + $0x54] sm:$0xf] %vm415, %v404
        %438 = vst.msk [vmem:[#allocation3 + $0x58] sm:$0xf] %vm415, %v405
        %439 = vst.msk [vmem:[#allocation3 + $0x5c] sm:$0xf] %vm415, %v406
        %440 = vst.msk [vmem:[#allocation3 + $0x60] sm:$0xf] %vm415, %v407
        %441 = vst.msk [vmem:[#allocation3 + $0x64] sm:$0xf] %vm415, %v408
        %442 = vst.msk [vmem:[#allocation3 + $0x68] sm:$0xf] %vm415, %v409
        %443 = vst.msk [vmem:[#allocation3 + $0x6c] sm:$0xf] %vm415, %v410
        %444 = vst.msk [vmem:[#allocation3 + $0x70] sm:$0xf] %vm415, %v411
        %445 = vst.msk [vmem:[#allocation3 + $0x74] sm:$0xf] %vm415, %v412
        %446 = vst.msk [vmem:[#allocation3 + $0x78] sm:$0xf] %vm415, %v413
        %447 = vst.msk [vmem:[#allocation3 + $0x7c] sm:$0xf] %vm415, %v414
        %v448 = vld [vmem:[%s334] sm:$0xf]
        %v449 = vld [vmem:[%s334 + $0x4] sm:$0xf]
        %v450 = vld [vmem:[%s334 + $0x8] sm:$0xf]
        %v451 = vld [vmem:[%s334 + $0xc] sm:$0xf]
        %v452 = vld [vmem:[%s334 + $0x10] sm:$0xf]
        %v453 = vld [vmem:[%s334 + $0x14] sm:$0xf]
        %v454 = vld [vmem:[%s334 + $0x18] sm:$0xf]
        %v455 = vld [vmem:[%s334 + $0x1c] sm:$0xf]
        %v456 = vld [vmem:[%s334 + $0x20] sm:$0xf]
        %v457 = vld [vmem:[%s334 + $0x24] sm:$0xf]
        %v458 = vld [vmem:[%s334 + $0x28] sm:$0xf]
        %v459 = vld [vmem:[%s334 + $0x2c] sm:$0xf]
        %v460 = vld [vmem:[%s334 + $0x30] sm:$0xf]
        %v461 = vld [vmem:[%s334 + $0x34] sm:$0xf]
        %v462 = vld [vmem:[%s334 + $0x38] sm:$0xf]
        %v463 = vld [vmem:[%s334 + $0x3c] sm:$0xf]
        %v464 = vld [vmem:[%s334 + $0x40] sm:$0xf]
        %v465 = vld [vmem:[%s334 + $0x44] sm:$0xf]
        %v466 = vld [vmem:[%s334 + $0x48] sm:$0xf]
        %v467 = vld [vmem:[%s334 + $0x4c] sm:$0xf]
        %v468 = vld [vmem:[%s334 + $0x50] sm:$0xf]
        %v469 = vld [vmem:[%s334 + $0x54] sm:$0xf]
        %v470 = vld [vmem:[%s334 + $0x58] sm:$0xf]
        %v471 = vld [vmem:[%s334 + $0x5c] sm:$0xf]
        %v472 = vld [vmem:[%s334 + $0x60] sm:$0xf]
        %v473 = vld [vmem:[%s334 + $0x64] sm:$0xf]
        %v474 = vld [vmem:[%s334 + $0x68] sm:$0xf]
        %v475 = vld [vmem:[%s334 + $0x6c] sm:$0xf]
        %v476 = vld [vmem:[%s334 + $0x70] sm:$0xf]
        %v477 = vld [vmem:[%s334 + $0x74] sm:$0xf]
        %v478 = vld [vmem:[%s334 + $0x78] sm:$0xf]
        %v479 = vld [vmem:[%s334 + $0x7c] sm:$0xf]
        %480 = vst.msk [vmem:[#allocation3 + $0x80] sm:$0xf] %vm415, %v448
        %481 = vst.msk [vmem:[#allocation3 + $0x84] sm:$0xf] %vm415, %v449
        %482 = vst.msk [vmem:[#allocation3 + $0x88] sm:$0xf] %vm415, %v450
        %483 = vst.msk [vmem:[#allocation3 + $0x8c] sm:$0xf] %vm415, %v451
        %484 = vst.msk [vmem:[#allocation3 + $0x90] sm:$0xf] %vm415, %v452
        %485 = vst.msk [vmem:[#allocation3 + $0x94] sm:$0xf] %vm415, %v453
        %486 = vst.msk [vmem:[#allocation3 + $0x98] sm:$0xf] %vm415, %v454
        %487 = vst.msk [vmem:[#allocation3 + $0x9c] sm:$0xf] %vm415, %v455
        %488 = vst.msk [vmem:[#allocation3 + $0xa0] sm:$0xf] %vm415, %v456
        %489 = vst.msk [vmem:[#allocation3 + $0xa4] sm:$0xf] %vm415, %v457
        %490 = vst.msk [vmem:[#allocation3 + $0xa8] sm:$0xf] %vm415, %v458
        %491 = vst.msk [vmem:[#allocation3 + $0xac] sm:$0xf] %vm415, %v459
        %492 = vst.msk [vmem:[#allocation3 + $0xb0] sm:$0xf] %vm415, %v460
        %493 = vst.msk [vmem:[#allocation3 + $0xb4] sm:$0xf] %vm415, %v461
        %494 = vst.msk [vmem:[#allocation3 + $0xb8] sm:$0xf] %vm415, %v462
        %495 = vst.msk [vmem:[#allocation3 + $0xbc] sm:$0xf] %vm415, %v463
        %496 = vst.msk [vmem:[#allocation3 + $0xc0] sm:$0xf] %vm415, %v464
        %497 = vst.msk [vmem:[#allocation3 + $0xc4] sm:$0xf] %vm415, %v465
        %498 = vst.msk [vmem:[#allocation3 + $0xc8] sm:$0xf] %vm415, %v466
        %499 = vst.msk [vmem:[#allocation3 + $0xcc] sm:$0xf] %vm415, %v467
        %500 = vst.msk [vmem:[#allocation3 + $0xd0] sm:$0xf] %vm415, %v468
        %501 = vst.msk [vmem:[#allocation3 + $0xd4] sm:$0xf] %vm415, %v469
        %502 = vst.msk [vmem:[#allocation3 + $0xd8] sm:$0xf] %vm415, %v470
        %503 = vst.msk [vmem:[#allocation3 + $0xdc] sm:$0xf] %vm415, %v471
        %504 = vst.msk [vmem:[#allocation3 + $0xe0] sm:$0xf] %vm415, %v472
        %505 = vst.msk [vmem:[#allocation3 + $0xe4] sm:$0xf] %vm415, %v473
        %506 = vst.msk [vmem:[#allocation3 + $0xe8] sm:$0xf] %vm415, %v474
        %507 = vst.msk [vmem:[#allocation3 + $0xec] sm:$0xf] %vm415, %v475
        %508 = vst.msk [vmem:[#allocation3 + $0xf0] sm:$0xf] %vm415, %v476
        %509 = vst.msk [vmem:[#allocation3 + $0xf4] sm:$0xf] %vm415, %v477
        %510 = vst.msk [vmem:[#allocation3 + $0xf8] sm:$0xf] %vm415, %v478
        %511 = vst.msk [vmem:[#allocation3 + $0xfc] sm:$0xf] %vm415, %v479
        %v512 = vld [vmem:[#allocation3] sm:$0xf]
        %v513 = vld [vmem:[#allocation3 + $0x4] sm:$0xf]
        %v514 = vld [vmem:[#allocation3 + $0x8] sm:$0xf]
        %v515 = vld [vmem:[#allocation3 + $0xc] sm:$0xf]
        %v516 = vld [vmem:[#allocation3 + $0x10] sm:$0xf]
        %v517 = vld [vmem:[#allocation3 + $0x14] sm:$0xf]
        %v518 = vld [vmem:[#allocation3 + $0x18] sm:$0xf]
        %v519 = vld [vmem:[#allocation3 + $0x1c] sm:$0xf]
        %v520 = vld [vmem:[#allocation3 + $0x20] sm:$0xf]
        %v521 = vld [vmem:[#allocation3 + $0x24] sm:$0xf]
        %v522 = vld [vmem:[#allocation3 + $0x28] sm:$0xf]
        %v523 = vld [vmem:[#allocation3 + $0x2c] sm:$0xf]
        %v524 = vld [vmem:[#allocation3 + $0x30] sm:$0xf]
        %v525 = vld [vmem:[#allocation3 + $0x34] sm:$0xf]
        %v526 = vld [vmem:[#allocation3 + $0x38] sm:$0xf]
        %v527 = vld [vmem:[#allocation3 + $0x3c] sm:$0xf]
        %v528 = vld [vmem:[#allocation3 + $0x40] sm:$0xf]
        %v529 = vld [vmem:[#allocation3 + $0x44] sm:$0xf]
        %v530 = vld [vmem:[#allocation3 + $0x48] sm:$0xf]
        %v531 = vld [vmem:[#allocation3 + $0x4c] sm:$0xf]
        %v532 = vld [vmem:[#allocation3 + $0x50] sm:$0xf]
        %v533 = vld [vmem:[#allocation3 + $0x54] sm:$0xf]
        %v534 = vld [vmem:[#allocation3 + $0x58] sm:$0xf]
        %v535 = vld [vmem:[#allocation3 + $0x5c] sm:$0xf]
        %v536 = vld [vmem:[#allocation3 + $0x60] sm:$0xf]
        %v537 = vld [vmem:[#allocation3 + $0x64] sm:$0xf]
        %v538 = vld [vmem:[#allocation3 + $0x68] sm:$0xf]
        %v539 = vld [vmem:[#allocation3 + $0x6c] sm:$0xf]
        %v540 = vld [vmem:[#allocation3 + $0x70] sm:$0xf]
        %v541 = vld [vmem:[#allocation3 + $0x74] sm:$0xf]
        %v542 = vld [vmem:[#allocation3 + $0x78] sm:$0xf]
        %v543 = vld [vmem:[#allocation3 + $0x7c] sm:$0xf]
        %v544 = vld [vmem:[%s342] sm:$0x1]
        %v545 = vunpack.c.l.bf16 %v512
        %v546 = vunpack.c.l.bf16 %v513
        %v547 = vunpack.c.l.bf16 %v514
        %v548 = vunpack.c.l.bf16 %v515
        %v549 = vunpack.c.l.bf16 %v516
        %v550 = vunpack.c.l.bf16 %v517
        %v551 = vunpack.c.l.bf16 %v518
        %v552 = vunpack.c.l.bf16 %v519
        %v553 = vunpack.c.l.bf16 %v520
        %v554 = vunpack.c.l.bf16 %v521
        %v555 = vunpack.c.l.bf16 %v522
        %v556 = vunpack.c.l.bf16 %v523
        %v557 = vunpack.c.l.bf16 %v524
        %v558 = vunpack.c.l.bf16 %v525
        %v559 = vunpack.c.l.bf16 %v526
        %v560 = vunpack.c.l.bf16 %v527
        %v561 = vunpack.c.l.bf16 %v528
        %v562 = vunpack.c.l.bf16 %v529
        %v563 = vunpack.c.l.bf16 %v530
        %v564 = vunpack.c.l.bf16 %v531
        %v565 = vunpack.c.l.bf16 %v532
        %v566 = vunpack.c.l.bf16 %v533
        %v567 = vunpack.c.l.bf16 %v534
        %v568 = vunpack.c.l.bf16 %v535
        %v569 = vunpack.c.l.bf16 %v536
        %v570 = vunpack.c.l.bf16 %v537
        %v571 = vunpack.c.l.bf16 %v538
        %v572 = vunpack.c.l.bf16 %v539
        %v573 = vunpack.c.l.bf16 %v540
        %v574 = vunpack.c.l.bf16 %v541
        %v575 = vunpack.c.l.bf16 %v542
        %v576 = vunpack.c.l.bf16 %v543
        %v577 = vunpack.c.l.bf16 %v544
        %579 = vset.pattern.permute.xlu0 0
        %580 = vperm.xlu0 %579, %v545
        %v581 = vpop.permute.xlu0 %580
        %584 = vset.pattern.permute.xlu0 0
        %585 = vperm.xlu0 %584, %v546
        %v586 = vpop.permute.xlu0 %585
        %589 = vset.pattern.permute.xlu0 0
        %590 = vperm.xlu0 %589, %v547
        %v591 = vpop.permute.xlu0 %590
        %594 = vset.pattern.permute.xlu0 0
        %595 = vperm.xlu0 %594, %v548
        %v596 = vpop.permute.xlu0 %595
        %599 = vset.pattern.permute.xlu0 0
        %600 = vperm.xlu0 %599, %v549
        %v601 = vpop.permute.xlu0 %600
        %604 = vset.pattern.permute.xlu0 0
        %605 = vperm.xlu0 %604, %v550
        %v606 = vpop.permute.xlu0 %605
        %609 = vset.pattern.permute.xlu0 0
        %610 = vperm.xlu0 %609, %v551
        %v611 = vpop.permute.xlu0 %610
        %614 = vset.pattern.permute.xlu0 0
        %615 = vperm.xlu0 %614, %v552
        %v616 = vpop.permute.xlu0 %615
        %619 = vset.pattern.permute.xlu0 0
        %620 = vperm.xlu0 %619, %v553
        %v621 = vpop.permute.xlu0 %620
        %624 = vset.pattern.permute.xlu0 0
        %625 = vperm.xlu0 %624, %v554
        %v626 = vpop.permute.xlu0 %625
        %629 = vset.pattern.permute.xlu0 0
        %630 = vperm.xlu0 %629, %v555
        %v631 = vpop.permute.xlu0 %630
        %634 = vset.pattern.permute.xlu0 0
        %635 = vperm.xlu0 %634, %v556
        %v636 = vpop.permute.xlu0 %635
        %639 = vset.pattern.permute.xlu0 0
        %640 = vperm.xlu0 %639, %v557
        %v641 = vpop.permute.xlu0 %640
        %644 = vset.pattern.permute.xlu0 0
        %645 = vperm.xlu0 %644, %v558
        %v646 = vpop.permute.xlu0 %645
        %649 = vset.pattern.permute.xlu0 0
        %650 = vperm.xlu0 %649, %v559
        %v651 = vpop.permute.xlu0 %650
        %654 = vset.pattern.permute.xlu0 0
        %655 = vperm.xlu0 %654, %v560
        %v656 = vpop.permute.xlu0 %655
        %659 = vset.pattern.permute.xlu0 0
        %660 = vperm.xlu0 %659, %v561
        %v661 = vpop.permute.xlu0 %660
        %664 = vset.pattern.permute.xlu0 0
        %665 = vperm.xlu0 %664, %v562
        %v666 = vpop.permute.xlu0 %665
        %669 = vset.pattern.permute.xlu0 0
        %670 = vperm.xlu0 %669, %v563
        %v671 = vpop.permute.xlu0 %670
        %674 = vset.pattern.permute.xlu0 0
        %675 = vperm.xlu0 %674, %v564
        %v676 = vpop.permute.xlu0 %675
        %679 = vset.pattern.permute.xlu0 0
        %680 = vperm.xlu0 %679, %v565
        %v681 = vpop.permute.xlu0 %680
        %684 = vset.pattern.permute.xlu0 0
        %685 = vperm.xlu0 %684, %v566
        %v686 = vpop.permute.xlu0 %685
        %689 = vset.pattern.permute.xlu0 0
        %690 = vperm.xlu0 %689, %v567
        %v691 = vpop.permute.xlu0 %690
        %694 = vset.pattern.permute.xlu0 0
        %695 = vperm.xlu0 %694, %v568
        %v696 = vpop.permute.xlu0 %695
        %699 = vset.pattern.permute.xlu0 0
        %700 = vperm.xlu0 %699, %v569
        %v701 = vpop.permute.xlu0 %700
        %704 = vset.pattern.permute.xlu0 0
        %705 = vperm.xlu0 %704, %v570
        %v706 = vpop.permute.xlu0 %705
        %709 = vset.pattern.permute.xlu0 0
        %710 = vperm.xlu0 %709, %v571
        %v711 = vpop.permute.xlu0 %710
        %714 = vset.pattern.permute.xlu0 0
        %715 = vperm.xlu0 %714, %v572
        %v716 = vpop.permute.xlu0 %715
        %719 = vset.pattern.permute.xlu0 0
        %720 = vperm.xlu0 %719, %v573
        %v721 = vpop.permute.xlu0 %720
        %724 = vset.pattern.permute.xlu0 0
        %725 = vperm.xlu0 %724, %v574
        %v726 = vpop.permute.xlu0 %725
        %729 = vset.pattern.permute.xlu0 0
        %730 = vperm.xlu0 %729, %v575
        %v731 = vpop.permute.xlu0 %730
        %734 = vset.pattern.permute.xlu0 0
        %735 = vperm.xlu0 %734, %v576
        %v736 = vpop.permute.xlu0 %735
        %v738 = vperm.slane %v577, 0
        %v739 = vmul.f32 %v581, %v738
        %v740 = vmul.f32 %v586, %v738
        %v741 = vmul.f32 %v591, %v738
        %v742 = vmul.f32 %v596, %v738
        %v743 = vmul.f32 %v601, %v738
        %v744 = vmul.f32 %v606, %v738
        %v745 = vmul.f32 %v611, %v738
        %v746 = vmul.f32 %v616, %v738
        %v747 = vmul.f32 %v621, %v738
        %v748 = vmul.f32 %v626, %v738
        %v749 = vmul.f32 %v631, %v738
        %v750 = vmul.f32 %v636, %v738
        %v751 = vmul.f32 %v641, %v738
        %v752 = vmul.f32 %v646, %v738
        %v753 = vmul.f32 %v651, %v738
        %v754 = vmul.f32 %v656, %v738
        %v755 = vmul.f32 %v661, %v738
        %v756 = vmul.f32 %v666, %v738
        %v757 = vmul.f32 %v671, %v738
        %v758 = vmul.f32 %v676, %v738
        %v759 = vmul.f32 %v681, %v738
        %v760 = vmul.f32 %v686, %v738
        %v761 = vmul.f32 %v691, %v738
        %v762 = vmul.f32 %v696, %v738
        %v763 = vmul.f32 %v701, %v738
        %v764 = vmul.f32 %v706, %v738
        %v765 = vmul.f32 %v711, %v738
        %v766 = vmul.f32 %v716, %v738
        %v767 = vmul.f32 %v721, %v738
        %v768 = vmul.f32 %v726, %v738
        %v769 = vmul.f32 %v731, %v738
        %v770 = vmul.f32 %v736, %v738
        %v771 = vadd.f32 %v739, 0.0
        %v772 = vadd.f32 %v740, 0.0
        %v773 = vadd.f32 %v741, 0.0
        %v774 = vadd.f32 %v742, 0.0
        %v775 = vadd.f32 %v743, 0.0
        %v776 = vadd.f32 %v744, 0.0
        %v777 = vadd.f32 %v745, 0.0
        %v778 = vadd.f32 %v746, 0.0
        %v779 = vadd.f32 %v747, 0.0
        %v780 = vadd.f32 %v748, 0.0
        %v781 = vadd.f32 %v749, 0.0
        %v782 = vadd.f32 %v750, 0.0
        %v783 = vadd.f32 %v751, 0.0
        %v784 = vadd.f32 %v752, 0.0
        %v785 = vadd.f32 %v753, 0.0
        %v786 = vadd.f32 %v754, 0.0
        %v787 = vadd.f32 %v755, 0.0
        %v788 = vadd.f32 %v756, 0.0
        %v789 = vadd.f32 %v757, 0.0
        %v790 = vadd.f32 %v758, 0.0
        %v791 = vadd.f32 %v759, 0.0
        %v792 = vadd.f32 %v760, 0.0
        %v793 = vadd.f32 %v761, 0.0
        %v794 = vadd.f32 %v762, 0.0
        %v795 = vadd.f32 %v763, 0.0
        %v796 = vadd.f32 %v764, 0.0
        %v797 = vadd.f32 %v765, 0.0
        %v798 = vadd.f32 %v766, 0.0
        %v799 = vadd.f32 %v767, 0.0
        %v800 = vadd.f32 %v768, 0.0
        %v801 = vadd.f32 %v769, 0.0
        %v802 = vadd.f32 %v770, 0.0
        %v803 = vld [vmem:[#allocation3] sm:$0xf]
        %v804 = vld [vmem:[#allocation3 + $0x4] sm:$0xf]
        %v805 = vld [vmem:[#allocation3 + $0x8] sm:$0xf]
        %v806 = vld [vmem:[#allocation3 + $0xc] sm:$0xf]
        %v807 = vld [vmem:[#allocation3 + $0x10] sm:$0xf]
        %v808 = vld [vmem:[#allocation3 + $0x14] sm:$0xf]
        %v809 = vld [vmem:[#allocation3 + $0x18] sm:$0xf]
        %v810 = vld [vmem:[#allocation3 + $0x1c] sm:$0xf]
        %v811 = vld [vmem:[#allocation3 + $0x20] sm:$0xf]
        %v812 = vld [vmem:[#allocation3 + $0x24] sm:$0xf]
        %v813 = vld [vmem:[#allocation3 + $0x28] sm:$0xf]
        %v814 = vld [vmem:[#allocation3 + $0x2c] sm:$0xf]
        %v815 = vld [vmem:[#allocation3 + $0x30] sm:$0xf]
        %v816 = vld [vmem:[#allocation3 + $0x34] sm:$0xf]
        %v817 = vld [vmem:[#allocation3 + $0x38] sm:$0xf]
        %v818 = vld [vmem:[#allocation3 + $0x3c] sm:$0xf]
        %v819 = vld [vmem:[#allocation3 + $0x40] sm:$0xf]
        %v820 = vld [vmem:[#allocation3 + $0x44] sm:$0xf]
        %v821 = vld [vmem:[#allocation3 + $0x48] sm:$0xf]
        %v822 = vld [vmem:[#allocation3 + $0x4c] sm:$0xf]
        %v823 = vld [vmem:[#allocation3 + $0x50] sm:$0xf]
        %v824 = vld [vmem:[#allocation3 + $0x54] sm:$0xf]
        %v825 = vld [vmem:[#allocation3 + $0x58] sm:$0xf]
        %v826 = vld [vmem:[#allocation3 + $0x5c] sm:$0xf]
        %v827 = vld [vmem:[#allocation3 + $0x60] sm:$0xf]
        %v828 = vld [vmem:[#allocation3 + $0x64] sm:$0xf]
        %v829 = vld [vmem:[#allocation3 + $0x68] sm:$0xf]
        %v830 = vld [vmem:[#allocation3 + $0x6c] sm:$0xf]
        %v831 = vld [vmem:[#allocation3 + $0x70] sm:$0xf]
        %v832 = vld [vmem:[#allocation3 + $0x74] sm:$0xf]
        %v833 = vld [vmem:[#allocation3 + $0x78] sm:$0xf]
        %v834 = vld [vmem:[#allocation3 + $0x7c] sm:$0xf]
        %v835 = vld [vmem:[#allocation3 + $0x80] sm:$0x1]
        %s836 = scalar_lea.vmem %s342, 1
        %v837 = vld [vmem:[%s836] sm:$0x1]
        %v838 = vunpack.c.l.bf16 %v803
        %v839 = vunpack.c.l.bf16 %v804
        %v840 = vunpack.c.l.bf16 %v805
        %v841 = vunpack.c.l.bf16 %v806
        %v842 = vunpack.c.l.bf16 %v807
        %v843 = vunpack.c.l.bf16 %v808
        %v844 = vunpack.c.l.bf16 %v809
        %v845 = vunpack.c.l.bf16 %v810
        %v846 = vunpack.c.l.bf16 %v811
        %v847 = vunpack.c.l.bf16 %v812
        %v848 = vunpack.c.l.bf16 %v813
        %v849 = vunpack.c.l.bf16 %v814
        %v850 = vunpack.c.l.bf16 %v815
        %v851 = vunpack.c.l.bf16 %v816
        %v852 = vunpack.c.l.bf16 %v817
        %v853 = vunpack.c.l.bf16 %v818
        %v854 = vunpack.c.l.bf16 %v819
        %v855 = vunpack.c.l.bf16 %v820
        %v856 = vunpack.c.l.bf16 %v821
        %v857 = vunpack.c.l.bf16 %v822
        %v858 = vunpack.c.l.bf16 %v823
        %v859 = vunpack.c.l.bf16 %v824
        %v860 = vunpack.c.l.bf16 %v825
        %v861 = vunpack.c.l.bf16 %v826
        %v862 = vunpack.c.l.bf16 %v827
        %v863 = vunpack.c.l.bf16 %v828
        %v864 = vunpack.c.l.bf16 %v829
        %v865 = vunpack.c.l.bf16 %v830
        %v866 = vunpack.c.l.bf16 %v831
        %v867 = vunpack.c.l.bf16 %v832
        %v868 = vunpack.c.l.bf16 %v833
        %v869 = vunpack.c.l.bf16 %v834
        %v870 = vunpack.c.l.bf16 %v835
        %v871 = vunpack.c.l.bf16 %v837
        %873 = vset.pattern.permute.xlu0 0
        %874 = vperm.xlu0 %873, %v838
        %v875 = vpop.permute.xlu0 %874
        %878 = vset.pattern.permute.xlu0 0
        %879 = vperm.xlu0 %878, %v839
        %v880 = vpop.permute.xlu0 %879
        %883 = vset.pattern.permute.xlu0 0
        %884 = vperm.xlu0 %883, %v840
        %v885 = vpop.permute.xlu0 %884
        %888 = vset.pattern.permute.xlu0 0
        %889 = vperm.xlu0 %888, %v841
        %v890 = vpop.permute.xlu0 %889
        %893 = vset.pattern.permute.xlu0 0
        %894 = vperm.xlu0 %893, %v842
        %v895 = vpop.permute.xlu0 %894
        %898 = vset.pattern.permute.xlu0 0
        %899 = vperm.xlu0 %898, %v843
        %v900 = vpop.permute.xlu0 %899
        %903 = vset.pattern.permute.xlu0 0
        %904 = vperm.xlu0 %903, %v844
        %v905 = vpop.permute.xlu0 %904
        %908 = vset.pattern.permute.xlu0 0
        %909 = vperm.xlu0 %908, %v845
        %v910 = vpop.permute.xlu0 %909
        %913 = vset.pattern.permute.xlu0 0
        %914 = vperm.xlu0 %913, %v846
        %v915 = vpop.permute.xlu0 %914
        %918 = vset.pattern.permute.xlu0 0
        %919 = vperm.xlu0 %918, %v847
        %v920 = vpop.permute.xlu0 %919
        %923 = vset.pattern.permute.xlu0 0
        %924 = vperm.xlu0 %923, %v848
        %v925 = vpop.permute.xlu0 %924
        %928 = vset.pattern.permute.xlu0 0
        %929 = vperm.xlu0 %928, %v849
        %v930 = vpop.permute.xlu0 %929
        %933 = vset.pattern.permute.xlu0 0
        %934 = vperm.xlu0 %933, %v850
        %v935 = vpop.permute.xlu0 %934
        %938 = vset.pattern.permute.xlu0 0
        %939 = vperm.xlu0 %938, %v851
        %v940 = vpop.permute.xlu0 %939
        %943 = vset.pattern.permute.xlu0 0
        %944 = vperm.xlu0 %943, %v852
        %v945 = vpop.permute.xlu0 %944
        %948 = vset.pattern.permute.xlu0 0
        %949 = vperm.xlu0 %948, %v853
        %v950 = vpop.permute.xlu0 %949
        %953 = vset.pattern.permute.xlu0 0
        %954 = vperm.xlu0 %953, %v854
        %v955 = vpop.permute.xlu0 %954
        %958 = vset.pattern.permute.xlu0 0
        %959 = vperm.xlu0 %958, %v855
        %v960 = vpop.permute.xlu0 %959
        %963 = vset.pattern.permute.xlu0 0
        %964 = vperm.xlu0 %963, %v856
        %v965 = vpop.permute.xlu0 %964
        %968 = vset.pattern.permute.xlu0 0
        %969 = vperm.xlu0 %968, %v857
        %v970 = vpop.permute.xlu0 %969
        %973 = vset.pattern.permute.xlu0 0
        %974 = vperm.xlu0 %973, %v858
        %v975 = vpop.permute.xlu0 %974
        %978 = vset.pattern.permute.xlu0 0
        %979 = vperm.xlu0 %978, %v859
        %v980 = vpop.permute.xlu0 %979
        %983 = vset.pattern.permute.xlu0 0
        %984 = vperm.xlu0 %983, %v860
        %v985 = vpop.permute.xlu0 %984
        %988 = vset.pattern.permute.xlu0 0
        %989 = vperm.xlu0 %988, %v861
        %v990 = vpop.permute.xlu0 %989
        %993 = vset.pattern.permute.xlu0 0
        %994 = vperm.xlu0 %993, %v862
        %v995 = vpop.permute.xlu0 %994
        %998 = vset.pattern.permute.xlu0 0
        %999 = vperm.xlu0 %998, %v863
        %v1000 = vpop.permute.xlu0 %999
        %1003 = vset.pattern.permute.xlu0 0
        %1004 = vperm.xlu0 %1003, %v864
        %v1005 = vpop.permute.xlu0 %1004
        %1008 = vset.pattern.permute.xlu0 0
        %1009 = vperm.xlu0 %1008, %v865
        %v1010 = vpop.permute.xlu0 %1009
        %1013 = vset.pattern.permute.xlu0 0
        %1014 = vperm.xlu0 %1013, %v866
        %v1015 = vpop.permute.xlu0 %1014
        %1018 = vset.pattern.permute.xlu0 0
        %1019 = vperm.xlu0 %1018, %v867
        %v1020 = vpop.permute.xlu0 %1019
        %1023 = vset.pattern.permute.xlu0 0
        %1024 = vperm.xlu0 %1023, %v868
        %v1025 = vpop.permute.xlu0 %1024
        %1028 = vset.pattern.permute.xlu0 0
        %1029 = vperm.xlu0 %1028, %v869
        %v1030 = vpop.permute.xlu0 %1029
        %1033 = vset.pattern.permute.xlu0 0
        %1034 = vperm.xlu0 %1033, %v870
        %v1035 = vpop.permute.xlu0 %1034
        %v1037 = vperm.slane %v871, 0
        %v1038 = vmul.f32 %v875, %v1037
        %v1039 = vmul.f32 %v880, %v1037
        %v1040 = vmul.f32 %v885, %v1037
        %v1041 = vmul.f32 %v890, %v1037
        %v1042 = vmul.f32 %v895, %v1037
        %v1043 = vmul.f32 %v900, %v1037
        %v1044 = vmul.f32 %v905, %v1037
        %v1045 = vmul.f32 %v910, %v1037
        %v1046 = vmul.f32 %v915, %v1037
        %v1047 = vmul.f32 %v920, %v1037
        %v1048 = vmul.f32 %v925, %v1037
        %v1049 = vmul.f32 %v930, %v1037
        %v1050 = vmul.f32 %v935, %v1037
        %v1051 = vmul.f32 %v940, %v1037
        %v1052 = vmul.f32 %v945, %v1037
        %v1053 = vmul.f32 %v950, %v1037
        %v1054 = vmul.f32 %v955, %v1037
        %v1055 = vmul.f32 %v960, %v1037
        %v1056 = vmul.f32 %v965, %v1037
        %v1057 = vmul.f32 %v970, %v1037
        %v1058 = vmul.f32 %v975, %v1037
        %v1059 = vmul.f32 %v980, %v1037
        %v1060 = vmul.f32 %v985, %v1037
        %v1061 = vmul.f32 %v990, %v1037
        %v1062 = vmul.f32 %v995, %v1037
        %v1063 = vmul.f32 %v1000, %v1037
        %v1064 = vmul.f32 %v1005, %v1037
        %v1065 = vmul.f32 %v1010, %v1037
        %v1066 = vmul.f32 %v1015, %v1037
        %v1067 = vmul.f32 %v1020, %v1037
        %v1068 = vmul.f32 %v1025, %v1037
        %v1069 = vmul.f32 %v1030, %v1037
        %v1070 = vmul.f32 %v1035, %v1037
        %vm1104 = vcmask 1046528
        %v1105 = vrot.slane %v1038, 1
        %v1106 = vrot.slane %v1039, 1
        %v1107 = vsel %vm1104, %v1105, %v1106
        %v1108 = vrot.slane %v1040, 1
        %v1109 = vsel %vm1104, %v1106, %v1108
        %v1110 = vrot.slane %v1041, 1
        %v1111 = vsel %vm1104, %v1108, %v1110
        %v1112 = vrot.slane %v1042, 1
        %v1113 = vsel %vm1104, %v1110, %v1112
        %v1114 = vrot.slane %v1043, 1
        %v1115 = vsel %vm1104, %v1112, %v1114
        %v1116 = vrot.slane %v1044, 1
        %v1117 = vsel %vm1104, %v1114, %v1116
        %v1118 = vrot.slane %v1045, 1
        %v1119 = vsel %vm1104, %v1116, %v1118
        %v1120 = vrot.slane %v1046, 1
        %v1121 = vsel %vm1104, %v1118, %v1120
        %v1122 = vrot.slane %v1047, 1
        %v1123 = vsel %vm1104, %v1120, %v1122
        %v1124 = vrot.slane %v1048, 1
        %v1125 = vsel %vm1104, %v1122, %v1124
        %v1126 = vrot.slane %v1049, 1
        %v1127 = vsel %vm1104, %v1124, %v1126
        %v1128 = vrot.slane %v1050, 1
        %v1129 = vsel %vm1104, %v1126, %v1128
        %v1130 = vrot.slane %v1051, 1
        %v1131 = vsel %vm1104, %v1128, %v1130
        %v1132 = vrot.slane %v1052, 1
        %v1133 = vsel %vm1104, %v1130, %v1132
        %v1134 = vrot.slane %v1053, 1
        %v1135 = vsel %vm1104, %v1132, %v1134
        %v1136 = vrot.slane %v1054, 1
        %v1137 = vsel %vm1104, %v1134, %v1136
        %v1138 = vrot.slane %v1055, 1
        %v1139 = vsel %vm1104, %v1136, %v1138
        %v1140 = vrot.slane %v1056, 1
        %v1141 = vsel %vm1104, %v1138, %v1140
        %v1142 = vrot.slane %v1057, 1
        %v1143 = vsel %vm1104, %v1140, %v1142
        %v1144 = vrot.slane %v1058, 1
        %v1145 = vsel %vm1104, %v1142, %v1144
        %v1146 = vrot.slane %v1059, 1
        %v1147 = vsel %vm1104, %v1144, %v1146
        %v1148 = vrot.slane %v1060, 1
        %v1149 = vsel %vm1104, %v1146, %v1148
        %v1150 = vrot.slane %v1061, 1
        %v1151 = vsel %vm1104, %v1148, %v1150
        %v1152 = vrot.slane %v1062, 1
        %v1153 = vsel %vm1104, %v1150, %v1152
        %v1154 = vrot.slane %v1063, 1
        %v1155 = vsel %vm1104, %v1152, %v1154
        %v1156 = vrot.slane %v1064, 1
        %v1157 = vsel %vm1104, %v1154, %v1156
        %v1158 = vrot.slane %v1065, 1
        %v1159 = vsel %vm1104, %v1156, %v1158
        %v1160 = vrot.slane %v1066, 1
        %v1161 = vsel %vm1104, %v1158, %v1160
        %v1162 = vrot.slane %v1067, 1
        %v1163 = vsel %vm1104, %v1160, %v1162
        %v1164 = vrot.slane %v1068, 1
        %v1165 = vsel %vm1104, %v1162, %v1164
        %v1166 = vrot.slane %v1069, 1
        %v1167 = vsel %vm1104, %v1164, %v1166
        %v1168 = vrot.slane %v1070, 1
        %v1169 = vsel %vm1104, %v1166, %v1168
        %v1202 = vadd.f32 %v771, %v1107
        %v1203 = vadd.f32 %v772, %v1109
        %v1204 = vadd.f32 %v773, %v1111
        %v1205 = vadd.f32 %v774, %v1113
        %v1206 = vadd.f32 %v775, %v1115
        %v1207 = vadd.f32 %v776, %v1117
        %v1208 = vadd.f32 %v777, %v1119
        %v1209 = vadd.f32 %v778, %v1121
        %v1210 = vadd.f32 %v779, %v1123
        %v1211 = vadd.f32 %v780, %v1125
        %v1212 = vadd.f32 %v781, %v1127
        %v1213 = vadd.f32 %v782, %v1129
        %v1214 = vadd.f32 %v783, %v1131
        %v1215 = vadd.f32 %v784, %v1133
        %v1216 = vadd.f32 %v785, %v1135
        %v1217 = vadd.f32 %v786, %v1137
        %v1218 = vadd.f32 %v787, %v1139
        %v1219 = vadd.f32 %v788, %v1141
        %v1220 = vadd.f32 %v789, %v1143
        %v1221 = vadd.f32 %v790, %v1145
        %v1222 = vadd.f32 %v791, %v1147
        %v1223 = vadd.f32 %v792, %v1149
        %v1224 = vadd.f32 %v793, %v1151
        %v1225 = vadd.f32 %v794, %v1153
        %v1226 = vadd.f32 %v795, %v1155
        %v1227 = vadd.f32 %v796, %v1157
        %v1228 = vadd.f32 %v797, %v1159
        %v1229 = vadd.f32 %v798, %v1161
        %v1230 = vadd.f32 %v799, %v1163
        %v1231 = vadd.f32 %v800, %v1165
        %v1232 = vadd.f32 %v801, %v1167
        %v1233 = vadd.f32 %v802, %v1169
        %v1234 = vld [vmem:[#allocation3] sm:$0xe]
        %s1235 = scalar_lea.vmem %s342, 2
        %v1236 = vld [vmem:[%s1235] sm:$0x1]
        %v1237 = vunpack.c.l.bf16 %v1234
        %v1238 = vunpack.c.l.bf16 %v1236
        %1240 = vset.pattern.permute.xlu0 0
        %1241 = vperm.xlu0 %1240, %v1237
        %v1242 = vpop.permute.xlu0 %1241
        %v1244 = vperm.slane %v1238, 0
        %v1245 = vmul.f32 %v1242, %v1244
        %v1246 = vmul.f32 %v880, %v1244
        %v1247 = vmul.f32 %v885, %v1244
        %v1248 = vmul.f32 %v890, %v1244
        %v1249 = vmul.f32 %v895, %v1244
        %v1250 = vmul.f32 %v900, %v1244
        %v1251 = vmul.f32 %v905, %v1244
        %v1252 = vmul.f32 %v910, %v1244
        %v1253 = vmul.f32 %v915, %v1244
        %v1254 = vmul.f32 %v920, %v1244
        %v1255 = vmul.f32 %v925, %v1244
        %v1256 = vmul.f32 %v930, %v1244
        %v1257 = vmul.f32 %v935, %v1244
        %v1258 = vmul.f32 %v940, %v1244
        %v1259 = vmul.f32 %v945, %v1244
        %v1260 = vmul.f32 %v950, %v1244
        %v1261 = vmul.f32 %v955, %v1244
        %v1262 = vmul.f32 %v960, %v1244
        %v1263 = vmul.f32 %v965, %v1244
        %v1264 = vmul.f32 %v970, %v1244
        %v1265 = vmul.f32 %v975, %v1244
        %v1266 = vmul.f32 %v980, %v1244
        %v1267 = vmul.f32 %v985, %v1244
        %v1268 = vmul.f32 %v990, %v1244
        %v1269 = vmul.f32 %v995, %v1244
        %v1270 = vmul.f32 %v1000, %v1244
        %v1271 = vmul.f32 %v1005, %v1244
        %v1272 = vmul.f32 %v1010, %v1244
        %v1273 = vmul.f32 %v1015, %v1244
        %v1274 = vmul.f32 %v1020, %v1244
        %v1275 = vmul.f32 %v1025, %v1244
        %v1276 = vmul.f32 %v1030, %v1244
        %v1277 = vmul.f32 %v1035, %v1244
        %vm1311 = vcmask 1045504
        %v1312 = vrot.slane %v1245, 2
        %v1313 = vrot.slane %v1246, 2
        %v1314 = vsel %vm1311, %v1312, %v1313
        %v1315 = vrot.slane %v1247, 2
        %v1316 = vsel %vm1311, %v1313, %v1315
        %v1317 = vrot.slane %v1248, 2
        %v1318 = vsel %vm1311, %v1315, %v1317
        %v1319 = vrot.slane %v1249, 2
        %v1320 = vsel %vm1311, %v1317, %v1319
        %v1321 = vrot.slane %v1250, 2
        %v1322 = vsel %vm1311, %v1319, %v1321
        %v1323 = vrot.slane %v1251, 2
        %v1324 = vsel %vm1311, %v1321, %v1323
        %v1325 = vrot.slane %v1252, 2
        %v1326 = vsel %vm1311, %v1323, %v1325
        %v1327 = vrot.slane %v1253, 2
        %v1328 = vsel %vm1311, %v1325, %v1327
        %v1329 = vrot.slane %v1254, 2
        %v1330 = vsel %vm1311, %v1327, %v1329
        %v1331 = vrot.slane %v1255, 2
        %v1332 = vsel %vm1311, %v1329, %v1331
        %v1333 = vrot.slane %v1256, 2
        %v1334 = vsel %vm1311, %v1331, %v1333
        %v1335 = vrot.slane %v1257, 2
        %v1336 = vsel %vm1311, %v1333, %v1335
        %v1337 = vrot.slane %v1258, 2
        %v1338 = vsel %vm1311, %v1335, %v1337
        %v1339 = vrot.slane %v1259, 2
        %v1340 = vsel %vm1311, %v1337, %v1339
        %v1341 = vrot.slane %v1260, 2
        %v1342 = vsel %vm1311, %v1339, %v1341
        %v1343 = vrot.slane %v1261, 2
        %v1344 = vsel %vm1311, %v1341, %v1343
        %v1345 = vrot.slane %v1262, 2
        %v1346 = vsel %vm1311, %v1343, %v1345
        %v1347 = vrot.slane %v1263, 2
        %v1348 = vsel %vm1311, %v1345, %v1347
        %v1349 = vrot.slane %v1264, 2
        %v1350 = vsel %vm1311, %v1347, %v1349
        %v1351 = vrot.slane %v1265, 2
        %v1352 = vsel %vm1311, %v1349, %v1351
        %v1353 = vrot.slane %v1266, 2
        %v1354 = vsel %vm1311, %v1351, %v1353
        %v1355 = vrot.slane %v1267, 2
        %v1356 = vsel %vm1311, %v1353, %v1355
        %v1357 = vrot.slane %v1268, 2
        %v1358 = vsel %vm1311, %v1355, %v1357
        %v1359 = vrot.slane %v1269, 2
        %v1360 = vsel %vm1311, %v1357, %v1359
        %v1361 = vrot.slane %v1270, 2
        %v1362 = vsel %vm1311, %v1359, %v1361
        %v1363 = vrot.slane %v1271, 2
        %v1364 = vsel %vm1311, %v1361, %v1363
        %v1365 = vrot.slane %v1272, 2
        %v1366 = vsel %vm1311, %v1363, %v1365
        %v1367 = vrot.slane %v1273, 2
        %v1368 = vsel %vm1311, %v1365, %v1367
        %v1369 = vrot.slane %v1274, 2
        %v1370 = vsel %vm1311, %v1367, %v1369
        %v1371 = vrot.slane %v1275, 2
        %v1372 = vsel %vm1311, %v1369, %v1371
        %v1373 = vrot.slane %v1276, 2
        %v1374 = vsel %vm1311, %v1371, %v1373
        %v1375 = vrot.slane %v1277, 2
        %v1376 = vsel %vm1311, %v1373, %v1375
        %v1409 = vadd.f32 %v1202, %v1314
        %v1410 = vadd.f32 %v1203, %v1316
        %v1411 = vadd.f32 %v1204, %v1318
        %v1412 = vadd.f32 %v1205, %v1320
        %v1413 = vadd.f32 %v1206, %v1322
        %v1414 = vadd.f32 %v1207, %v1324
        %v1415 = vadd.f32 %v1208, %v1326
        %v1416 = vadd.f32 %v1209, %v1328
        %v1417 = vadd.f32 %v1210, %v1330
        %v1418 = vadd.f32 %v1211, %v1332
        %v1419 = vadd.f32 %v1212, %v1334
        %v1420 = vadd.f32 %v1213, %v1336
        %v1421 = vadd.f32 %v1214, %v1338
        %v1422 = vadd.f32 %v1215, %v1340
        %v1423 = vadd.f32 %v1216, %v1342
        %v1424 = vadd.f32 %v1217, %v1344
        %v1425 = vadd.f32 %v1218, %v1346
        %v1426 = vadd.f32 %v1219, %v1348
        %v1427 = vadd.f32 %v1220, %v1350
        %v1428 = vadd.f32 %v1221, %v1352
        %v1429 = vadd.f32 %v1222, %v1354
        %v1430 = vadd.f32 %v1223, %v1356
        %v1431 = vadd.f32 %v1224, %v1358
        %v1432 = vadd.f32 %v1225, %v1360
        %v1433 = vadd.f32 %v1226, %v1362
        %v1434 = vadd.f32 %v1227, %v1364
        %v1435 = vadd.f32 %v1228, %v1366
        %v1436 = vadd.f32 %v1229, %v1368
        %v1437 = vadd.f32 %v1230, %v1370
        %v1438 = vadd.f32 %v1231, %v1372
        %v1439 = vadd.f32 %v1232, %v1374
        %v1440 = vadd.f32 %v1233, %v1376
        %v1441 = vld [vmem:[#allocation3 + $0x80] sm:$0x3]
        %s1442 = scalar_lea.vmem %s342, 3
        %v1443 = vld [vmem:[%s1442] sm:$0x1]
        %v1444 = vunpack.c.l.bf16 %v1441
        %v1445 = vunpack.c.l.bf16 %v1443
        %1447 = vset.pattern.permute.xlu0 0
        %1448 = vperm.xlu0 %1447, %v1444
        %v1449 = vpop.permute.xlu0 %1448
        %v1451 = vperm.slane %v1445, 0
        %v1452 = vmul.f32 %v1242, %v1451
        %v1453 = vmul.f32 %v880, %v1451
        %v1454 = vmul.f32 %v885, %v1451
        %v1455 = vmul.f32 %v890, %v1451
        %v1456 = vmul.f32 %v895, %v1451
        %v1457 = vmul.f32 %v900, %v1451
        %v1458 = vmul.f32 %v905, %v1451
        %v1459 = vmul.f32 %v910, %v1451
        %v1460 = vmul.f32 %v915, %v1451
        %v1461 = vmul.f32 %v920, %v1451
        %v1462 = vmul.f32 %v925, %v1451
        %v1463 = vmul.f32 %v930, %v1451
        %v1464 = vmul.f32 %v935, %v1451
        %v1465 = vmul.f32 %v940, %v1451
        %v1466 = vmul.f32 %v945, %v1451
        %v1467 = vmul.f32 %v950, %v1451
        %v1468 = vmul.f32 %v955, %v1451
        %v1469 = vmul.f32 %v960, %v1451
        %v1470 = vmul.f32 %v965, %v1451
        %v1471 = vmul.f32 %v970, %v1451
        %v1472 = vmul.f32 %v975, %v1451
        %v1473 = vmul.f32 %v980, %v1451
        %v1474 = vmul.f32 %v985, %v1451
        %v1475 = vmul.f32 %v990, %v1451
        %v1476 = vmul.f32 %v995, %v1451
        %v1477 = vmul.f32 %v1000, %v1451
        %v1478 = vmul.f32 %v1005, %v1451
        %v1479 = vmul.f32 %v1010, %v1451
        %v1480 = vmul.f32 %v1015, %v1451
        %v1481 = vmul.f32 %v1020, %v1451
        %v1482 = vmul.f32 %v1025, %v1451
        %v1483 = vmul.f32 %v1030, %v1451
        %v1484 = vmul.f32 %v1449, %v1451
        %vm1518 = vcmask 1044480
        %v1519 = vrot.slane %v1452, 3
        %v1520 = vrot.slane %v1453, 3
        %v1521 = vsel %vm1518, %v1519, %v1520
        %v1522 = vrot.slane %v1454, 3
        %v1523 = vsel %vm1518, %v1520, %v1522
        %v1524 = vrot.slane %v1455, 3
        %v1525 = vsel %vm1518, %v1522, %v1524
        %v1526 = vrot.slane %v1456, 3
        %v1527 = vsel %vm1518, %v1524, %v1526
        %v1528 = vrot.slane %v1457, 3
        %v1529 = vsel %vm1518, %v1526, %v1528
        %v1530 = vrot.slane %v1458, 3
        %v1531 = vsel %vm1518, %v1528, %v1530
        %v1532 = vrot.slane %v1459, 3
        %v1533 = vsel %vm1518, %v1530, %v1532
        %v1534 = vrot.slane %v1460, 3
        %v1535 = vsel %vm1518, %v1532, %v1534
        %v1536 = vrot.slane %v1461, 3
        %v1537 = vsel %vm1518, %v1534, %v1536
        %v1538 = vrot.slane %v1462, 3
        %v1539 = vsel %vm1518, %v1536, %v1538
        %v1540 = vrot.slane %v1463, 3
        %v1541 = vsel %vm1518, %v1538, %v1540
        %v1542 = vrot.slane %v1464, 3
        %v1543 = vsel %vm1518, %v1540, %v1542
        %v1544 = vrot.slane %v1465, 3
        %v1545 = vsel %vm1518, %v1542, %v1544
        %v1546 = vrot.slane %v1466, 3
        %v1547 = vsel %vm1518, %v1544, %v1546
        %v1548 = vrot.slane %v1467, 3
        %v1549 = vsel %vm1518, %v1546, %v1548
        %v1550 = vrot.slane %v1468, 3
        %v1551 = vsel %vm1518, %v1548, %v1550
        %v1552 = vrot.slane %v1469, 3
        %v1553 = vsel %vm1518, %v1550, %v1552
        %v1554 = vrot.slane %v1470, 3
        %v1555 = vsel %vm1518, %v1552, %v1554
        %v1556 = vrot.slane %v1471, 3
        %v1557 = vsel %vm1518, %v1554, %v1556
        %v1558 = vrot.slane %v1472, 3
        %v1559 = vsel %vm1518, %v1556, %v1558
        %v1560 = vrot.slane %v1473, 3
        %v1561 = vsel %vm1518, %v1558, %v1560
        %v1562 = vrot.slane %v1474, 3
        %v1563 = vsel %vm1518, %v1560, %v1562
        %v1564 = vrot.slane %v1475, 3
        %v1565 = vsel %vm1518, %v1562, %v1564
        %v1566 = vrot.slane %v1476, 3
        %v1567 = vsel %vm1518, %v1564, %v1566
        %v1568 = vrot.slane %v1477, 3
        %v1569 = vsel %vm1518, %v1566, %v1568
        %v1570 = vrot.slane %v1478, 3
        %v1571 = vsel %vm1518, %v1568, %v1570
        %v1572 = vrot.slane %v1479, 3
        %v1573 = vsel %vm1518, %v1570, %v1572
        %v1574 = vrot.slane %v1480, 3
        %v1575 = vsel %vm1518, %v1572, %v1574
        %v1576 = vrot.slane %v1481, 3
        %v1577 = vsel %vm1518, %v1574, %v1576
        %v1578 = vrot.slane %v1482, 3
        %v1579 = vsel %vm1518, %v1576, %v1578
        %v1580 = vrot.slane %v1483, 3
        %v1581 = vsel %vm1518, %v1578, %v1580
        %v1582 = vrot.slane %v1484, 3
        %v1583 = vsel %vm1518, %v1580, %v1582
        %v1616 = vadd.f32 %v1409, %v1521
        %v1617 = vadd.f32 %v1410, %v1523
        %v1618 = vadd.f32 %v1411, %v1525
        %v1619 = vadd.f32 %v1412, %v1527
        %v1620 = vadd.f32 %v1413, %v1529
        %v1621 = vadd.f32 %v1414, %v1531
        %v1622 = vadd.f32 %v1415, %v1533
        %v1623 = vadd.f32 %v1416, %v1535
        %v1624 = vadd.f32 %v1417, %v1537
        %v1625 = vadd.f32 %v1418, %v1539
        %v1626 = vadd.f32 %v1419, %v1541
        %v1627 = vadd.f32 %v1420, %v1543
        %v1628 = vadd.f32 %v1421, %v1545
        %v1629 = vadd.f32 %v1422, %v1547
        %v1630 = vadd.f32 %v1423, %v1549
        %v1631 = vadd.f32 %v1424, %v1551
        %v1632 = vadd.f32 %v1425, %v1553
        %v1633 = vadd.f32 %v1426, %v1555
        %v1634 = vadd.f32 %v1427, %v1557
        %v1635 = vadd.f32 %v1428, %v1559
        %v1636 = vadd.f32 %v1429, %v1561
        %v1637 = vadd.f32 %v1430, %v1563
        %v1638 = vadd.f32 %v1431, %v1565
        %v1639 = vadd.f32 %v1432, %v1567
        %v1640 = vadd.f32 %v1433, %v1569
        %v1641 = vadd.f32 %v1434, %v1571
        %v1642 = vadd.f32 %v1435, %v1573
        %v1643 = vadd.f32 %v1436, %v1575
        %v1644 = vadd.f32 %v1437, %v1577
        %v1645 = vadd.f32 %v1438, %v1579
        %v1646 = vadd.f32 %v1439, %v1581
        %v1647 = vadd.f32 %v1440, %v1583
        %v1648 = vld [vmem:[#allocation3] sm:$0xc]
        %s1649 = scalar_lea.vmem %s342, 4
        %v1650 = vld [vmem:[%s1649] sm:$0x1]
        %v1651 = vunpack.c.l.bf16 %v1648
        %v1652 = vunpack.c.l.bf16 %v1650
        %1654 = vset.pattern.permute.xlu0 0
        %1655 = vperm.xlu0 %1654, %v1651
        %v1656 = vpop.permute.xlu0 %1655
        %v1658 = vperm.slane %v1652, 0
        %v1659 = vmul.f32 %v1656, %v1658
        %v1660 = vmul.f32 %v880, %v1658
        %v1661 = vmul.f32 %v885, %v1658
        %v1662 = vmul.f32 %v890, %v1658
        %v1663 = vmul.f32 %v895, %v1658
        %v1664 = vmul.f32 %v900, %v1658
        %v1665 = vmul.f32 %v905, %v1658
        %v1666 = vmul.f32 %v910, %v1658
        %v1667 = vmul.f32 %v915, %v1658
        %v1668 = vmul.f32 %v920, %v1658
        %v1669 = vmul.f32 %v925, %v1658
        %v1670 = vmul.f32 %v930, %v1658
        %v1671 = vmul.f32 %v935, %v1658
        %v1672 = vmul.f32 %v940, %v1658
        %v1673 = vmul.f32 %v945, %v1658
        %v1674 = vmul.f32 %v950, %v1658
        %v1675 = vmul.f32 %v955, %v1658
        %v1676 = vmul.f32 %v960, %v1658
        %v1677 = vmul.f32 %v965, %v1658
        %v1678 = vmul.f32 %v970, %v1658
        %v1679 = vmul.f32 %v975, %v1658
        %v1680 = vmul.f32 %v980, %v1658
        %v1681 = vmul.f32 %v985, %v1658
        %v1682 = vmul.f32 %v990, %v1658
        %v1683 = vmul.f32 %v995, %v1658
        %v1684 = vmul.f32 %v1000, %v1658
        %v1685 = vmul.f32 %v1005, %v1658
        %v1686 = vmul.f32 %v1010, %v1658
        %v1687 = vmul.f32 %v1015, %v1658
        %v1688 = vmul.f32 %v1020, %v1658
        %v1689 = vmul.f32 %v1025, %v1658
        %v1690 = vmul.f32 %v1030, %v1658
        %v1691 = vmul.f32 %v1449, %v1658
        %vm1725 = vcmask 1043456
        %v1726 = vrot.slane %v1659, 4
        %v1727 = vrot.slane %v1660, 4
        %v1728 = vsel %vm1725, %v1726, %v1727
        %v1729 = vrot.slane %v1661, 4
        %v1730 = vsel %vm1725, %v1727, %v1729
        %v1731 = vrot.slane %v1662, 4
        %v1732 = vsel %vm1725, %v1729, %v1731
        %v1733 = vrot.slane %v1663, 4
        %v1734 = vsel %vm1725, %v1731, %v1733
        %v1735 = vrot.slane %v1664, 4
        %v1736 = vsel %vm1725, %v1733, %v1735
        %v1737 = vrot.slane %v1665, 4
        %v1738 = vsel %vm1725, %v1735, %v1737
        %v1739 = vrot.slane %v1666, 4
        %v1740 = vsel %vm1725, %v1737, %v1739
        %v1741 = vrot.slane %v1667, 4
        %v1742 = vsel %vm1725, %v1739, %v1741
        %v1743 = vrot.slane %v1668, 4
        %v1744 = vsel %vm1725, %v1741, %v1743
        %v1745 = vrot.slane %v1669, 4
        %v1746 = vsel %vm1725, %v1743, %v1745
        %v1747 = vrot.slane %v1670, 4
        %v1748 = vsel %vm1725, %v1745, %v1747
        %v1749 = vrot.slane %v1671, 4
        %v1750 = vsel %vm1725, %v1747, %v1749
        %v1751 = vrot.slane %v1672, 4
        %v1752 = vsel %vm1725, %v1749, %v1751
        %v1753 = vrot.slane %v1673, 4
        %v1754 = vsel %vm1725, %v1751, %v1753
        %v1755 = vrot.slane %v1674, 4
        %v1756 = vsel %vm1725, %v1753, %v1755
        %v1757 = vrot.slane %v1675, 4
        %v1758 = vsel %vm1725, %v1755, %v1757
        %v1759 = vrot.slane %v1676, 4
        %v1760 = vsel %vm1725, %v1757, %v1759
        %v1761 = vrot.slane %v1677, 4
        %v1762 = vsel %vm1725, %v1759, %v1761
        %v1763 = vrot.slane %v1678, 4
        %v1764 = vsel %vm1725, %v1761, %v1763
        %v1765 = vrot.slane %v1679, 4
        %v1766 = vsel %vm1725, %v1763, %v1765
        %v1767 = vrot.slane %v1680, 4
        %v1768 = vsel %vm1725, %v1765, %v1767
        %v1769 = vrot.slane %v1681, 4
        %v1770 = vsel %vm1725, %v1767, %v1769
        %v1771 = vrot.slane %v1682, 4
        %v1772 = vsel %vm1725, %v1769, %v1771
        %v1773 = vrot.slane %v1683, 4
        %v1774 = vsel %vm1725, %v1771, %v1773
        %v1775 = vrot.slane %v1684, 4
        %v1776 = vsel %vm1725, %v1773, %v1775
        %v1777 = vrot.slane %v1685, 4
        %v1778 = vsel %vm1725, %v1775, %v1777
        %v1779 = vrot.slane %v1686, 4
        %v1780 = vsel %vm1725, %v1777, %v1779
        %v1781 = vrot.slane %v1687, 4
        %v1782 = vsel %vm1725, %v1779, %v1781
        %v1783 = vrot.slane %v1688, 4
        %v1784 = vsel %vm1725, %v1781, %v1783
        %v1785 = vrot.slane %v1689, 4
        %v1786 = vsel %vm1725, %v1783, %v1785
        %v1787 = vrot.slane %v1690, 4
        %v1788 = vsel %vm1725, %v1785, %v1787
        %v1789 = vrot.slane %v1691, 4
        %v1790 = vsel %vm1725, %v1787, %v1789
        %v1823 = vadd.f32 %v1616, %v1728
        %v1824 = vadd.f32 %v1617, %v1730
        %v1825 = vadd.f32 %v1618, %v1732
        %v1826 = vadd.f32 %v1619, %v1734
        %v1827 = vadd.f32 %v1620, %v1736
        %v1828 = vadd.f32 %v1621, %v1738
        %v1829 = vadd.f32 %v1622, %v1740
        %v1830 = vadd.f32 %v1623, %v1742
        %v1831 = vadd.f32 %v1624, %v1744
        %v1832 = vadd.f32 %v1625, %v1746
        %v1833 = vadd.f32 %v1626, %v1748
        %v1834 = vadd.f32 %v1627, %v1750
        %v1835 = vadd.f32 %v1628, %v1752
        %v1836 = vadd.f32 %v1629, %v1754
        %v1837 = vadd.f32 %v1630, %v1756
        %v1838 = vadd.f32 %v1631, %v1758
        %v1839 = vadd.f32 %v1632, %v1760
        %v1840 = vadd.f32 %v1633, %v1762
        %v1841 = vadd.f32 %v1634, %v1764
        %v1842 = vadd.f32 %v1635, %v1766
        %v1843 = vadd.f32 %v1636, %v1768
        %v1844 = vadd.f32 %v1637, %v1770
        %v1845 = vadd.f32 %v1638, %v1772
        %v1846 = vadd.f32 %v1639, %v1774
        %v1847 = vadd.f32 %v1640, %v1776
        %v1848 = vadd.f32 %v1641, %v1778
        %v1849 = vadd.f32 %v1642, %v1780
        %v1850 = vadd.f32 %v1643, %v1782
        %v1851 = vadd.f32 %v1644, %v1784
        %v1852 = vadd.f32 %v1645, %v1786
        %v1853 = vadd.f32 %v1646, %v1788
        %v1854 = vadd.f32 %v1647, %v1790
        %v1855 = vld [vmem:[#allocation3 + $0x80] sm:$0x7]
        %s1856 = scalar_lea.vmem %s342, 5
        %v1857 = vld [vmem:[%s1856] sm:$0x1]
        %v1858 = vunpack.c.l.bf16 %v1855
        %v1859 = vunpack.c.l.bf16 %v1857
        %1861 = vset.pattern.permute.xlu0 0
        %1862 = vperm.xlu0 %1861, %v1858
        %v1863 = vpop.permute.xlu0 %1862
        %v1865 = vperm.slane %v1859, 0
        %v1866 = vmul.f32 %v1656, %v1865
        %v1867 = vmul.f32 %v880, %v1865
        %v1868 = vmul.f32 %v885, %v1865
        %v1869 = vmul.f32 %v890, %v1865
        %v1870 = vmul.f32 %v895, %v1865
        %v1871 = vmul.f32 %v900, %v1865
        %v1872 = vmul.f32 %v905, %v1865
        %v1873 = vmul.f32 %v910, %v1865
        %v1874 = vmul.f32 %v915, %v1865
        %v1875 = vmul.f32 %v920, %v1865
        %v1876 = vmul.f32 %v925, %v1865
        %v1877 = vmul.f32 %v930, %v1865
        %v1878 = vmul.f32 %v935, %v1865
        %v1879 = vmul.f32 %v940, %v1865
        %v1880 = vmul.f32 %v945, %v1865
        %v1881 = vmul.f32 %v950, %v1865
        %v1882 = vmul.f32 %v955, %v1865
        %v1883 = vmul.f32 %v960, %v1865
        %v1884 = vmul.f32 %v965, %v1865
        %v1885 = vmul.f32 %v970, %v1865
        %v1886 = vmul.f32 %v975, %v1865
        %v1887 = vmul.f32 %v980, %v1865
        %v1888 = vmul.f32 %v985, %v1865
        %v1889 = vmul.f32 %v990, %v1865
        %v1890 = vmul.f32 %v995, %v1865
        %v1891 = vmul.f32 %v1000, %v1865
        %v1892 = vmul.f32 %v1005, %v1865
        %v1893 = vmul.f32 %v1010, %v1865
        %v1894 = vmul.f32 %v1015, %v1865
        %v1895 = vmul.f32 %v1020, %v1865
        %v1896 = vmul.f32 %v1025, %v1865
        %v1897 = vmul.f32 %v1030, %v1865
        %v1898 = vmul.f32 %v1863, %v1865
        %vm1932 = vcmask 1042432
        %v1933 = vrot.slane %v1866, 5
        %v1934 = vrot.slane %v1867, 5
        %v1935 = vsel %vm1932, %v1933, %v1934
        %v1936 = vrot.slane %v1868, 5
        %v1937 = vsel %vm1932, %v1934, %v1936
        %v1938 = vrot.slane %v1869, 5
        %v1939 = vsel %vm1932, %v1936, %v1938
        %v1940 = vrot.slane %v1870, 5
        %v1941 = vsel %vm1932, %v1938, %v1940
        %v1942 = vrot.slane %v1871, 5
        %v1943 = vsel %vm1932, %v1940, %v1942
        %v1944 = vrot.slane %v1872, 5
        %v1945 = vsel %vm1932, %v1942, %v1944
        %v1946 = vrot.slane %v1873, 5
        %v1947 = vsel %vm1932, %v1944, %v1946
        %v1948 = vrot.slane %v1874, 5
        %v1949 = vsel %vm1932, %v1946, %v1948
        %v1950 = vrot.slane %v1875, 5
        %v1951 = vsel %vm1932, %v1948, %v1950
        %v1952 = vrot.slane %v1876, 5
        %v1953 = vsel %vm1932, %v1950, %v1952
        %v1954 = vrot.slane %v1877, 5
        %v1955 = vsel %vm1932, %v1952, %v1954
        %v1956 = vrot.slane %v1878, 5
        %v1957 = vsel %vm1932, %v1954, %v1956
        %v1958 = vrot.slane %v1879, 5
        %v1959 = vsel %vm1932, %v1956, %v1958
        %v1960 = vrot.slane %v1880, 5
        %v1961 = vsel %vm1932, %v1958, %v1960
        %v1962 = vrot.slane %v1881, 5
        %v1963 = vsel %vm1932, %v1960, %v1962
        %v1964 = vrot.slane %v1882, 5
        %v1965 = vsel %vm1932, %v1962, %v1964
        %v1966 = vrot.slane %v1883, 5
        %v1967 = vsel %vm1932, %v1964, %v1966
        %v1968 = vrot.slane %v1884, 5
        %v1969 = vsel %vm1932, %v1966, %v1968
        %v1970 = vrot.slane %v1885, 5
        %v1971 = vsel %vm1932, %v1968, %v1970
        %v1972 = vrot.slane %v1886, 5
        %v1973 = vsel %vm1932, %v1970, %v1972
        %v1974 = vrot.slane %v1887, 5
        %v1975 = vsel %vm1932, %v1972, %v1974
        %v1976 = vrot.slane %v1888, 5
        %v1977 = vsel %vm1932, %v1974, %v1976
        %v1978 = vrot.slane %v1889, 5
        %v1979 = vsel %vm1932, %v1976, %v1978
        %v1980 = vrot.slane %v1890, 5
        %v1981 = vsel %vm1932, %v1978, %v1980
        %v1982 = vrot.slane %v1891, 5
        %v1983 = vsel %vm1932, %v1980, %v1982
        %v1984 = vrot.slane %v1892, 5
        %v1985 = vsel %vm1932, %v1982, %v1984
        %v1986 = vrot.slane %v1893, 5
        %v1987 = vsel %vm1932, %v1984, %v1986
        %v1988 = vrot.slane %v1894, 5
        %v1989 = vsel %vm1932, %v1986, %v1988
        %v1990 = vrot.slane %v1895, 5
        %v1991 = vsel %vm1932, %v1988, %v1990
        %v1992 = vrot.slane %v1896, 5
        %v1993 = vsel %vm1932, %v1990, %v1992
        %v1994 = vrot.slane %v1897, 5
        %v1995 = vsel %vm1932, %v1992, %v1994
        %v1996 = vrot.slane %v1898, 5
        %v1997 = vsel %vm1932, %v1994, %v1996
        %v2030 = vadd.f32 %v1823, %v1935
        %v2031 = vadd.f32 %v1824, %v1937
        %v2032 = vadd.f32 %v1825, %v1939
        %v2033 = vadd.f32 %v1826, %v1941
        %v2034 = vadd.f32 %v1827, %v1943
        %v2035 = vadd.f32 %v1828, %v1945
        %v2036 = vadd.f32 %v1829, %v1947
        %v2037 = vadd.f32 %v1830, %v1949
        %v2038 = vadd.f32 %v1831, %v1951
        %v2039 = vadd.f32 %v1832, %v1953
        %v2040 = vadd.f32 %v1833, %v1955
        %v2041 = vadd.f32 %v1834, %v1957
        %v2042 = vadd.f32 %v1835, %v1959
        %v2043 = vadd.f32 %v1836, %v1961
        %v2044 = vadd.f32 %v1837, %v1963
        %v2045 = vadd.f32 %v1838, %v1965
        %v2046 = vadd.f32 %v1839, %v1967
        %v2047 = vadd.f32 %v1840, %v1969
        %v2048 = vadd.f32 %v1841, %v1971
        %v2049 = vadd.f32 %v1842, %v1973
        %v2050 = vadd.f32 %v1843, %v1975
        %v2051 = vadd.f32 %v1844, %v1977
        %v2052 = vadd.f32 %v1845, %v1979
        %v2053 = vadd.f32 %v1846, %v1981
        %v2054 = vadd.f32 %v1847, %v1983
        %v2055 = vadd.f32 %v1848, %v1985
        %v2056 = vadd.f32 %v1849, %v1987
        %v2057 = vadd.f32 %v1850, %v1989
        %v2058 = vadd.f32 %v1851, %v1991
        %v2059 = vadd.f32 %v1852, %v1993
        %v2060 = vadd.f32 %v1853, %v1995
        %v2061 = vadd.f32 %v1854, %v1997
        %v2062 = vld [vmem:[#allocation3] sm:$0x8]
        %s2063 = scalar_lea.vmem %s342, 6
        %v2064 = vld [vmem:[%s2063] sm:$0x1]
        %v2065 = vunpack.c.l.bf16 %v2062
        %v2066 = vunpack.c.l.bf16 %v2064
        %2068 = vset.pattern.permute.xlu0 0
        %2069 = vperm.xlu0 %2068, %v2065
        %v2070 = vpop.permute.xlu0 %2069
        %v2072 = vperm.slane %v2066, 0
        %v2073 = vmul.f32 %v2070, %v2072
        %v2074 = vmul.f32 %v880, %v2072
        %v2075 = vmul.f32 %v885, %v2072
        %v2076 = vmul.f32 %v890, %v2072
        %v2077 = vmul.f32 %v895, %v2072
        %v2078 = vmul.f32 %v900, %v2072
        %v2079 = vmul.f32 %v905, %v2072
        %v2080 = vmul.f32 %v910, %v2072
        %v2081 = vmul.f32 %v915, %v2072
        %v2082 = vmul.f32 %v920, %v2072
        %v2083 = vmul.f32 %v925, %v2072
        %v2084 = vmul.f32 %v930, %v2072
        %v2085 = vmul.f32 %v935, %v2072
        %v2086 = vmul.f32 %v940, %v2072
        %v2087 = vmul.f32 %v945, %v2072
        %v2088 = vmul.f32 %v950, %v2072
        %v2089 = vmul.f32 %v955, %v2072
        %v2090 = vmul.f32 %v960, %v2072
        %v2091 = vmul.f32 %v965, %v2072
        %v2092 = vmul.f32 %v970, %v2072
        %v2093 = vmul.f32 %v975, %v2072
        %v2094 = vmul.f32 %v980, %v2072
        %v2095 = vmul.f32 %v985, %v2072
        %v2096 = vmul.f32 %v990, %v2072
        %v2097 = vmul.f32 %v995, %v2072
        %v2098 = vmul.f32 %v1000, %v2072
        %v2099 = vmul.f32 %v1005, %v2072
        %v2100 = vmul.f32 %v1010, %v2072
        %v2101 = vmul.f32 %v1015, %v2072
        %v2102 = vmul.f32 %v1020, %v2072
        %v2103 = vmul.f32 %v1025, %v2072
        %v2104 = vmul.f32 %v1030, %v2072
        %v2105 = vmul.f32 %v1863, %v2072
        %vm2139 = vcmask 1041408
        %v2140 = vrot.slane %v2073, 6
        %v2141 = vrot.slane %v2074, 6
        %v2142 = vsel %vm2139, %v2140, %v2141
        %v2143 = vrot.slane %v2075, 6
        %v2144 = vsel %vm2139, %v2141, %v2143
        %v2145 = vrot.slane %v2076, 6
        %v2146 = vsel %vm2139, %v2143, %v2145
        %v2147 = vrot.slane %v2077, 6
        %v2148 = vsel %vm2139, %v2145, %v2147
        %v2149 = vrot.slane %v2078, 6
        %v2150 = vsel %vm2139, %v2147, %v2149
        %v2151 = vrot.slane %v2079, 6
        %v2152 = vsel %vm2139, %v2149, %v2151
        %v2153 = vrot.slane %v2080, 6
        %v2154 = vsel %vm2139, %v2151, %v2153
        %v2155 = vrot.slane %v2081, 6
        %v2156 = vsel %vm2139, %v2153, %v2155
        %v2157 = vrot.slane %v2082, 6
        %v2158 = vsel %vm2139, %v2155, %v2157
        %v2159 = vrot.slane %v2083, 6
        %v2160 = vsel %vm2139, %v2157, %v2159
        %v2161 = vrot.slane %v2084, 6
        %v2162 = vsel %vm2139, %v2159, %v2161
        %v2163 = vrot.slane %v2085, 6
        %v2164 = vsel %vm2139, %v2161, %v2163
        %v2165 = vrot.slane %v2086, 6
        %v2166 = vsel %vm2139, %v2163, %v2165
        %v2167 = vrot.slane %v2087, 6
        %v2168 = vsel %vm2139, %v2165, %v2167
        %v2169 = vrot.slane %v2088, 6
        %v2170 = vsel %vm2139, %v2167, %v2169
        %v2171 = vrot.slane %v2089, 6
        %v2172 = vsel %vm2139, %v2169, %v2171
        %v2173 = vrot.slane %v2090, 6
        %v2174 = vsel %vm2139, %v2171, %v2173
        %v2175 = vrot.slane %v2091, 6
        %v2176 = vsel %vm2139, %v2173, %v2175
        %v2177 = vrot.slane %v2092, 6
        %v2178 = vsel %vm2139, %v2175, %v2177
        %v2179 = vrot.slane %v2093, 6
        %v2180 = vsel %vm2139, %v2177, %v2179
        %v2181 = vrot.slane %v2094, 6
        %v2182 = vsel %vm2139, %v2179, %v2181
        %v2183 = vrot.slane %v2095, 6
        %v2184 = vsel %vm2139, %v2181, %v2183
        %v2185 = vrot.slane %v2096, 6
        %v2186 = vsel %vm2139, %v2183, %v2185
        %v2187 = vrot.slane %v2097, 6
        %v2188 = vsel %vm2139, %v2185, %v2187
        %v2189 = vrot.slane %v2098, 6
        %v2190 = vsel %vm2139, %v2187, %v2189
        %v2191 = vrot.slane %v2099, 6
        %v2192 = vsel %vm2139, %v2189, %v2191
        %v2193 = vrot.slane %v2100, 6
        %v2194 = vsel %vm2139, %v2191, %v2193
        %v2195 = vrot.slane %v2101, 6
        %v2196 = vsel %vm2139, %v2193, %v2195
        %v2197 = vrot.slane %v2102, 6
        %v2198 = vsel %vm2139, %v2195, %v2197
        %v2199 = vrot.slane %v2103, 6
        %v2200 = vsel %vm2139, %v2197, %v2199
        %v2201 = vrot.slane %v2104, 6
        %v2202 = vsel %vm2139, %v2199, %v2201
        %v2203 = vrot.slane %v2105, 6
        %v2204 = vsel %vm2139, %v2201, %v2203
        %v2237 = vadd.f32 %v2030, %v2142
        %v2238 = vadd.f32 %v2031, %v2144
        %v2239 = vadd.f32 %v2032, %v2146
        %v2240 = vadd.f32 %v2033, %v2148
        %v2241 = vadd.f32 %v2034, %v2150
        %v2242 = vadd.f32 %v2035, %v2152
        %v2243 = vadd.f32 %v2036, %v2154
        %v2244 = vadd.f32 %v2037, %v2156
        %v2245 = vadd.f32 %v2038, %v2158
        %v2246 = vadd.f32 %v2039, %v2160
        %v2247 = vadd.f32 %v2040, %v2162
        %v2248 = vadd.f32 %v2041, %v2164
        %v2249 = vadd.f32 %v2042, %v2166
        %v2250 = vadd.f32 %v2043, %v2168
        %v2251 = vadd.f32 %v2044, %v2170
        %v2252 = vadd.f32 %v2045, %v2172
        %v2253 = vadd.f32 %v2046, %v2174
        %v2254 = vadd.f32 %v2047, %v2176
        %v2255 = vadd.f32 %v2048, %v2178
        %v2256 = vadd.f32 %v2049, %v2180
        %v2257 = vadd.f32 %v2050, %v2182
        %v2258 = vadd.f32 %v2051, %v2184
        %v2259 = vadd.f32 %v2052, %v2186
        %v2260 = vadd.f32 %v2053, %v2188
        %v2261 = vadd.f32 %v2054, %v2190
        %v2262 = vadd.f32 %v2055, %v2192
        %v2263 = vadd.f32 %v2056, %v2194
        %v2264 = vadd.f32 %v2057, %v2196
        %v2265 = vadd.f32 %v2058, %v2198
        %v2266 = vadd.f32 %v2059, %v2200
        %v2267 = vadd.f32 %v2060, %v2202
        %v2268 = vadd.f32 %v2061, %v2204
        %v2269 = vld [vmem:[#allocation3 + $0x80] sm:$0xf]
        %s2270 = scalar_lea.vmem %s342, 7
        %v2271 = vld [vmem:[%s2270] sm:$0x1]
        %v2272 = vunpack.c.l.bf16 %v2269
        %v2273 = vunpack.c.l.bf16 %v2271
        %2275 = vset.pattern.permute.xlu0 0
        %2276 = vperm.xlu0 %2275, %v2272
        %v2277 = vpop.permute.xlu0 %2276
        %v2279 = vperm.slane %v2273, 0
        %v2280 = vmul.f32 %v2070, %v2279
        %v2281 = vmul.f32 %v880, %v2279
        %v2282 = vmul.f32 %v885, %v2279
        %v2283 = vmul.f32 %v890, %v2279
        %v2284 = vmul.f32 %v895, %v2279
        %v2285 = vmul.f32 %v900, %v2279
        %v2286 = vmul.f32 %v905, %v2279
        %v2287 = vmul.f32 %v910, %v2279
        %v2288 = vmul.f32 %v915, %v2279
        %v2289 = vmul.f32 %v920, %v2279
        %v2290 = vmul.f32 %v925, %v2279
        %v2291 = vmul.f32 %v930, %v2279
        %v2292 = vmul.f32 %v935, %v2279
        %v2293 = vmul.f32 %v940, %v2279
        %v2294 = vmul.f32 %v945, %v2279
        %v2295 = vmul.f32 %v950, %v2279
        %v2296 = vmul.f32 %v955, %v2279
        %v2297 = vmul.f32 %v960, %v2279
        %v2298 = vmul.f32 %v965, %v2279
        %v2299 = vmul.f32 %v970, %v2279
        %v2300 = vmul.f32 %v975, %v2279
        %v2301 = vmul.f32 %v980, %v2279
        %v2302 = vmul.f32 %v985, %v2279
        %v2303 = vmul.f32 %v990, %v2279
        %v2304 = vmul.f32 %v995, %v2279
        %v2305 = vmul.f32 %v1000, %v2279
        %v2306 = vmul.f32 %v1005, %v2279
        %v2307 = vmul.f32 %v1010, %v2279
        %v2308 = vmul.f32 %v1015, %v2279
        %v2309 = vmul.f32 %v1020, %v2279
        %v2310 = vmul.f32 %v1025, %v2279
        %v2311 = vmul.f32 %v1030, %v2279
        %v2312 = vmul.f32 %v2277, %v2279
        %vm2346 = vcmask 1040384
        %v2347 = vrot.slane %v2280, 7
        %v2348 = vrot.slane %v2281, 7
        %v2349 = vsel %vm2346, %v2347, %v2348
        %v2350 = vrot.slane %v2282, 7
        %v2351 = vsel %vm2346, %v2348, %v2350
        %v2352 = vrot.slane %v2283, 7
        %v2353 = vsel %vm2346, %v2350, %v2352
        %v2354 = vrot.slane %v2284, 7
        %v2355 = vsel %vm2346, %v2352, %v2354
        %v2356 = vrot.slane %v2285, 7
        %v2357 = vsel %vm2346, %v2354, %v2356
        %v2358 = vrot.slane %v2286, 7
        %v2359 = vsel %vm2346, %v2356, %v2358
        %v2360 = vrot.slane %v2287, 7
        %v2361 = vsel %vm2346, %v2358, %v2360
        %v2362 = vrot.slane %v2288, 7
        %v2363 = vsel %vm2346, %v2360, %v2362
        %v2364 = vrot.slane %v2289, 7
        %v2365 = vsel %vm2346, %v2362, %v2364
        %v2366 = vrot.slane %v2290, 7
        %v2367 = vsel %vm2346, %v2364, %v2366
        %v2368 = vrot.slane %v2291, 7
        %v2369 = vsel %vm2346, %v2366, %v2368
        %v2370 = vrot.slane %v2292, 7
        %v2371 = vsel %vm2346, %v2368, %v2370
        %v2372 = vrot.slane %v2293, 7
        %v2373 = vsel %vm2346, %v2370, %v2372
        %v2374 = vrot.slane %v2294, 7
        %v2375 = vsel %vm2346, %v2372, %v2374
        %v2376 = vrot.slane %v2295, 7
        %v2377 = vsel %vm2346, %v2374, %v2376
        %v2378 = vrot.slane %v2296, 7
        %v2379 = vsel %vm2346, %v2376, %v2378
        %v2380 = vrot.slane %v2297, 7
        %v2381 = vsel %vm2346, %v2378, %v2380
        %v2382 = vrot.slane %v2298, 7
        %v2383 = vsel %vm2346, %v2380, %v2382
        %v2384 = vrot.slane %v2299, 7
        %v2385 = vsel %vm2346, %v2382, %v2384
        %v2386 = vrot.slane %v2300, 7
        %v2387 = vsel %vm2346, %v2384, %v2386
        %v2388 = vrot.slane %v2301, 7
        %v2389 = vsel %vm2346, %v2386, %v2388
        %v2390 = vrot.slane %v2302, 7
        %v2391 = vsel %vm2346, %v2388, %v2390
        %v2392 = vrot.slane %v2303, 7
        %v2393 = vsel %vm2346, %v2390, %v2392
        %v2394 = vrot.slane %v2304, 7
        %v2395 = vsel %vm2346, %v2392, %v2394
        %v2396 = vrot.slane %v2305, 7
        %v2397 = vsel %vm2346, %v2394, %v2396
        %v2398 = vrot.slane %v2306, 7
        %v2399 = vsel %vm2346, %v2396, %v2398
        %v2400 = vrot.slane %v2307, 7
        %v2401 = vsel %vm2346, %v2398, %v2400
        %v2402 = vrot.slane %v2308, 7
        %v2403 = vsel %vm2346, %v2400, %v2402
        %v2404 = vrot.slane %v2309, 7
        %v2405 = vsel %vm2346, %v2402, %v2404
        %v2406 = vrot.slane %v2310, 7
        %v2407 = vsel %vm2346, %v2404, %v2406
        %v2408 = vrot.slane %v2311, 7
        %v2409 = vsel %vm2346, %v2406, %v2408
        %v2410 = vrot.slane %v2312, 7
        %v2411 = vsel %vm2346, %v2408, %v2410
        %v2444 = vadd.f32 %v2237, %v2349
        %v2445 = vadd.f32 %v2238, %v2351
        %v2446 = vadd.f32 %v2239, %v2353
        %v2447 = vadd.f32 %v2240, %v2355
        %v2448 = vadd.f32 %v2241, %v2357
        %v2449 = vadd.f32 %v2242, %v2359
        %v2450 = vadd.f32 %v2243, %v2361
        %v2451 = vadd.f32 %v2244, %v2363
        %v2452 = vadd.f32 %v2245, %v2365
        %v2453 = vadd.f32 %v2246, %v2367
        %v2454 = vadd.f32 %v2247, %v2369
        %v2455 = vadd.f32 %v2248, %v2371
        %v2456 = vadd.f32 %v2249, %v2373
        %v2457 = vadd.f32 %v2250, %v2375
        %v2458 = vadd.f32 %v2251, %v2377
        %v2459 = vadd.f32 %v2252, %v2379
        %v2460 = vadd.f32 %v2253, %v2381
        %v2461 = vadd.f32 %v2254, %v2383
        %v2462 = vadd.f32 %v2255, %v2385
        %v2463 = vadd.f32 %v2256, %v2387
        %v2464 = vadd.f32 %v2257, %v2389
        %v2465 = vadd.f32 %v2258, %v2391
        %v2466 = vadd.f32 %v2259, %v2393
        %v2467 = vadd.f32 %v2260, %v2395
        %v2468 = vadd.f32 %v2261, %v2397
        %v2469 = vadd.f32 %v2262, %v2399
        %v2470 = vadd.f32 %v2263, %v2401
        %v2471 = vadd.f32 %v2264, %v2403
        %v2472 = vadd.f32 %v2265, %v2405
        %v2473 = vadd.f32 %v2266, %v2407
        %v2474 = vadd.f32 %v2267, %v2409
        %v2475 = vadd.f32 %v2268, %v2411
        %s2476 = scalar_lea.vmem %s342, 8
        %v2477 = vld [vmem:[%s2476] sm:$0x1]
        %v2478 = vunpack.c.l.bf16 %v2477
        %v2479 = vperm.slane %v2478, 0
        %v2480 = vmul.f32 %v880, %v2479
        %v2481 = vmul.f32 %v885, %v2479
        %v2482 = vmul.f32 %v890, %v2479
        %v2483 = vmul.f32 %v895, %v2479
        %v2484 = vmul.f32 %v900, %v2479
        %v2485 = vmul.f32 %v905, %v2479
        %v2486 = vmul.f32 %v910, %v2479
        %v2487 = vmul.f32 %v915, %v2479
        %v2488 = vmul.f32 %v920, %v2479
        %v2489 = vmul.f32 %v925, %v2479
        %v2490 = vmul.f32 %v930, %v2479
        %v2491 = vmul.f32 %v935, %v2479
        %v2492 = vmul.f32 %v940, %v2479
        %v2493 = vmul.f32 %v945, %v2479
        %v2494 = vmul.f32 %v950, %v2479
        %v2495 = vmul.f32 %v955, %v2479
        %v2496 = vmul.f32 %v960, %v2479
        %v2497 = vmul.f32 %v965, %v2479
        %v2498 = vmul.f32 %v970, %v2479
        %v2499 = vmul.f32 %v975, %v2479
        %v2500 = vmul.f32 %v980, %v2479
        %v2501 = vmul.f32 %v985, %v2479
        %v2502 = vmul.f32 %v990, %v2479
        %v2503 = vmul.f32 %v995, %v2479
        %v2504 = vmul.f32 %v1000, %v2479
        %v2505 = vmul.f32 %v1005, %v2479
        %v2506 = vmul.f32 %v1010, %v2479
        %v2507 = vmul.f32 %v1015, %v2479
        %v2508 = vmul.f32 %v1020, %v2479
        %v2509 = vmul.f32 %v1025, %v2479
        %v2510 = vmul.f32 %v1030, %v2479
        %v2511 = vmul.f32 %v2277, %v2479
        %v2512 = vadd.f32 %v2444, %v2480
        %v2513 = vadd.f32 %v2445, %v2481
        %v2514 = vadd.f32 %v2446, %v2482
        %v2515 = vadd.f32 %v2447, %v2483
        %v2516 = vadd.f32 %v2448, %v2484
        %v2517 = vadd.f32 %v2449, %v2485
        %v2518 = vadd.f32 %v2450, %v2486
        %v2519 = vadd.f32 %v2451, %v2487
        %v2520 = vadd.f32 %v2452, %v2488
        %v2521 = vadd.f32 %v2453, %v2489
        %v2522 = vadd.f32 %v2454, %v2490
        %v2523 = vadd.f32 %v2455, %v2491
        %v2524 = vadd.f32 %v2456, %v2492
        %v2525 = vadd.f32 %v2457, %v2493
        %v2526 = vadd.f32 %v2458, %v2494
        %v2527 = vadd.f32 %v2459, %v2495
        %v2528 = vadd.f32 %v2460, %v2496
        %v2529 = vadd.f32 %v2461, %v2497
        %v2530 = vadd.f32 %v2462, %v2498
        %v2531 = vadd.f32 %v2463, %v2499
        %v2532 = vadd.f32 %v2464, %v2500
        %v2533 = vadd.f32 %v2465, %v2501
        %v2534 = vadd.f32 %v2466, %v2502
        %v2535 = vadd.f32 %v2467, %v2503
        %v2536 = vadd.f32 %v2468, %v2504
        %v2537 = vadd.f32 %v2469, %v2505
        %v2538 = vadd.f32 %v2470, %v2506
        %v2539 = vadd.f32 %v2471, %v2507
        %v2540 = vadd.f32 %v2472, %v2508
        %v2541 = vadd.f32 %v2473, %v2509
        %v2542 = vadd.f32 %v2474, %v2510
        %v2543 = vadd.f32 %v2475, %v2511
        %v2544 = vld [vmem:[#allocation3 + $0x4] sm:$0xf]
        %v2545 = vld [vmem:[#allocation3 + $0x8] sm:$0xf]
        %v2546 = vld [vmem:[#allocation3 + $0xc] sm:$0xf]
        %v2547 = vld [vmem:[#allocation3 + $0x10] sm:$0xf]
        %v2548 = vld [vmem:[#allocation3 + $0x14] sm:$0xf]
        %v2549 = vld [vmem:[#allocation3 + $0x18] sm:$0xf]
        %v2550 = vld [vmem:[#allocation3 + $0x1c] sm:$0xf]
        %v2551 = vld [vmem:[#allocation3 + $0x20] sm:$0xf]
        %v2552 = vld [vmem:[#allocation3 + $0x24] sm:$0xf]
        %v2553 = vld [vmem:[#allocation3 + $0x28] sm:$0xf]
        %v2554 = vld [vmem:[#allocation3 + $0x2c] sm:$0xf]
        %v2555 = vld [vmem:[#allocation3 + $0x30] sm:$0xf]
        %v2556 = vld [vmem:[#allocation3 + $0x34] sm:$0xf]
        %v2557 = vld [vmem:[#allocation3 + $0x38] sm:$0xf]
        %v2558 = vld [vmem:[#allocation3 + $0x3c] sm:$0xf]
        %v2559 = vld [vmem:[#allocation3 + $0x40] sm:$0xf]
        %v2560 = vld [vmem:[#allocation3 + $0x44] sm:$0xf]
        %v2561 = vld [vmem:[#allocation3 + $0x48] sm:$0xf]
        %v2562 = vld [vmem:[#allocation3 + $0x4c] sm:$0xf]
        %v2563 = vld [vmem:[#allocation3 + $0x50] sm:$0xf]
        %v2564 = vld [vmem:[#allocation3 + $0x54] sm:$0xf]
        %v2565 = vld [vmem:[#allocation3 + $0x58] sm:$0xf]
        %v2566 = vld [vmem:[#allocation3 + $0x5c] sm:$0xf]
        %v2567 = vld [vmem:[#allocation3 + $0x60] sm:$0xf]
        %v2568 = vld [vmem:[#allocation3 + $0x64] sm:$0xf]
        %v2569 = vld [vmem:[#allocation3 + $0x68] sm:$0xf]
        %v2570 = vld [vmem:[#allocation3 + $0x6c] sm:$0xf]
        %v2571 = vld [vmem:[#allocation3 + $0x70] sm:$0xf]
        %v2572 = vld [vmem:[#allocation3 + $0x74] sm:$0xf]
        %v2573 = vld [vmem:[#allocation3 + $0x78] sm:$0xf]
        %v2574 = vld [vmem:[#allocation3 + $0x7c] sm:$0xf]
        %v2575 = vld [vmem:[#allocation3 + $0x80] sm:$0xf]
        %v2576 = vld [vmem:[#allocation3 + $0x84] sm:$0x1]
        %s2577 = scalar_lea.vmem %s342, 9
        %v2578 = vld [vmem:[%s2577] sm:$0x1]
        %v2579 = vunpack.c.l.bf16 %v2544
        %v2580 = vunpack.c.l.bf16 %v2545
        %v2581 = vunpack.c.l.bf16 %v2546
        %v2582 = vunpack.c.l.bf16 %v2547
        %v2583 = vunpack.c.l.bf16 %v2548
        %v2584 = vunpack.c.l.bf16 %v2549
        %v2585 = vunpack.c.l.bf16 %v2550
        %v2586 = vunpack.c.l.bf16 %v2551
        %v2587 = vunpack.c.l.bf16 %v2552
        %v2588 = vunpack.c.l.bf16 %v2553
        %v2589 = vunpack.c.l.bf16 %v2554
        %v2590 = vunpack.c.l.bf16 %v2555
        %v2591 = vunpack.c.l.bf16 %v2556
        %v2592 = vunpack.c.l.bf16 %v2557
        %v2593 = vunpack.c.l.bf16 %v2558
        %v2594 = vunpack.c.l.bf16 %v2559
        %v2595 = vunpack.c.l.bf16 %v2560
        %v2596 = vunpack.c.l.bf16 %v2561
        %v2597 = vunpack.c.l.bf16 %v2562
        %v2598 = vunpack.c.l.bf16 %v2563
        %v2599 = vunpack.c.l.bf16 %v2564
        %v2600 = vunpack.c.l.bf16 %v2565
        %v2601 = vunpack.c.l.bf16 %v2566
        %v2602 = vunpack.c.l.bf16 %v2567
        %v2603 = vunpack.c.l.bf16 %v2568
        %v2604 = vunpack.c.l.bf16 %v2569
        %v2605 = vunpack.c.l.bf16 %v2570
        %v2606 = vunpack.c.l.bf16 %v2571
        %v2607 = vunpack.c.l.bf16 %v2572
        %v2608 = vunpack.c.l.bf16 %v2573
        %v2609 = vunpack.c.l.bf16 %v2574
        %v2610 = vunpack.c.l.bf16 %v2575
        %v2611 = vunpack.c.l.bf16 %v2576
        %v2612 = vunpack.c.l.bf16 %v2578
        %2614 = vset.pattern.permute.xlu0 0
        %2615 = vperm.xlu0 %2614, %v2579
        %v2616 = vpop.permute.xlu0 %2615
        %2619 = vset.pattern.permute.xlu0 0
        %2620 = vperm.xlu0 %2619, %v2580
        %v2621 = vpop.permute.xlu0 %2620
        %2624 = vset.pattern.permute.xlu0 0
        %2625 = vperm.xlu0 %2624, %v2581
        %v2626 = vpop.permute.xlu0 %2625
        %2629 = vset.pattern.permute.xlu0 0
        %2630 = vperm.xlu0 %2629, %v2582
        %v2631 = vpop.permute.xlu0 %2630
        %2634 = vset.pattern.permute.xlu0 0
        %2635 = vperm.xlu0 %2634, %v2583
        %v2636 = vpop.permute.xlu0 %2635
        %2639 = vset.pattern.permute.xlu0 0
        %2640 = vperm.xlu0 %2639, %v2584
        %v2641 = vpop.permute.xlu0 %2640
        %2644 = vset.pattern.permute.xlu0 0
        %2645 = vperm.xlu0 %2644, %v2585
        %v2646 = vpop.permute.xlu0 %2645
        %2649 = vset.pattern.permute.xlu0 0
        %2650 = vperm.xlu0 %2649, %v2586
        %v2651 = vpop.permute.xlu0 %2650
        %2654 = vset.pattern.permute.xlu0 0
        %2655 = vperm.xlu0 %2654, %v2587
        %v2656 = vpop.permute.xlu0 %2655
        %2659 = vset.pattern.permute.xlu0 0
        %2660 = vperm.xlu0 %2659, %v2588
        %v2661 = vpop.permute.xlu0 %2660
        %2664 = vset.pattern.permute.xlu0 0
        %2665 = vperm.xlu0 %2664, %v2589
        %v2666 = vpop.permute.xlu0 %2665
        %2669 = vset.pattern.permute.xlu0 0
        %2670 = vperm.xlu0 %2669, %v2590
        %v2671 = vpop.permute.xlu0 %2670
        %2674 = vset.pattern.permute.xlu0 0
        %2675 = vperm.xlu0 %2674, %v2591
        %v2676 = vpop.permute.xlu0 %2675
        %2679 = vset.pattern.permute.xlu0 0
        %2680 = vperm.xlu0 %2679, %v2592
        %v2681 = vpop.permute.xlu0 %2680
        %2684 = vset.pattern.permute.xlu0 0
        %2685 = vperm.xlu0 %2684, %v2593
        %v2686 = vpop.permute.xlu0 %2685
        %2689 = vset.pattern.permute.xlu0 0
        %2690 = vperm.xlu0 %2689, %v2594
        %v2691 = vpop.permute.xlu0 %2690
        %2694 = vset.pattern.permute.xlu0 0
        %2695 = vperm.xlu0 %2694, %v2595
        %v2696 = vpop.permute.xlu0 %2695
        %2699 = vset.pattern.permute.xlu0 0
        %2700 = vperm.xlu0 %2699, %v2596
        %v2701 = vpop.permute.xlu0 %2700
        %2704 = vset.pattern.permute.xlu0 0
        %2705 = vperm.xlu0 %2704, %v2597
        %v2706 = vpop.permute.xlu0 %2705
        %2709 = vset.pattern.permute.xlu0 0
        %2710 = vperm.xlu0 %2709, %v2598
        %v2711 = vpop.permute.xlu0 %2710
        %2714 = vset.pattern.permute.xlu0 0
        %2715 = vperm.xlu0 %2714, %v2599
        %v2716 = vpop.permute.xlu0 %2715
        %2719 = vset.pattern.permute.xlu0 0
        %2720 = vperm.xlu0 %2719, %v2600
        %v2721 = vpop.permute.xlu0 %2720
        %2724 = vset.pattern.permute.xlu0 0
        %2725 = vperm.xlu0 %2724, %v2601
        %v2726 = vpop.permute.xlu0 %2725
        %2729 = vset.pattern.permute.xlu0 0
        %2730 = vperm.xlu0 %2729, %v2602
        %v2731 = vpop.permute.xlu0 %2730
        %2734 = vset.pattern.permute.xlu0 0
        %2735 = vperm.xlu0 %2734, %v2603
        %v2736 = vpop.permute.xlu0 %2735
        %2739 = vset.pattern.permute.xlu0 0
        %2740 = vperm.xlu0 %2739, %v2604
        %v2741 = vpop.permute.xlu0 %2740
        %2744 = vset.pattern.permute.xlu0 0
        %2745 = vperm.xlu0 %2744, %v2605
        %v2746 = vpop.permute.xlu0 %2745
        %2749 = vset.pattern.permute.xlu0 0
        %2750 = vperm.xlu0 %2749, %v2606
        %v2751 = vpop.permute.xlu0 %2750
        %2754 = vset.pattern.permute.xlu0 0
        %2755 = vperm.xlu0 %2754, %v2607
        %v2756 = vpop.permute.xlu0 %2755
        %2759 = vset.pattern.permute.xlu0 0
        %2760 = vperm.xlu0 %2759, %v2608
        %v2761 = vpop.permute.xlu0 %2760
        %2764 = vset.pattern.permute.xlu0 0
        %2765 = vperm.xlu0 %2764, %v2609
        %v2766 = vpop.permute.xlu0 %2765
        %2769 = vset.pattern.permute.xlu0 0
        %2770 = vperm.xlu0 %2769, %v2610
        %v2771 = vpop.permute.xlu0 %2770
        %2774 = vset.pattern.permute.xlu0 0
        %2775 = vperm.xlu0 %2774, %v2611
        %v2776 = vpop.permute.xlu0 %2775
        %v2778 = vperm.slane %v2612, 0
        %v2779 = vmul.f32 %v2616, %v2778
        %v2780 = vmul.f32 %v2621, %v2778
        %v2781 = vmul.f32 %v2626, %v2778
        %v2782 = vmul.f32 %v2631, %v2778
        %v2783 = vmul.f32 %v2636, %v2778
        %v2784 = vmul.f32 %v2641, %v2778
        %v2785 = vmul.f32 %v2646, %v2778
        %v2786 = vmul.f32 %v2651, %v2778
        %v2787 = vmul.f32 %v2656, %v2778
        %v2788 = vmul.f32 %v2661, %v2778
        %v2789 = vmul.f32 %v2666, %v2778
        %v2790 = vmul.f32 %v2671, %v2778
        %v2791 = vmul.f32 %v2676, %v2778
        %v2792 = vmul.f32 %v2681, %v2778
        %v2793 = vmul.f32 %v2686, %v2778
        %v2794 = vmul.f32 %v2691, %v2778
        %v2795 = vmul.f32 %v2696, %v2778
        %v2796 = vmul.f32 %v2701, %v2778
        %v2797 = vmul.f32 %v2706, %v2778
        %v2798 = vmul.f32 %v2711, %v2778
        %v2799 = vmul.f32 %v2716, %v2778
        %v2800 = vmul.f32 %v2721, %v2778
        %v2801 = vmul.f32 %v2726, %v2778
        %v2802 = vmul.f32 %v2731, %v2778
        %v2803 = vmul.f32 %v2736, %v2778
        %v2804 = vmul.f32 %v2741, %v2778
        %v2805 = vmul.f32 %v2746, %v2778
        %v2806 = vmul.f32 %v2751, %v2778
        %v2807 = vmul.f32 %v2756, %v2778
        %v2808 = vmul.f32 %v2761, %v2778
        %v2809 = vmul.f32 %v2766, %v2778
        %v2810 = vmul.f32 %v2771, %v2778
        %v2811 = vmul.f32 %v2776, %v2778
        %v2845 = vrot.slane %v2779, 1
        %v2846 = vrot.slane %v2780, 1
        %v2847 = vsel %vm1104, %v2845, %v2846
        %v2848 = vrot.slane %v2781, 1
        %v2849 = vsel %vm1104, %v2846, %v2848
        %v2850 = vrot.slane %v2782, 1
        %v2851 = vsel %vm1104, %v2848, %v2850
        %v2852 = vrot.slane %v2783, 1
        %v2853 = vsel %vm1104, %v2850, %v2852
        %v2854 = vrot.slane %v2784, 1
        %v2855 = vsel %vm1104, %v2852, %v2854
        %v2856 = vrot.slane %v2785, 1
        %v2857 = vsel %vm1104, %v2854, %v2856
        %v2858 = vrot.slane %v2786, 1
        %v2859 = vsel %vm1104, %v2856, %v2858
        %v2860 = vrot.slane %v2787, 1
        %v2861 = vsel %vm1104, %v2858, %v2860
        %v2862 = vrot.slane %v2788, 1
        %v2863 = vsel %vm1104, %v2860, %v2862
        %v2864 = vrot.slane %v2789, 1
        %v2865 = vsel %vm1104, %v2862, %v2864
        %v2866 = vrot.slane %v2790, 1
        %v2867 = vsel %vm1104, %v2864, %v2866
        %v2868 = vrot.slane %v2791, 1
        %v2869 = vsel %vm1104, %v2866, %v2868
        %v2870 = vrot.slane %v2792, 1
        %v2871 = vsel %vm1104, %v2868, %v2870
        %v2872 = vrot.slane %v2793, 1
        %v2873 = vsel %vm1104, %v2870, %v2872
        %v2874 = vrot.slane %v2794, 1
        %v2875 = vsel %vm1104, %v2872, %v2874
        %v2876 = vrot.slane %v2795, 1
        %v2877 = vsel %vm1104, %v2874, %v2876
        %v2878 = vrot.slane %v2796, 1
        %v2879 = vsel %vm1104, %v2876, %v2878
        %v2880 = vrot.slane %v2797, 1
        %v2881 = vsel %vm1104, %v2878, %v2880
        %v2882 = vrot.slane %v2798, 1
        %v2883 = vsel %vm1104, %v2880, %v2882
        %v2884 = vrot.slane %v2799, 1
        %v2885 = vsel %vm1104, %v2882, %v2884
        %v2886 = vrot.slane %v2800, 1
        %v2887 = vsel %vm1104, %v2884, %v2886
        %v2888 = vrot.slane %v2801, 1
        %v2889 = vsel %vm1104, %v2886, %v2888
        %v2890 = vrot.slane %v2802, 1
        %v2891 = vsel %vm1104, %v2888, %v2890
        %v2892 = vrot.slane %v2803, 1
        %v2893 = vsel %vm1104, %v2890, %v2892
        %v2894 = vrot.slane %v2804, 1
        %v2895 = vsel %vm1104, %v2892, %v2894
        %v2896 = vrot.slane %v2805, 1
        %v2897 = vsel %vm1104, %v2894, %v2896
        %v2898 = vrot.slane %v2806, 1
        %v2899 = vsel %vm1104, %v2896, %v2898
        %v2900 = vrot.slane %v2807, 1
        %v2901 = vsel %vm1104, %v2898, %v2900
        %v2902 = vrot.slane %v2808, 1
        %v2903 = vsel %vm1104, %v2900, %v2902
        %v2904 = vrot.slane %v2809, 1
        %v2905 = vsel %vm1104, %v2902, %v2904
        %v2906 = vrot.slane %v2810, 1
        %v2907 = vsel %vm1104, %v2904, %v2906
        %v2908 = vrot.slane %v2811, 1
        %v2909 = vsel %vm1104, %v2906, %v2908
        %v2942 = vadd.f32 %v2512, %v2847
        %v2943 = vadd.f32 %v2513, %v2849
        %v2944 = vadd.f32 %v2514, %v2851
        %v2945 = vadd.f32 %v2515, %v2853
        %v2946 = vadd.f32 %v2516, %v2855
        %v2947 = vadd.f32 %v2517, %v2857
        %v2948 = vadd.f32 %v2518, %v2859
        %v2949 = vadd.f32 %v2519, %v2861
        %v2950 = vadd.f32 %v2520, %v2863
        %v2951 = vadd.f32 %v2521, %v2865
        %v2952 = vadd.f32 %v2522, %v2867
        %v2953 = vadd.f32 %v2523, %v2869
        %v2954 = vadd.f32 %v2524, %v2871
        %v2955 = vadd.f32 %v2525, %v2873
        %v2956 = vadd.f32 %v2526, %v2875
        %v2957 = vadd.f32 %v2527, %v2877
        %v2958 = vadd.f32 %v2528, %v2879
        %v2959 = vadd.f32 %v2529, %v2881
        %v2960 = vadd.f32 %v2530, %v2883
        %v2961 = vadd.f32 %v2531, %v2885
        %v2962 = vadd.f32 %v2532, %v2887
        %v2963 = vadd.f32 %v2533, %v2889
        %v2964 = vadd.f32 %v2534, %v2891
        %v2965 = vadd.f32 %v2535, %v2893
        %v2966 = vadd.f32 %v2536, %v2895
        %v2967 = vadd.f32 %v2537, %v2897
        %v2968 = vadd.f32 %v2538, %v2899
        %v2969 = vadd.f32 %v2539, %v2901
        %v2970 = vadd.f32 %v2540, %v2903
        %v2971 = vadd.f32 %v2541, %v2905
        %v2972 = vadd.f32 %v2542, %v2907
        %v2973 = vadd.f32 %v2543, %v2909
        %v2974 = vld [vmem:[#allocation3 + $0x4] sm:$0xe]
        %s2975 = scalar_lea.vmem %s342, 10
        %v2976 = vld [vmem:[%s2975] sm:$0x1]
        %v2977 = vunpack.c.l.bf16 %v2974
        %v2978 = vunpack.c.l.bf16 %v2976
        %2980 = vset.pattern.permute.xlu0 0
        %2981 = vperm.xlu0 %2980, %v2977
        %v2982 = vpop.permute.xlu0 %2981
        %v2984 = vperm.slane %v2978, 0
        %v2985 = vmul.f32 %v2982, %v2984
        %v2986 = vmul.f32 %v2621, %v2984
        %v2987 = vmul.f32 %v2626, %v2984
        %v2988 = vmul.f32 %v2631, %v2984
        %v2989 = vmul.f32 %v2636, %v2984
        %v2990 = vmul.f32 %v2641, %v2984
        %v2991 = vmul.f32 %v2646, %v2984
        %v2992 = vmul.f32 %v2651, %v2984
        %v2993 = vmul.f32 %v2656, %v2984
        %v2994 = vmul.f32 %v2661, %v2984
        %v2995 = vmul.f32 %v2666, %v2984
        %v2996 = vmul.f32 %v2671, %v2984
        %v2997 = vmul.f32 %v2676, %v2984
        %v2998 = vmul.f32 %v2681, %v2984
        %v2999 = vmul.f32 %v2686, %v2984
        %v3000 = vmul.f32 %v2691, %v2984
        %v3001 = vmul.f32 %v2696, %v2984
        %v3002 = vmul.f32 %v2701, %v2984
        %v3003 = vmul.f32 %v2706, %v2984
        %v3004 = vmul.f32 %v2711, %v2984
        %v3005 = vmul.f32 %v2716, %v2984
        %v3006 = vmul.f32 %v2721, %v2984
        %v3007 = vmul.f32 %v2726, %v2984
        %v3008 = vmul.f32 %v2731, %v2984
        %v3009 = vmul.f32 %v2736, %v2984
        %v3010 = vmul.f32 %v2741, %v2984
        %v3011 = vmul.f32 %v2746, %v2984
        %v3012 = vmul.f32 %v2751, %v2984
        %v3013 = vmul.f32 %v2756, %v2984
        %v3014 = vmul.f32 %v2761, %v2984
        %v3015 = vmul.f32 %v2766, %v2984
        %v3016 = vmul.f32 %v2771, %v2984
        %v3017 = vmul.f32 %v2776, %v2984
        %v3051 = vrot.slane %v2985, 2
        %v3052 = vrot.slane %v2986, 2
        %v3053 = vsel %vm1311, %v3051, %v3052
        %v3054 = vrot.slane %v2987, 2
        %v3055 = vsel %vm1311, %v3052, %v3054
        %v3056 = vrot.slane %v2988, 2
        %v3057 = vsel %vm1311, %v3054, %v3056
        %v3058 = vrot.slane %v2989, 2
        %v3059 = vsel %vm1311, %v3056, %v3058
        %v3060 = vrot.slane %v2990, 2
        %v3061 = vsel %vm1311, %v3058, %v3060
        %v3062 = vrot.slane %v2991, 2
        %v3063 = vsel %vm1311, %v3060, %v3062
        %v3064 = vrot.slane %v2992, 2
        %v3065 = vsel %vm1311, %v3062, %v3064
        %v3066 = vrot.slane %v2993, 2
        %v3067 = vsel %vm1311, %v3064, %v3066
        %v3068 = vrot.slane %v2994, 2
        %v3069 = vsel %vm1311, %v3066, %v3068
        %v3070 = vrot.slane %v2995, 2
        %v3071 = vsel %vm1311, %v3068, %v3070
        %v3072 = vrot.slane %v2996, 2
        %v3073 = vsel %vm1311, %v3070, %v3072
        %v3074 = vrot.slane %v2997, 2
        %v3075 = vsel %vm1311, %v3072, %v3074
        %v3076 = vrot.slane %v2998, 2
        %v3077 = vsel %vm1311, %v3074, %v3076
        %v3078 = vrot.slane %v2999, 2
        %v3079 = vsel %vm1311, %v3076, %v3078
        %v3080 = vrot.slane %v3000, 2
        %v3081 = vsel %vm1311, %v3078, %v3080
        %v3082 = vrot.slane %v3001, 2
        %v3083 = vsel %vm1311, %v3080, %v3082
        %v3084 = vrot.slane %v3002, 2
        %v3085 = vsel %vm1311, %v3082, %v3084
        %v3086 = vrot.slane %v3003, 2
        %v3087 = vsel %vm1311, %v3084, %v3086
        %v3088 = vrot.slane %v3004, 2
        %v3089 = vsel %vm1311, %v3086, %v3088
        %v3090 = vrot.slane %v3005, 2
        %v3091 = vsel %vm1311, %v3088, %v3090
        %v3092 = vrot.slane %v3006, 2
        %v3093 = vsel %vm1311, %v3090, %v3092
        %v3094 = vrot.slane %v3007, 2
        %v3095 = vsel %vm1311, %v3092, %v3094
        %v3096 = vrot.slane %v3008, 2
        %v3097 = vsel %vm1311, %v3094, %v3096
        %v3098 = vrot.slane %v3009, 2
        %v3099 = vsel %vm1311, %v3096, %v3098
        %v3100 = vrot.slane %v3010, 2
        %v3101 = vsel %vm1311, %v3098, %v3100
        %v3102 = vrot.slane %v3011, 2
        %v3103 = vsel %vm1311, %v3100, %v3102
        %v3104 = vrot.slane %v3012, 2
        %v3105 = vsel %vm1311, %v3102, %v3104
        %v3106 = vrot.slane %v3013, 2
        %v3107 = vsel %vm1311, %v3104, %v3106
        %v3108 = vrot.slane %v3014, 2
        %v3109 = vsel %vm1311, %v3106, %v3108
        %v3110 = vrot.slane %v3015, 2
        %v3111 = vsel %vm1311, %v3108, %v3110
        %v3112 = vrot.slane %v3016, 2
        %v3113 = vsel %vm1311, %v3110, %v3112
        %v3114 = vrot.slane %v3017, 2
        %v3115 = vsel %vm1311, %v3112, %v3114
        %v3148 = vadd.f32 %v2942, %v3053
        %v3149 = vadd.f32 %v2943, %v3055
        %v3150 = vadd.f32 %v2944, %v3057
        %v3151 = vadd.f32 %v2945, %v3059
        %v3152 = vadd.f32 %v2946, %v3061
        %v3153 = vadd.f32 %v2947, %v3063
        %v3154 = vadd.f32 %v2948, %v3065
        %v3155 = vadd.f32 %v2949, %v3067
        %v3156 = vadd.f32 %v2950, %v3069
        %v3157 = vadd.f32 %v2951, %v3071
        %v3158 = vadd.f32 %v2952, %v3073
        %v3159 = vadd.f32 %v2953, %v3075
        %v3160 = vadd.f32 %v2954, %v3077
        %v3161 = vadd.f32 %v2955, %v3079
        %v3162 = vadd.f32 %v2956, %v3081
        %v3163 = vadd.f32 %v2957, %v3083
        %v3164 = vadd.f32 %v2958, %v3085
        %v3165 = vadd.f32 %v2959, %v3087
        %v3166 = vadd.f32 %v2960, %v3089
        %v3167 = vadd.f32 %v2961, %v3091
        %v3168 = vadd.f32 %v2962, %v3093
        %v3169 = vadd.f32 %v2963, %v3095
        %v3170 = vadd.f32 %v2964, %v3097
        %v3171 = vadd.f32 %v2965, %v3099
        %v3172 = vadd.f32 %v2966, %v3101
        %v3173 = vadd.f32 %v2967, %v3103
        %v3174 = vadd.f32 %v2968, %v3105
        %v3175 = vadd.f32 %v2969, %v3107
        %v3176 = vadd.f32 %v2970, %v3109
        %v3177 = vadd.f32 %v2971, %v3111
        %v3178 = vadd.f32 %v2972, %v3113
        %v3179 = vadd.f32 %v2973, %v3115
        %v3180 = vld [vmem:[#allocation3 + $0x84] sm:$0x3]
        %s3181 = scalar_lea.vmem %s342, 11
        %v3182 = vld [vmem:[%s3181] sm:$0x1]
        %v3183 = vunpack.c.l.bf16 %v3180
        %v3184 = vunpack.c.l.bf16 %v3182
        %3186 = vset.pattern.permute.xlu0 0
        %3187 = vperm.xlu0 %3186, %v3183
        %v3188 = vpop.permute.xlu0 %3187
        %v3190 = vperm.slane %v3184, 0
        %v3191 = vmul.f32 %v2982, %v3190
        %v3192 = vmul.f32 %v2621, %v3190
        %v3193 = vmul.f32 %v2626, %v3190
        %v3194 = vmul.f32 %v2631, %v3190
        %v3195 = vmul.f32 %v2636, %v3190
        %v3196 = vmul.f32 %v2641, %v3190
        %v3197 = vmul.f32 %v2646, %v3190
        %v3198 = vmul.f32 %v2651, %v3190
        %v3199 = vmul.f32 %v2656, %v3190
        %v3200 = vmul.f32 %v2661, %v3190
        %v3201 = vmul.f32 %v2666, %v3190
        %v3202 = vmul.f32 %v2671, %v3190
        %v3203 = vmul.f32 %v2676, %v3190
        %v3204 = vmul.f32 %v2681, %v3190
        %v3205 = vmul.f32 %v2686, %v3190
        %v3206 = vmul.f32 %v2691, %v3190
        %v3207 = vmul.f32 %v2696, %v3190
        %v3208 = vmul.f32 %v2701, %v3190
        %v3209 = vmul.f32 %v2706, %v3190
        %v3210 = vmul.f32 %v2711, %v3190
        %v3211 = vmul.f32 %v2716, %v3190
        %v3212 = vmul.f32 %v2721, %v3190
        %v3213 = vmul.f32 %v2726, %v3190
        %v3214 = vmul.f32 %v2731, %v3190
        %v3215 = vmul.f32 %v2736, %v3190
        %v3216 = vmul.f32 %v2741, %v3190
        %v3217 = vmul.f32 %v2746, %v3190
        %v3218 = vmul.f32 %v2751, %v3190
        %v3219 = vmul.f32 %v2756, %v3190
        %v3220 = vmul.f32 %v2761, %v3190
        %v3221 = vmul.f32 %v2766, %v3190
        %v3222 = vmul.f32 %v2771, %v3190
        %v3223 = vmul.f32 %v3188, %v3190
        %v3257 = vrot.slane %v3191, 3
        %v3258 = vrot.slane %v3192, 3
        %v3259 = vsel %vm1518, %v3257, %v3258
        %v3260 = vrot.slane %v3193, 3
        %v3261 = vsel %vm1518, %v3258, %v3260
        %v3262 = vrot.slane %v3194, 3
        %v3263 = vsel %vm1518, %v3260, %v3262
        %v3264 = vrot.slane %v3195, 3
        %v3265 = vsel %vm1518, %v3262, %v3264
        %v3266 = vrot.slane %v3196, 3
        %v3267 = vsel %vm1518, %v3264, %v3266
        %v3268 = vrot.slane %v3197, 3
        %v3269 = vsel %vm1518, %v3266, %v3268
        %v3270 = vrot.slane %v3198, 3
        %v3271 = vsel %vm1518, %v3268, %v3270
        %v3272 = vrot.slane %v3199, 3
        %v3273 = vsel %vm1518, %v3270, %v3272
        %v3274 = vrot.slane %v3200, 3
        %v3275 = vsel %vm1518, %v3272, %v3274
        %v3276 = vrot.slane %v3201, 3
        %v3277 = vsel %vm1518, %v3274, %v3276
        %v3278 = vrot.slane %v3202, 3
        %v3279 = vsel %vm1518, %v3276, %v3278
        %v3280 = vrot.slane %v3203, 3
        %v3281 = vsel %vm1518, %v3278, %v3280
        %v3282 = vrot.slane %v3204, 3
        %v3283 = vsel %vm1518, %v3280, %v3282
        %v3284 = vrot.slane %v3205, 3
        %v3285 = vsel %vm1518, %v3282, %v3284
        %v3286 = vrot.slane %v3206, 3
        %v3287 = vsel %vm1518, %v3284, %v3286
        %v3288 = vrot.slane %v3207, 3
        %v3289 = vsel %vm1518, %v3286, %v3288
        %v3290 = vrot.slane %v3208, 3
        %v3291 = vsel %vm1518, %v3288, %v3290
        %v3292 = vrot.slane %v3209, 3
        %v3293 = vsel %vm1518, %v3290, %v3292
        %v3294 = vrot.slane %v3210, 3
        %v3295 = vsel %vm1518, %v3292, %v3294
        %v3296 = vrot.slane %v3211, 3
        %v3297 = vsel %vm1518, %v3294, %v3296
        %v3298 = vrot.slane %v3212, 3
        %v3299 = vsel %vm1518, %v3296, %v3298
        %v3300 = vrot.slane %v3213, 3
        %v3301 = vsel %vm1518, %v3298, %v3300
        %v3302 = vrot.slane %v3214, 3
        %v3303 = vsel %vm1518, %v3300, %v3302
        %v3304 = vrot.slane %v3215, 3
        %v3305 = vsel %vm1518, %v3302, %v3304
        %v3306 = vrot.slane %v3216, 3
        %v3307 = vsel %vm1518, %v3304, %v3306
        %v3308 = vrot.slane %v3217, 3
        %v3309 = vsel %vm1518, %v3306, %v3308
        %v3310 = vrot.slane %v3218, 3
        %v3311 = vsel %vm1518, %v3308, %v3310
        %v3312 = vrot.slane %v3219, 3
        %v3313 = vsel %vm1518, %v3310, %v3312
        %v3314 = vrot.slane %v3220, 3
        %v3315 = vsel %vm1518, %v3312, %v3314
        %v3316 = vrot.slane %v3221, 3
        %v3317 = vsel %vm1518, %v3314, %v3316
        %v3318 = vrot.slane %v3222, 3
        %v3319 = vsel %vm1518, %v3316, %v3318
        %v3320 = vrot.slane %v3223, 3
        %v3321 = vsel %vm1518, %v3318, %v3320
        %v3354 = vadd.f32 %v3148, %v3259
        %v3355 = vadd.f32 %v3149, %v3261
        %v3356 = vadd.f32 %v3150, %v3263
        %v3357 = vadd.f32 %v3151, %v3265
        %v3358 = vadd.f32 %v3152, %v3267
        %v3359 = vadd.f32 %v3153, %v3269
        %v3360 = vadd.f32 %v3154, %v3271
        %v3361 = vadd.f32 %v3155, %v3273
        %v3362 = vadd.f32 %v3156, %v3275
        %v3363 = vadd.f32 %v3157, %v3277
        %v3364 = vadd.f32 %v3158, %v3279
        %v3365 = vadd.f32 %v3159, %v3281
        %v3366 = vadd.f32 %v3160, %v3283
        %v3367 = vadd.f32 %v3161, %v3285
        %v3368 = vadd.f32 %v3162, %v3287
        %v3369 = vadd.f32 %v3163, %v3289
        %v3370 = vadd.f32 %v3164, %v3291
        %v3371 = vadd.f32 %v3165, %v3293
        %v3372 = vadd.f32 %v3166, %v3295
        %v3373 = vadd.f32 %v3167, %v3297
        %v3374 = vadd.f32 %v3168, %v3299
        %v3375 = vadd.f32 %v3169, %v3301
        %v3376 = vadd.f32 %v3170, %v3303
        %v3377 = vadd.f32 %v3171, %v3305
        %v3378 = vadd.f32 %v3172, %v3307
        %v3379 = vadd.f32 %v3173, %v3309
        %v3380 = vadd.f32 %v3174, %v3311
        %v3381 = vadd.f32 %v3175, %v3313
        %v3382 = vadd.f32 %v3176, %v3315
        %v3383 = vadd.f32 %v3177, %v3317
        %v3384 = vadd.f32 %v3178, %v3319
        %v3385 = vadd.f32 %v3179, %v3321
        %v3386 = vld [vmem:[#allocation3 + $0x4] sm:$0xc]
        %s3387 = scalar_lea.vmem %s342, 12
        %v3388 = vld [vmem:[%s3387] sm:$0x1]
        %v3389 = vunpack.c.l.bf16 %v3386
        %v3390 = vunpack.c.l.bf16 %v3388
        %3392 = vset.pattern.permute.xlu0 0
        %3393 = vperm.xlu0 %3392, %v3389
        %v3394 = vpop.permute.xlu0 %3393
        %v3396 = vperm.slane %v3390, 0
        %v3397 = vmul.f32 %v3394, %v3396
        %v3398 = vmul.f32 %v2621, %v3396
        %v3399 = vmul.f32 %v2626, %v3396
        %v3400 = vmul.f32 %v2631, %v3396
        %v3401 = vmul.f32 %v2636, %v3396
        %v3402 = vmul.f32 %v2641, %v3396
        %v3403 = vmul.f32 %v2646, %v3396
        %v3404 = vmul.f32 %v2651, %v3396
        %v3405 = vmul.f32 %v2656, %v3396
        %v3406 = vmul.f32 %v2661, %v3396
        %v3407 = vmul.f32 %v2666, %v3396
        %v3408 = vmul.f32 %v2671, %v3396
        %v3409 = vmul.f32 %v2676, %v3396
        %v3410 = vmul.f32 %v2681, %v3396
        %v3411 = vmul.f32 %v2686, %v3396
        %v3412 = vmul.f32 %v2691, %v3396
        %v3413 = vmul.f32 %v2696, %v3396
        %v3414 = vmul.f32 %v2701, %v3396
        %v3415 = vmul.f32 %v2706, %v3396
        %v3416 = vmul.f32 %v2711, %v3396
        %v3417 = vmul.f32 %v2716, %v3396
        %v3418 = vmul.f32 %v2721, %v3396
        %v3419 = vmul.f32 %v2726, %v3396
        %v3420 = vmul.f32 %v2731, %v3396
        %v3421 = vmul.f32 %v2736, %v3396
        %v3422 = vmul.f32 %v2741, %v3396
        %v3423 = vmul.f32 %v2746, %v3396
        %v3424 = vmul.f32 %v2751, %v3396
        %v3425 = vmul.f32 %v2756, %v3396
        %v3426 = vmul.f32 %v2761, %v3396
        %v3427 = vmul.f32 %v2766, %v3396
        %v3428 = vmul.f32 %v2771, %v3396
        %v3429 = vmul.f32 %v3188, %v3396
        %v3463 = vrot.slane %v3397, 4
        %v3464 = vrot.slane %v3398, 4
        %v3465 = vsel %vm1725, %v3463, %v3464
        %v3466 = vrot.slane %v3399, 4
        %v3467 = vsel %vm1725, %v3464, %v3466
        %v3468 = vrot.slane %v3400, 4
        %v3469 = vsel %vm1725, %v3466, %v3468
        %v3470 = vrot.slane %v3401, 4
        %v3471 = vsel %vm1725, %v3468, %v3470
        %v3472 = vrot.slane %v3402, 4
        %v3473 = vsel %vm1725, %v3470, %v3472
        %v3474 = vrot.slane %v3403, 4
        %v3475 = vsel %vm1725, %v3472, %v3474
        %v3476 = vrot.slane %v3404, 4
        %v3477 = vsel %vm1725, %v3474, %v3476
        %v3478 = vrot.slane %v3405, 4
        %v3479 = vsel %vm1725, %v3476, %v3478
        %v3480 = vrot.slane %v3406, 4
        %v3481 = vsel %vm1725, %v3478, %v3480
        %v3482 = vrot.slane %v3407, 4
        %v3483 = vsel %vm1725, %v3480, %v3482
        %v3484 = vrot.slane %v3408, 4
        %v3485 = vsel %vm1725, %v3482, %v3484
        %v3486 = vrot.slane %v3409, 4
        %v3487 = vsel %vm1725, %v3484, %v3486
        %v3488 = vrot.slane %v3410, 4
        %v3489 = vsel %vm1725, %v3486, %v3488
        %v3490 = vrot.slane %v3411, 4
        %v3491 = vsel %vm1725, %v3488, %v3490
        %v3492 = vrot.slane %v3412, 4
        %v3493 = vsel %vm1725, %v3490, %v3492
        %v3494 = vrot.slane %v3413, 4
        %v3495 = vsel %vm1725, %v3492, %v3494
        %v3496 = vrot.slane %v3414, 4
        %v3497 = vsel %vm1725, %v3494, %v3496
        %v3498 = vrot.slane %v3415, 4
        %v3499 = vsel %vm1725, %v3496, %v3498
        %v3500 = vrot.slane %v3416, 4
        %v3501 = vsel %vm1725, %v3498, %v3500
        %v3502 = vrot.slane %v3417, 4
        %v3503 = vsel %vm1725, %v3500, %v3502
        %v3504 = vrot.slane %v3418, 4
        %v3505 = vsel %vm1725, %v3502, %v3504
        %v3506 = vrot.slane %v3419, 4
        %v3507 = vsel %vm1725, %v3504, %v3506
        %v3508 = vrot.slane %v3420, 4
        %v3509 = vsel %vm1725, %v3506, %v3508
        %v3510 = vrot.slane %v3421, 4
        %v3511 = vsel %vm1725, %v3508, %v3510
        %v3512 = vrot.slane %v3422, 4
        %v3513 = vsel %vm1725, %v3510, %v3512
        %v3514 = vrot.slane %v3423, 4
        %v3515 = vsel %vm1725, %v3512, %v3514
        %v3516 = vrot.slane %v3424, 4
        %v3517 = vsel %vm1725, %v3514, %v3516
        %v3518 = vrot.slane %v3425, 4
        %v3519 = vsel %vm1725, %v3516, %v3518
        %v3520 = vrot.slane %v3426, 4
        %v3521 = vsel %vm1725, %v3518, %v3520
        %v3522 = vrot.slane %v3427, 4
        %v3523 = vsel %vm1725, %v3520, %v3522
        %v3524 = vrot.slane %v3428, 4
        %v3525 = vsel %vm1725, %v3522, %v3524
        %v3526 = vrot.slane %v3429, 4
        %v3527 = vsel %vm1725, %v3524, %v3526
        %v3560 = vadd.f32 %v3354, %v3465
        %v3561 = vadd.f32 %v3355, %v3467
        %v3562 = vadd.f32 %v3356, %v3469
        %v3563 = vadd.f32 %v3357, %v3471
        %v3564 = vadd.f32 %v3358, %v3473
        %v3565 = vadd.f32 %v3359, %v3475
        %v3566 = vadd.f32 %v3360, %v3477
        %v3567 = vadd.f32 %v3361, %v3479
        %v3568 = vadd.f32 %v3362, %v3481
        %v3569 = vadd.f32 %v3363, %v3483
        %v3570 = vadd.f32 %v3364, %v3485
        %v3571 = vadd.f32 %v3365, %v3487
        %v3572 = vadd.f32 %v3366, %v3489
        %v3573 = vadd.f32 %v3367, %v3491
        %v3574 = vadd.f32 %v3368, %v3493
        %v3575 = vadd.f32 %v3369, %v3495
        %v3576 = vadd.f32 %v3370, %v3497
        %v3577 = vadd.f32 %v3371, %v3499
        %v3578 = vadd.f32 %v3372, %v3501
        %v3579 = vadd.f32 %v3373, %v3503
        %v3580 = vadd.f32 %v3374, %v3505
        %v3581 = vadd.f32 %v3375, %v3507
        %v3582 = vadd.f32 %v3376, %v3509
        %v3583 = vadd.f32 %v3377, %v3511
        %v3584 = vadd.f32 %v3378, %v3513
        %v3585 = vadd.f32 %v3379, %v3515
        %v3586 = vadd.f32 %v3380, %v3517
        %v3587 = vadd.f32 %v3381, %v3519
        %v3588 = vadd.f32 %v3382, %v3521
        %v3589 = vadd.f32 %v3383, %v3523
        %v3590 = vadd.f32 %v3384, %v3525
        %v3591 = vadd.f32 %v3385, %v3527
        %v3592 = vld [vmem:[#allocation3 + $0x84] sm:$0x7]
        %s3593 = scalar_lea.vmem %s342, 13
        %v3594 = vld [vmem:[%s3593] sm:$0x1]
        %v3595 = vunpack.c.l.bf16 %v3592
        %v3596 = vunpack.c.l.bf16 %v3594
        %3598 = vset.pattern.permute.xlu0 0
        %3599 = vperm.xlu0 %3598, %v3595
        %v3600 = vpop.permute.xlu0 %3599
        %v3602 = vperm.slane %v3596, 0
        %v3603 = vmul.f32 %v3394, %v3602
        %v3604 = vmul.f32 %v2621, %v3602
        %v3605 = vmul.f32 %v2626, %v3602
        %v3606 = vmul.f32 %v2631, %v3602
        %v3607 = vmul.f32 %v2636, %v3602
        %v3608 = vmul.f32 %v2641, %v3602
        %v3609 = vmul.f32 %v2646, %v3602
        %v3610 = vmul.f32 %v2651, %v3602
        %v3611 = vmul.f32 %v2656, %v3602
        %v3612 = vmul.f32 %v2661, %v3602
        %v3613 = vmul.f32 %v2666, %v3602
        %v3614 = vmul.f32 %v2671, %v3602
        %v3615 = vmul.f32 %v2676, %v3602
        %v3616 = vmul.f32 %v2681, %v3602
        %v3617 = vmul.f32 %v2686, %v3602
        %v3618 = vmul.f32 %v2691, %v3602
        %v3619 = vmul.f32 %v2696, %v3602
        %v3620 = vmul.f32 %v2701, %v3602
        %v3621 = vmul.f32 %v2706, %v3602
        %v3622 = vmul.f32 %v2711, %v3602
        %v3623 = vmul.f32 %v2716, %v3602
        %v3624 = vmul.f32 %v2721, %v3602
        %v3625 = vmul.f32 %v2726, %v3602
        %v3626 = vmul.f32 %v2731, %v3602
        %v3627 = vmul.f32 %v2736, %v3602
        %v3628 = vmul.f32 %v2741, %v3602
        %v3629 = vmul.f32 %v2746, %v3602
        %v3630 = vmul.f32 %v2751, %v3602
        %v3631 = vmul.f32 %v2756, %v3602
        %v3632 = vmul.f32 %v2761, %v3602
        %v3633 = vmul.f32 %v2766, %v3602
        %v3634 = vmul.f32 %v2771, %v3602
        %v3635 = vmul.f32 %v3600, %v3602
        %v3669 = vrot.slane %v3603, 5
        %v3670 = vrot.slane %v3604, 5
        %v3671 = vsel %vm1932, %v3669, %v3670
        %v3672 = vrot.slane %v3605, 5
        %v3673 = vsel %vm1932, %v3670, %v3672
        %v3674 = vrot.slane %v3606, 5
        %v3675 = vsel %vm1932, %v3672, %v3674
        %v3676 = vrot.slane %v3607, 5
        %v3677 = vsel %vm1932, %v3674, %v3676
        %v3678 = vrot.slane %v3608, 5
        %v3679 = vsel %vm1932, %v3676, %v3678
        %v3680 = vrot.slane %v3609, 5
        %v3681 = vsel %vm1932, %v3678, %v3680
        %v3682 = vrot.slane %v3610, 5
        %v3683 = vsel %vm1932, %v3680, %v3682
        %v3684 = vrot.slane %v3611, 5
        %v3685 = vsel %vm1932, %v3682, %v3684
        %v3686 = vrot.slane %v3612, 5
        %v3687 = vsel %vm1932, %v3684, %v3686
        %v3688 = vrot.slane %v3613, 5
        %v3689 = vsel %vm1932, %v3686, %v3688
        %v3690 = vrot.slane %v3614, 5
        %v3691 = vsel %vm1932, %v3688, %v3690
        %v3692 = vrot.slane %v3615, 5
        %v3693 = vsel %vm1932, %v3690, %v3692
        %v3694 = vrot.slane %v3616, 5
        %v3695 = vsel %vm1932, %v3692, %v3694
        %v3696 = vrot.slane %v3617, 5
        %v3697 = vsel %vm1932, %v3694, %v3696
        %v3698 = vrot.slane %v3618, 5
        %v3699 = vsel %vm1932, %v3696, %v3698
        %v3700 = vrot.slane %v3619, 5
        %v3701 = vsel %vm1932, %v3698, %v3700
        %v3702 = vrot.slane %v3620, 5
        %v3703 = vsel %vm1932, %v3700, %v3702
        %v3704 = vrot.slane %v3621, 5
        %v3705 = vsel %vm1932, %v3702, %v3704
        %v3706 = vrot.slane %v3622, 5
        %v3707 = vsel %vm1932, %v3704, %v3706
        %v3708 = vrot.slane %v3623, 5
        %v3709 = vsel %vm1932, %v3706, %v3708
        %v3710 = vrot.slane %v3624, 5
        %v3711 = vsel %vm1932, %v3708, %v3710
        %v3712 = vrot.slane %v3625, 5
        %v3713 = vsel %vm1932, %v3710, %v3712
        %v3714 = vrot.slane %v3626, 5
        %v3715 = vsel %vm1932, %v3712, %v3714
        %v3716 = vrot.slane %v3627, 5
        %v3717 = vsel %vm1932, %v3714, %v3716
        %v3718 = vrot.slane %v3628, 5
        %v3719 = vsel %vm1932, %v3716, %v3718
        %v3720 = vrot.slane %v3629, 5
        %v3721 = vsel %vm1932, %v3718, %v3720
        %v3722 = vrot.slane %v3630, 5
        %v3723 = vsel %vm1932, %v3720, %v3722
        %v3724 = vrot.slane %v3631, 5
        %v3725 = vsel %vm1932, %v3722, %v3724
        %v3726 = vrot.slane %v3632, 5
        %v3727 = vsel %vm1932, %v3724, %v3726
        %v3728 = vrot.slane %v3633, 5
        %v3729 = vsel %vm1932, %v3726, %v3728
        %v3730 = vrot.slane %v3634, 5
        %v3731 = vsel %vm1932, %v3728, %v3730
        %v3732 = vrot.slane %v3635, 5
        %v3733 = vsel %vm1932, %v3730, %v3732
        %v3766 = vadd.f32 %v3560, %v3671
        %v3767 = vadd.f32 %v3561, %v3673
        %v3768 = vadd.f32 %v3562, %v3675
        %v3769 = vadd.f32 %v3563, %v3677
        %v3770 = vadd.f32 %v3564, %v3679
        %v3771 = vadd.f32 %v3565, %v3681
        %v3772 = vadd.f32 %v3566, %v3683
        %v3773 = vadd.f32 %v3567, %v3685
        %v3774 = vadd.f32 %v3568, %v3687
        %v3775 = vadd.f32 %v3569, %v3689
        %v3776 = vadd.f32 %v3570, %v3691
        %v3777 = vadd.f32 %v3571, %v3693
        %v3778 = vadd.f32 %v3572, %v3695
        %v3779 = vadd.f32 %v3573, %v3697
        %v3780 = vadd.f32 %v3574, %v3699
        %v3781 = vadd.f32 %v3575, %v3701
        %v3782 = vadd.f32 %v3576, %v3703
        %v3783 = vadd.f32 %v3577, %v3705
        %v3784 = vadd.f32 %v3578, %v3707
        %v3785 = vadd.f32 %v3579, %v3709
        %v3786 = vadd.f32 %v3580, %v3711
        %v3787 = vadd.f32 %v3581, %v3713
        %v3788 = vadd.f32 %v3582, %v3715
        %v3789 = vadd.f32 %v3583, %v3717
        %v3790 = vadd.f32 %v3584, %v3719
        %v3791 = vadd.f32 %v3585, %v3721
        %v3792 = vadd.f32 %v3586, %v3723
        %v3793 = vadd.f32 %v3587, %v3725
        %v3794 = vadd.f32 %v3588, %v3727
        %v3795 = vadd.f32 %v3589, %v3729
        %v3796 = vadd.f32 %v3590, %v3731
        %v3797 = vadd.f32 %v3591, %v3733
        %v3798 = vld [vmem:[#allocation3 + $0x4] sm:$0x8]
        %s3799 = scalar_lea.vmem %s342, 14
        %v3800 = vld [vmem:[%s3799] sm:$0x1]
        %v3801 = vunpack.c.l.bf16 %v3798
        %v3802 = vunpack.c.l.bf16 %v3800
        %3804 = vset.pattern.permute.xlu0 0
        %3805 = vperm.xlu0 %3804, %v3801
        %v3806 = vpop.permute.xlu0 %3805
        %v3808 = vperm.slane %v3802, 0
        %v3809 = vmul.f32 %v3806, %v3808
        %v3810 = vmul.f32 %v2621, %v3808
        %v3811 = vmul.f32 %v2626, %v3808
        %v3812 = vmul.f32 %v2631, %v3808
        %v3813 = vmul.f32 %v2636, %v3808
        %v3814 = vmul.f32 %v2641, %v3808
        %v3815 = vmul.f32 %v2646, %v3808
        %v3816 = vmul.f32 %v2651, %v3808
        %v3817 = vmul.f32 %v2656, %v3808
        %v3818 = vmul.f32 %v2661, %v3808
        %v3819 = vmul.f32 %v2666, %v3808
        %v3820 = vmul.f32 %v2671, %v3808
        %v3821 = vmul.f32 %v2676, %v3808
        %v3822 = vmul.f32 %v2681, %v3808
        %v3823 = vmul.f32 %v2686, %v3808
        %v3824 = vmul.f32 %v2691, %v3808
        %v3825 = vmul.f32 %v2696, %v3808
        %v3826 = vmul.f32 %v2701, %v3808
        %v3827 = vmul.f32 %v2706, %v3808
        %v3828 = vmul.f32 %v2711, %v3808
        %v3829 = vmul.f32 %v2716, %v3808
        %v3830 = vmul.f32 %v2721, %v3808
        %v3831 = vmul.f32 %v2726, %v3808
        %v3832 = vmul.f32 %v2731, %v3808
        %v3833 = vmul.f32 %v2736, %v3808
        %v3834 = vmul.f32 %v2741, %v3808
        %v3835 = vmul.f32 %v2746, %v3808
        %v3836 = vmul.f32 %v2751, %v3808
        %v3837 = vmul.f32 %v2756, %v3808
        %v3838 = vmul.f32 %v2761, %v3808
        %v3839 = vmul.f32 %v2766, %v3808
        %v3840 = vmul.f32 %v2771, %v3808
        %v3841 = vmul.f32 %v3600, %v3808
        %v3875 = vrot.slane %v3809, 6
        %v3876 = vrot.slane %v3810, 6
        %v3877 = vsel %vm2139, %v3875, %v3876
        %v3878 = vrot.slane %v3811, 6
        %v3879 = vsel %vm2139, %v3876, %v3878
        %v3880 = vrot.slane %v3812, 6
        %v3881 = vsel %vm2139, %v3878, %v3880
        %v3882 = vrot.slane %v3813, 6
        %v3883 = vsel %vm2139, %v3880, %v3882
        %v3884 = vrot.slane %v3814, 6
        %v3885 = vsel %vm2139, %v3882, %v3884
        %v3886 = vrot.slane %v3815, 6
        %v3887 = vsel %vm2139, %v3884, %v3886
        %v3888 = vrot.slane %v3816, 6
        %v3889 = vsel %vm2139, %v3886, %v3888
        %v3890 = vrot.slane %v3817, 6
        %v3891 = vsel %vm2139, %v3888, %v3890
        %v3892 = vrot.slane %v3818, 6
        %v3893 = vsel %vm2139, %v3890, %v3892
        %v3894 = vrot.slane %v3819, 6
        %v3895 = vsel %vm2139, %v3892, %v3894
        %v3896 = vrot.slane %v3820, 6
        %v3897 = vsel %vm2139, %v3894, %v3896
        %v3898 = vrot.slane %v3821, 6
        %v3899 = vsel %vm2139, %v3896, %v3898
        %v3900 = vrot.slane %v3822, 6
        %v3901 = vsel %vm2139, %v3898, %v3900
        %v3902 = vrot.slane %v3823, 6
        %v3903 = vsel %vm2139, %v3900, %v3902
        %v3904 = vrot.slane %v3824, 6
        %v3905 = vsel %vm2139, %v3902, %v3904
        %v3906 = vrot.slane %v3825, 6
        %v3907 = vsel %vm2139, %v3904, %v3906
        %v3908 = vrot.slane %v3826, 6
        %v3909 = vsel %vm2139, %v3906, %v3908
        %v3910 = vrot.slane %v3827, 6
        %v3911 = vsel %vm2139, %v3908, %v3910
        %v3912 = vrot.slane %v3828, 6
        %v3913 = vsel %vm2139, %v3910, %v3912
        %v3914 = vrot.slane %v3829, 6
        %v3915 = vsel %vm2139, %v3912, %v3914
        %v3916 = vrot.slane %v3830, 6
        %v3917 = vsel %vm2139, %v3914, %v3916
        %v3918 = vrot.slane %v3831, 6
        %v3919 = vsel %vm2139, %v3916, %v3918
        %v3920 = vrot.slane %v3832, 6
        %v3921 = vsel %vm2139, %v3918, %v3920
        %v3922 = vrot.slane %v3833, 6
        %v3923 = vsel %vm2139, %v3920, %v3922
        %v3924 = vrot.slane %v3834, 6
        %v3925 = vsel %vm2139, %v3922, %v3924
        %v3926 = vrot.slane %v3835, 6
        %v3927 = vsel %vm2139, %v3924, %v3926
        %v3928 = vrot.slane %v3836, 6
        %v3929 = vsel %vm2139, %v3926, %v3928
        %v3930 = vrot.slane %v3837, 6
        %v3931 = vsel %vm2139, %v3928, %v3930
        %v3932 = vrot.slane %v3838, 6
        %v3933 = vsel %vm2139, %v3930, %v3932
        %v3934 = vrot.slane %v3839, 6
        %v3935 = vsel %vm2139, %v3932, %v3934
        %v3936 = vrot.slane %v3840, 6
        %v3937 = vsel %vm2139, %v3934, %v3936
        %v3938 = vrot.slane %v3841, 6
        %v3939 = vsel %vm2139, %v3936, %v3938
        %v3972 = vadd.f32 %v3766, %v3877
        %v3973 = vadd.f32 %v3767, %v3879
        %v3974 = vadd.f32 %v3768, %v3881
        %v3975 = vadd.f32 %v3769, %v3883
        %v3976 = vadd.f32 %v3770, %v3885
        %v3977 = vadd.f32 %v3771, %v3887
        %v3978 = vadd.f32 %v3772, %v3889
        %v3979 = vadd.f32 %v3773, %v3891
        %v3980 = vadd.f32 %v3774, %v3893
        %v3981 = vadd.f32 %v3775, %v3895
        %v3982 = vadd.f32 %v3776, %v3897
        %v3983 = vadd.f32 %v3777, %v3899
        %v3984 = vadd.f32 %v3778, %v3901
        %v3985 = vadd.f32 %v3779, %v3903
        %v3986 = vadd.f32 %v3780, %v3905
        %v3987 = vadd.f32 %v3781, %v3907
        %v3988 = vadd.f32 %v3782, %v3909
        %v3989 = vadd.f32 %v3783, %v3911
        %v3990 = vadd.f32 %v3784, %v3913
        %v3991 = vadd.f32 %v3785, %v3915
        %v3992 = vadd.f32 %v3786, %v3917
        %v3993 = vadd.f32 %v3787, %v3919
        %v3994 = vadd.f32 %v3788, %v3921
        %v3995 = vadd.f32 %v3789, %v3923
        %v3996 = vadd.f32 %v3790, %v3925
        %v3997 = vadd.f32 %v3791, %v3927
        %v3998 = vadd.f32 %v3792, %v3929
        %v3999 = vadd.f32 %v3793, %v3931
        %v4000 = vadd.f32 %v3794, %v3933
        %v4001 = vadd.f32 %v3795, %v3935
        %v4002 = vadd.f32 %v3796, %v3937
        %v4003 = vadd.f32 %v3797, %v3939
        %v4004 = vld [vmem:[#allocation2] sm:$0xff]
        %v4005 = vld [vmem:[#allocation2 + $0x8] sm:$0xff]
        %v4006 = vld [vmem:[#allocation2 + $0x10] sm:$0xff]
        %v4007 = vld [vmem:[#allocation2 + $0x18] sm:$0xff]
        %v4008 = vld [vmem:[#allocation2 + $0x20] sm:$0xff]
        %v4009 = vld [vmem:[#allocation2 + $0x28] sm:$0xff]
        %v4010 = vld [vmem:[#allocation2 + $0x30] sm:$0xff]
        %v4011 = vld [vmem:[#allocation2 + $0x38] sm:$0xff]
        %v4012 = vld [vmem:[#allocation2 + $0x40] sm:$0xff]
        %v4013 = vld [vmem:[#allocation2 + $0x48] sm:$0xff]
        %v4014 = vld [vmem:[#allocation2 + $0x50] sm:$0xff]
        %v4015 = vld [vmem:[#allocation2 + $0x58] sm:$0xff]
        %v4016 = vld [vmem:[#allocation2 + $0x60] sm:$0xff]
        %v4017 = vld [vmem:[#allocation2 + $0x68] sm:$0xff]
        %v4018 = vld [vmem:[#allocation2 + $0x70] sm:$0xff]
        %v4019 = vld [vmem:[#allocation2 + $0x78] sm:$0xff]
        %v4020 = vld [vmem:[#allocation2 + $0x80] sm:$0xff]
        %v4021 = vld [vmem:[#allocation2 + $0x88] sm:$0xff]
        %v4022 = vld [vmem:[#allocation2 + $0x90] sm:$0xff]
        %v4023 = vld [vmem:[#allocation2 + $0x98] sm:$0xff]
        %v4024 = vld [vmem:[#allocation2 + $0xa0] sm:$0xff]
        %v4025 = vld [vmem:[#allocation2 + $0xa8] sm:$0xff]
        %v4026 = vld [vmem:[#allocation2 + $0xb0] sm:$0xff]
        %v4027 = vld [vmem:[#allocation2 + $0xb8] sm:$0xff]
        %v4028 = vld [vmem:[#allocation2 + $0xc0] sm:$0xff]
        %v4029 = vld [vmem:[#allocation2 + $0xc8] sm:$0xff]
        %v4030 = vld [vmem:[#allocation2 + $0xd0] sm:$0xff]
        %v4031 = vld [vmem:[#allocation2 + $0xd8] sm:$0xff]
        %v4032 = vld [vmem:[#allocation2 + $0xe0] sm:$0xff]
        %v4033 = vld [vmem:[#allocation2 + $0xe8] sm:$0xff]
        %v4034 = vld [vmem:[#allocation2 + $0xf0] sm:$0xff]
        %v4035 = vld [vmem:[#allocation2 + $0xf8] sm:$0xff]
        %v4036 = vadd.f32 %v4004, %v3972
        %v4037 = vadd.f32 %v4005, %v3973
        %v4038 = vadd.f32 %v4006, %v3974
        %v4039 = vadd.f32 %v4007, %v3975
        %v4040 = vadd.f32 %v4008, %v3976
        %v4041 = vadd.f32 %v4009, %v3977
        %v4042 = vadd.f32 %v4010, %v3978
        %v4043 = vadd.f32 %v4011, %v3979
        %v4044 = vadd.f32 %v4012, %v3980
        %v4045 = vadd.f32 %v4013, %v3981
        %v4046 = vadd.f32 %v4014, %v3982
        %v4047 = vadd.f32 %v4015, %v3983
        %v4048 = vadd.f32 %v4016, %v3984
        %v4049 = vadd.f32 %v4017, %v3985
        %v4050 = vadd.f32 %v4018, %v3986
        %v4051 = vadd.f32 %v4019, %v3987
        %v4052 = vadd.f32 %v4020, %v3988
        %v4053 = vadd.f32 %v4021, %v3989
        %v4054 = vadd.f32 %v4022, %v3990
        %v4055 = vadd.f32 %v4023, %v3991
        %v4056 = vadd.f32 %v4024, %v3992
        %v4057 = vadd.f32 %v4025, %v3993
        %v4058 = vadd.f32 %v4026, %v3994
        %v4059 = vadd.f32 %v4027, %v3995
        %v4060 = vadd.f32 %v4028, %v3996
        %v4061 = vadd.f32 %v4029, %v3997
        %v4062 = vadd.f32 %v4030, %v3998
        %v4063 = vadd.f32 %v4031, %v3999
        %v4064 = vadd.f32 %v4032, %v4000
        %v4065 = vadd.f32 %v4033, %v4001
        %v4066 = vadd.f32 %v4034, %v4002
        %v4067 = vadd.f32 %v4035, %v4003
        %4068 = vst [vmem:[#allocation2] sm:$0xff] %v4036
        %4069 = vst [vmem:[#allocation2 + $0x8] sm:$0xff] %v4037
        %4070 = vst [vmem:[#allocation2 + $0x10] sm:$0xff] %v4038
        %4071 = vst [vmem:[#allocation2 + $0x18] sm:$0xff] %v4039
        %4072 = vst [vmem:[#allocation2 + $0x20] sm:$0xff] %v4040
        %4073 = vst [vmem:[#allocation2 + $0x28] sm:$0xff] %v4041
        %4074 = vst [vmem:[#allocation2 + $0x30] sm:$0xff] %v4042
        %4075 = vst [vmem:[#allocation2 + $0x38] sm:$0xff] %v4043
        %4076 = vst [vmem:[#allocation2 + $0x40] sm:$0xff] %v4044
        %4077 = vst [vmem:[#allocation2 + $0x48] sm:$0xff] %v4045
        %4078 = vst [vmem:[#allocation2 + $0x50] sm:$0xff] %v4046
        %4079 = vst [vmem:[#allocation2 + $0x58] sm:$0xff] %v4047
        %4080 = vst [vmem:[#allocation2 + $0x60] sm:$0xff] %v4048
        %4081 = vst [vmem:[#allocation2 + $0x68] sm:$0xff] %v4049
        %4082 = vst [vmem:[#allocation2 + $0x70] sm:$0xff] %v4050
        %4083 = vst [vmem:[#allocation2 + $0x78] sm:$0xff] %v4051
        %4084 = vst [vmem:[#allocation2 + $0x80] sm:$0xff] %v4052
        %4085 = vst [vmem:[#allocation2 + $0x88] sm:$0xff] %v4053
        %4086 = vst [vmem:[#allocation2 + $0x90] sm:$0xff] %v4054
        %4087 = vst [vmem:[#allocation2 + $0x98] sm:$0xff] %v4055
        %4088 = vst [vmem:[#allocation2 + $0xa0] sm:$0xff] %v4056
        %4089 = vst [vmem:[#allocation2 + $0xa8] sm:$0xff] %v4057
        %4090 = vst [vmem:[#allocation2 + $0xb0] sm:$0xff] %v4058
        %4091 = vst [vmem:[#allocation2 + $0xb8] sm:$0xff] %v4059
        %4092 = vst [vmem:[#allocation2 + $0xc0] sm:$0xff] %v4060
        %4093 = vst [vmem:[#allocation2 + $0xc8] sm:$0xff] %v4061
        %4094 = vst [vmem:[#allocation2 + $0xd0] sm:$0xff] %v4062
        %4095 = vst [vmem:[#allocation2 + $0xd8] sm:$0xff] %v4063
        %4096 = vst [vmem:[#allocation2 + $0xe0] sm:$0xff] %v4064
        %4097 = vst [vmem:[#allocation2 + $0xe8] sm:$0xff] %v4065
        %4098 = vst [vmem:[#allocation2 + $0xf0] sm:$0xff] %v4066
        %4099 = vst [vmem:[#allocation2 + $0xf8] sm:$0xff] %v4067
        // Predicated region
        $region41: #{tpu_custom_call.1} parent=35 // pred_check
          %p4100 = pneg %p347
        $region42: #{tpu_custom_call.1} parent=35 // pred_check_branch
          %4102 = sbr.rel (%p4100) target = $region44
        $region43: #{tpu_custom_call.1} parent=35 // pred_region
          %v4103 = vld [vmem:[#allocation2] sm:$0xff]
          %v4104 = vld [vmem:[#allocation2 + $0x8] sm:$0xff]
          %v4105 = vld [vmem:[#allocation2 + $0x10] sm:$0xff]
          %v4106 = vld [vmem:[#allocation2 + $0x18] sm:$0xff]
          %v4107 = vld [vmem:[#allocation2 + $0x20] sm:$0xff]
          %v4108 = vld [vmem:[#allocation2 + $0x28] sm:$0xff]
          %v4109 = vld [vmem:[#allocation2 + $0x30] sm:$0xff]
          %v4110 = vld [vmem:[#allocation2 + $0x38] sm:$0xff]
          %v4111 = vld [vmem:[#allocation2 + $0x40] sm:$0xff]
          %v4112 = vld [vmem:[#allocation2 + $0x48] sm:$0xff]
          %v4113 = vld [vmem:[#allocation2 + $0x50] sm:$0xff]
          %v4114 = vld [vmem:[#allocation2 + $0x58] sm:$0xff]
          %v4115 = vld [vmem:[#allocation2 + $0x60] sm:$0xff]
          %v4116 = vld [vmem:[#allocation2 + $0x68] sm:$0xff]
          %v4117 = vld [vmem:[#allocation2 + $0x70] sm:$0xff]
          %v4118 = vld [vmem:[#allocation2 + $0x78] sm:$0xff]
          %v4119 = vld [vmem:[#allocation2 + $0x80] sm:$0xff]
          %v4120 = vld [vmem:[#allocation2 + $0x88] sm:$0xff]
          %v4121 = vld [vmem:[#allocation2 + $0x90] sm:$0xff]
          %v4122 = vld [vmem:[#allocation2 + $0x98] sm:$0xff]
          %v4123 = vld [vmem:[#allocation2 + $0xa0] sm:$0xff]
          %v4124 = vld [vmem:[#allocation2 + $0xa8] sm:$0xff]
          %v4125 = vld [vmem:[#allocation2 + $0xb0] sm:$0xff]
          %v4126 = vld [vmem:[#allocation2 + $0xb8] sm:$0xff]
          %v4127 = vld [vmem:[#allocation2 + $0xc0] sm:$0xff]
          %v4128 = vld [vmem:[#allocation2 + $0xc8] sm:$0xff]
          %v4129 = vld [vmem:[#allocation2 + $0xd0] sm:$0xff]
          %v4130 = vld [vmem:[#allocation2 + $0xd8] sm:$0xff]
          %v4131 = vld [vmem:[#allocation2 + $0xe0] sm:$0xff]
          %v4132 = vld [vmem:[#allocation2 + $0xe8] sm:$0xff]
          %v4133 = vld [vmem:[#allocation2 + $0xf0] sm:$0xff]
          %v4134 = vld [vmem:[#allocation2 + $0xf8] sm:$0xff]
          %v4135 = vld [vmem:[%s345] sm:$0x1]
          %v4137 = vperm.slane %v4135, 0
          %v4139 = vadd.f32 %v4103, %v4137
          %v4140 = vadd.f32 %v4104, %v4137
          %v4141 = vadd.f32 %v4105, %v4137
          %v4142 = vadd.f32 %v4106, %v4137
          %v4143 = vadd.f32 %v4107, %v4137
          %v4144 = vadd.f32 %v4108, %v4137
          %v4145 = vadd.f32 %v4109, %v4137
          %v4146 = vadd.f32 %v4110, %v4137
          %v4147 = vadd.f32 %v4111, %v4137
          %v4148 = vadd.f32 %v4112, %v4137
          %v4149 = vadd.f32 %v4113, %v4137
          %v4150 = vadd.f32 %v4114, %v4137
          %v4151 = vadd.f32 %v4115, %v4137
          %v4152 = vadd.f32 %v4116, %v4137
          %v4153 = vadd.f32 %v4117, %v4137
          %v4154 = vadd.f32 %v4118, %v4137
          %v4155 = vadd.f32 %v4119, %v4137
          %v4156 = vadd.f32 %v4120, %v4137
          %v4157 = vadd.f32 %v4121, %v4137
          %v4158 = vadd.f32 %v4122, %v4137
          %v4159 = vadd.f32 %v4123, %v4137
          %v4160 = vadd.f32 %v4124, %v4137
          %v4161 = vadd.f32 %v4125, %v4137
          %v4162 = vadd.f32 %v4126, %v4137
          %v4163 = vadd.f32 %v4127, %v4137
          %v4164 = vadd.f32 %v4128, %v4137
          %v4165 = vadd.f32 %v4129, %v4137
          %v4166 = vadd.f32 %v4130, %v4137
          %v4167 = vadd.f32 %v4131, %v4137
          %v4168 = vadd.f32 %v4132, %v4137
          %v4169 = vadd.f32 %v4133, %v4137
          %v4170 = vadd.f32 %v4134, %v4137
          %vm4171 = vcmp.ge.f32.partialorder %v4139, 0.0
          %vm4172 = vcmp.ge.f32.partialorder %v4140, 0.0
          %vm4173 = vcmp.ge.f32.partialorder %v4141, 0.0
          %vm4174 = vcmp.ge.f32.partialorder %v4142, 0.0
          %vm4175 = vcmp.ge.f32.partialorder %v4143, 0.0
          %vm4176 = vcmp.ge.f32.partialorder %v4144, 0.0
          %vm4177 = vcmp.ge.f32.partialorder %v4145, 0.0
          %vm4178 = vcmp.ge.f32.partialorder %v4146, 0.0
          %vm4179 = vcmp.ge.f32.partialorder %v4147, 0.0
          %vm4180 = vcmp.ge.f32.partialorder %v4148, 0.0
          %vm4181 = vcmp.ge.f32.partialorder %v4149, 0.0
          %vm4182 = vcmp.ge.f32.partialorder %v4150, 0.0
          %vm4183 = vcmp.ge.f32.partialorder %v4151, 0.0
          %vm4184 = vcmp.ge.f32.partialorder %v4152, 0.0
          %vm4185 = vcmp.ge.f32.partialorder %v4153, 0.0
          %vm4186 = vcmp.ge.f32.partialorder %v4154, 0.0
          %vm4187 = vcmp.ge.f32.partialorder %v4155, 0.0
          %vm4188 = vcmp.ge.f32.partialorder %v4156, 0.0
          %vm4189 = vcmp.ge.f32.partialorder %v4157, 0.0
          %vm4190 = vcmp.ge.f32.partialorder %v4158, 0.0
          %vm4191 = vcmp.ge.f32.partialorder %v4159, 0.0
          %vm4192 = vcmp.ge.f32.partialorder %v4160, 0.0
          %vm4193 = vcmp.ge.f32.partialorder %v4161, 0.0
          %vm4194 = vcmp.ge.f32.partialorder %v4162, 0.0
          %vm4195 = vcmp.ge.f32.partialorder %v4163, 0.0
          %vm4196 = vcmp.ge.f32.partialorder %v4164, 0.0
          %vm4197 = vcmp.ge.f32.partialorder %v4165, 0.0
          %vm4198 = vcmp.ge.f32.partialorder %v4166, 0.0
          %vm4199 = vcmp.ge.f32.partialorder %v4167, 0.0
          %vm4200 = vcmp.ge.f32.partialorder %v4168, 0.0
          %vm4201 = vcmp.ge.f32.partialorder %v4169, 0.0
          %vm4202 = vcmp.ge.f32.partialorder %v4170, 0.0
          %v4203 = vmul.f32 %v4139, 0.1
          %v4204 = vmul.f32 %v4140, 0.1
          %v4205 = vmul.f32 %v4141, 0.1
          %v4206 = vmul.f32 %v4142, 0.1
          %v4207 = vmul.f32 %v4143, 0.1
          %v4208 = vmul.f32 %v4144, 0.1
          %v4209 = vmul.f32 %v4145, 0.1
          %v4210 = vmul.f32 %v4146, 0.1
          %v4211 = vmul.f32 %v4147, 0.1
          %v4212 = vmul.f32 %v4148, 0.1
          %v4213 = vmul.f32 %v4149, 0.1
          %v4214 = vmul.f32 %v4150, 0.1
          %v4215 = vmul.f32 %v4151, 0.1
          %v4216 = vmul.f32 %v4152, 0.1
          %v4217 = vmul.f32 %v4153, 0.1
          %v4218 = vmul.f32 %v4154, 0.1
          %v4219 = vmul.f32 %v4155, 0.1
          %v4220 = vmul.f32 %v4156, 0.1
          %v4221 = vmul.f32 %v4157, 0.1
          %v4222 = vmul.f32 %v4158, 0.1
          %v4223 = vmul.f32 %v4159, 0.1
          %v4224 = vmul.f32 %v4160, 0.1
          %v4225 = vmul.f32 %v4161, 0.1
          %v4226 = vmul.f32 %v4162, 0.1
          %v4227 = vmul.f32 %v4163, 0.1
          %v4228 = vmul.f32 %v4164, 0.1
          %v4229 = vmul.f32 %v4165, 0.1
          %v4230 = vmul.f32 %v4166, 0.1
          %v4231 = vmul.f32 %v4167, 0.1
          %v4232 = vmul.f32 %v4168, 0.1
          %v4233 = vmul.f32 %v4169, 0.1
          %v4234 = vmul.f32 %v4170, 0.1
          %v4235 = vsel %vm4171, %v4139, %v4203
          %v4236 = vsel %vm4172, %v4140, %v4204
          %v4237 = vsel %vm4173, %v4141, %v4205
          %v4238 = vsel %vm4174, %v4142, %v4206
          %v4239 = vsel %vm4175, %v4143, %v4207
          %v4240 = vsel %vm4176, %v4144, %v4208
          %v4241 = vsel %vm4177, %v4145, %v4209
          %v4242 = vsel %vm4178, %v4146, %v4210
          %v4243 = vsel %vm4179, %v4147, %v4211
          %v4244 = vsel %vm4180, %v4148, %v4212
          %v4245 = vsel %vm4181, %v4149, %v4213
          %v4246 = vsel %vm4182, %v4150, %v4214
          %v4247 = vsel %vm4183, %v4151, %v4215
          %v4248 = vsel %vm4184, %v4152, %v4216
          %v4249 = vsel %vm4185, %v4153, %v4217
          %v4250 = vsel %vm4186, %v4154, %v4218
          %v4251 = vsel %vm4187, %v4155, %v4219
          %v4252 = vsel %vm4188, %v4156, %v4220
          %v4253 = vsel %vm4189, %v4157, %v4221
          %v4254 = vsel %vm4190, %v4158, %v4222
          %v4255 = vsel %vm4191, %v4159, %v4223
          %v4256 = vsel %vm4192, %v4160, %v4224
          %v4257 = vsel %vm4193, %v4161, %v4225
          %v4258 = vsel %vm4194, %v4162, %v4226
          %v4259 = vsel %vm4195, %v4163, %v4227
          %v4260 = vsel %vm4196, %v4164, %v4228
          %v4261 = vsel %vm4197, %v4165, %v4229
          %v4262 = vsel %vm4198, %v4166, %v4230
          %v4263 = vsel %vm4199, %v4167, %v4231
          %v4264 = vsel %vm4200, %v4168, %v4232
          %v4265 = vsel %vm4201, %v4169, %v4233
          %v4266 = vsel %vm4202, %v4170, %v4234
          %v4267 = vpack.c.bf16 %v4235, %v4235
          %v4268 = vpack.c.bf16 %v4236, %v4236
          %v4269 = vpack.c.bf16 %v4237, %v4237
          %v4270 = vpack.c.bf16 %v4238, %v4238
          %v4271 = vpack.c.bf16 %v4239, %v4239
          %v4272 = vpack.c.bf16 %v4240, %v4240
          %v4273 = vpack.c.bf16 %v4241, %v4241
          %v4274 = vpack.c.bf16 %v4242, %v4242
          %v4275 = vpack.c.bf16 %v4243, %v4243
          %v4276 = vpack.c.bf16 %v4244, %v4244
          %v4277 = vpack.c.bf16 %v4245, %v4245
          %v4278 = vpack.c.bf16 %v4246, %v4246
          %v4279 = vpack.c.bf16 %v4247, %v4247
          %v4280 = vpack.c.bf16 %v4248, %v4248
          %v4281 = vpack.c.bf16 %v4249, %v4249
          %v4282 = vpack.c.bf16 %v4250, %v4250
          %v4283 = vpack.c.bf16 %v4251, %v4251
          %v4284 = vpack.c.bf16 %v4252, %v4252
          %v4285 = vpack.c.bf16 %v4253, %v4253
          %v4286 = vpack.c.bf16 %v4254, %v4254
          %v4287 = vpack.c.bf16 %v4255, %v4255
          %v4288 = vpack.c.bf16 %v4256, %v4256
          %v4289 = vpack.c.bf16 %v4257, %v4257
          %v4290 = vpack.c.bf16 %v4258, %v4258
          %v4291 = vpack.c.bf16 %v4259, %v4259
          %v4292 = vpack.c.bf16 %v4260, %v4260
          %v4293 = vpack.c.bf16 %v4261, %v4261
          %v4294 = vpack.c.bf16 %v4262, %v4262
          %v4295 = vpack.c.bf16 %v4263, %v4263
          %v4296 = vpack.c.bf16 %v4264, %v4264
          %v4297 = vpack.c.bf16 %v4265, %v4265
          %v4298 = vpack.c.bf16 %v4266, %v4266
          %4299 = vst [vmem:[%s308] sm:$0xf] %v4267
          %4300 = vst [vmem:[%s308 + $0x4] sm:$0xf] %v4268
          %4301 = vst [vmem:[%s308 + $0x8] sm:$0xf] %v4269
          %4302 = vst [vmem:[%s308 + $0xc] sm:$0xf] %v4270
          %4303 = vst [vmem:[%s308 + $0x10] sm:$0xf] %v4271
          %4304 = vst [vmem:[%s308 + $0x14] sm:$0xf] %v4272
          %4305 = vst [vmem:[%s308 + $0x18] sm:$0xf] %v4273
          %4306 = vst [vmem:[%s308 + $0x1c] sm:$0xf] %v4274
          %4307 = vst [vmem:[%s308 + $0x20] sm:$0xf] %v4275
          %4308 = vst [vmem:[%s308 + $0x24] sm:$0xf] %v4276
          %4309 = vst [vmem:[%s308 + $0x28] sm:$0xf] %v4277
          %4310 = vst [vmem:[%s308 + $0x2c] sm:$0xf] %v4278
          %4311 = vst [vmem:[%s308 + $0x30] sm:$0xf] %v4279
          %4312 = vst [vmem:[%s308 + $0x34] sm:$0xf] %v4280
          %4313 = vst [vmem:[%s308 + $0x38] sm:$0xf] %v4281
          %4314 = vst [vmem:[%s308 + $0x3c] sm:$0xf] %v4282
          %4315 = vst [vmem:[%s308 + $0x40] sm:$0xf] %v4283
          %4316 = vst [vmem:[%s308 + $0x44] sm:$0xf] %v4284
          %4317 = vst [vmem:[%s308 + $0x48] sm:$0xf] %v4285
          %4318 = vst [vmem:[%s308 + $0x4c] sm:$0xf] %v4286
          %4319 = vst [vmem:[%s308 + $0x50] sm:$0xf] %v4287
          %4320 = vst [vmem:[%s308 + $0x54] sm:$0xf] %v4288
          %4321 = vst [vmem:[%s308 + $0x58] sm:$0xf] %v4289
          %4322 = vst [vmem:[%s308 + $0x5c] sm:$0xf] %v4290
          %4323 = vst [vmem:[%s308 + $0x60] sm:$0xf] %v4291
          %4324 = vst [vmem:[%s308 + $0x64] sm:$0xf] %v4292
          %4325 = vst [vmem:[%s308 + $0x68] sm:$0xf] %v4293
          %4326 = vst [vmem:[%s308 + $0x6c] sm:$0xf] %v4294
          %4327 = vst [vmem:[%s308 + $0x70] sm:$0xf] %v4295
          %4328 = vst [vmem:[%s308 + $0x74] sm:$0xf] %v4296
          %4329 = vst [vmem:[%s308 + $0x78] sm:$0xf] %v4297
          %4330 = vst [vmem:[%s308 + $0x7c] sm:$0xf] %v4298
        $region44: #{tpu_custom_call.1} parent=35 // pred_fallthru
          _
        %s4331 = sand.u32 %s172, 1
        %s4332 = scalar_lea.sflag [#allocation5], %s4331
        %s4333 = sand.u32 %s172, 1
        %s4334 = smul.addr %s4333, 128
        %s4335 = scalar_lea.vmem [#allocation4], %s4334
        // Predicated region
        $region45: #{tpu_custom_call.1} parent=35 // pred_check
          %p4336 = pneg %p182
        $region46: #{tpu_custom_call.1} parent=35 // pred_check_branch
          %4338 = sbr.rel (%p4336) target = $region48
        $region47: #{tpu_custom_call.1} parent=35 // pred_region
          %s4339 = smul.u32 32, %s25
          %4341 = vsyncadd %s4332, 0
          %s4342 = sadd.s32 %s26, %s4339
          %s4343 = smul.addr %s24, 128
          %s4344 = sadd.s32 %s4342, %s4343
          %s4345 = smul.addr %s4344, 4
          %s4346 = scalar_lea.hbm %s4, %s4345
          %s4347 = sshll.u32 %s4335, 4
          %s4348 = int_to_ptr.vmem [resolvable:$true] %s4347
          %s4349 = sshll.u32 %s4346, 4
          %s4350 = int_to_ptr.hbm [resolvable:$true] %s4349
          %4355 = dma.vmem_to_hbm [thread:$0]  %s4348, 2048, %s4350, %s4332, 64, 64, 4
        $region48: #{tpu_custom_call.1} parent=35 // pred_fallthru
          _
      $region36: #{tpu_custom_call.1} parent=5 // pred_fallthru
        _
      %p4356 = scmp.le.s32.totalorder 2, %s13
      // Predicated region
      $region49: #{tpu_custom_call.1} parent=5 // pred_check
        %p4357 = pneg %p4356
      $region50: #{tpu_custom_call.1} parent=5 // pred_check_branch
        %4359 = sbr.rel (%p4357) target = $region52
      $region51: #{tpu_custom_call.1} parent=5 // pred_region
        %s4360 = ssub.s32 %s13, 2
        // Predicated region
        $region53: #{tpu_custom_call.1} parent=51 // pred_check
          %p4361 = pneg %p188
        $region54: #{tpu_custom_call.1} parent=51 // pred_check_branch
          %4363 = sbr.rel (%p4361) target = $region56
        $region55: #{tpu_custom_call.1} parent=51 // pred_region
          %s4364 = sand.u32 %s173, 1
          %s4365 = scalar_lea.sflag [#allocation5], %s4364
          %s4366 = sand.u32 %s173, 1
          %s4367 = smul.addr %s4366, 128
          %s4368 = scalar_lea.vmem [#allocation4], %s4367
          %4370 = dma.done %s4365, 2048
        $region56: #{tpu_custom_call.1} parent=51 // pred_fallthru
          _
      $region52: #{tpu_custom_call.1} parent=5 // pred_fallthru
        _
    $region6: #{tpu_custom_call.1} parent=1 // loop_footer
      %s17 = sadd.s32 1, %s13
    $region7: #{tpu_custom_call.1} parent=1 // loop_footer_branch
      %12 = sbr.rel target = $region3
    $region8: #{tpu_custom_call.1} parent=1 // loop_exit
      _
    %4371 = vsyncpa [#allocation5], 1
    %s4372 = scalar_lea.sflag [#allocation5], 1
    %4373 = vsyncpa %s4372, 1

</llo_original>
